<compile_context>
chip_gen: v5e
topology: v5e:2x2
jax: 0.10.0
libtpu: 0.0.40
codegen_flags: <defaults>
</compile_context>

<pallas_src>
import functools
import math

import numpy as np
import jax
import jax.numpy as jnp
from jax.experimental import pallas as pl
from jax.experimental.pallas import tpu as pltpu


_POOL_LIST = (1, 2, 3, 4)
_C1 = 32                                   # conv1d out channels == conv2d image height
_HO = (_C1 + 2 * 3 - 7) // 2 + 1           # = 16, conv2d output height (fixed)
_HP2 = (_C1 + 6) // 2                      # = 19, padded image height per row parity
_NBINS = sum(p * p for p in _POOL_LIST)    # = 30 SPP bins


def _adaptive_bins(size, ps):
    """torch adaptive_max_pool bin boundaries: [floor(i*s/ps), ceil((i+1)*s/ps))."""
    return [((i * size) // ps, -((-(i + 1) * size) // ps)) for i in range(ps)]


def _blockwise_tree_max(x, nblk):
    """Max-reduce nblk consecutive 32-lane blocks of x (rows, nblk*32) -> (rows, 32).

    Tree fold on wide contiguous lane ranges (few, chunky VPU ops) instead of
    nblk-1 separate 32-lane slice maxima.
    """
    carry = None
    while nblk > 1:
        if nblk % 2:
            last = x[:, (nblk - 1) * _C1: nblk * _C1]
            carry = last if carry is None else jnp.maximum(carry, last)
            nblk -= 1
        half = nblk // 2
        x = jnp.maximum(x[:, : half * _C1], x[:, half * _C1: nblk * _C1])
        nblk = half
    return x if carry is None else jnp.maximum(x, carry)


# --------------------------------------------------------------------------
# Fused Pallas kernel: one grid step = `bn` samples, everything stays in VMEM
# --------------------------------------------------------------------------
def _fused_kernel(pa_ref, pb_ref, wa_ref, sha_ref, wb_ref, shb_ref,
                  w2m_ref, sh1_ref, w1_ref, b1_ref, w2_ref, b2_ref,
                  o_ref, img_ref, *, bn, lp):
    wo = lp                     # conv2d output width
    wp = 2 * lp + 6             # padded image width

    wa = wa_ref[...]            # (32, 7) bf16, BN scale folded, odd channels first
    wb = wb_ref[...]
    sha = sha_ref[...]          # (32, 1) f32 shifts
    shb = shb_ref[...]

    # Scratch persists across grid iterations -> re-zero the pad regions each step.
    img_ref[...] = jnp.zeros(img_ref.shape, jnp.float32)

    # ---- branch: Conv1d(1->32,k7,p3) [BN scale folded] + shift + ReLU +
    #      MaxPool1d(3,3).  Patch columns are pool-phase-major per sample so
    #      the pool is a max of three Lp-lane slabs.  Then build the
    #      row-parity de-interleaved, zero-padded conv2d input image.
    for s in range(bn):
        ya = jnp.dot(wa, pa_ref[s], preferred_element_type=jnp.float32)  # (32, 3*Lp)
        ya = jnp.maximum(ya + sha, 0.0)
        ya = jnp.maximum(jnp.maximum(ya[:, :lp], ya[:, lp:2 * lp]), ya[:, 2 * lp:])
        yb = jnp.dot(wb, pb_ref[s], preferred_element_type=jnp.float32)
        yb = jnp.maximum(yb + shb, 0.0)
        yb = jnp.maximum(jnp.maximum(yb[:, :lp], yb[:, lp:2 * lp]), yb[:, 2 * lp:])
        # rows 0:16 = odd conv1d channels -> even padded-image rows (parity 0)
        img_ref[s, 2:18, 3:3 + 2 * lp] = jnp.concatenate([ya[:16], yb[:16]], axis=1)
        # rows 16:32 = even conv1d channels -> odd padded-image rows (parity 1)
        img_ref[bn + s, 1:17, 3:3 + 2 * lp] = jnp.concatenate([ya[16:], yb[16:]], axis=1)

    # ---- Conv2d(1->32, 7x7, stride 2, pad 3) [BN scale folded] as ONE MXU
    #      matmul: concat the 7 kh windows along lanes (K = 7*Wp), bf16 lhs.
    img = img_ref[...]                                   # (2*bn, 19, Wp)
    lhs = jnp.concatenate(
        [img[(kh % 2) * bn:(kh % 2) * bn + bn, kh // 2:kh // 2 + _HO, :]
         .reshape(bn * _HO, wp) for kh in range(7)],
        axis=-1).astype(jnp.bfloat16)                    # (bn*HO, 7*Wp)
    acc = jnp.dot(lhs, w2m_ref[...], preferred_element_type=jnp.float32)
    feat = jnp.maximum(acc + sh1_ref[...], 0.0)          # (bn*HO, WO*32), f32

    # ---- spatial pyramid max pooling, accumulated in registers
    blocks = []
    for ps in _POOL_LIST:
        hb = _adaptive_bins(_HO, ps)
        wb_bins = _adaptive_bins(wo, ps)
        wred = [_blockwise_tree_max(feat[:, ws * _C1:we * _C1], we - ws)
                .reshape(bn, _HO, _C1) for (ws, we) in wb_bins]
        for (hs, he) in hb:
            for bw in range(ps):
                blocks.append(jnp.max(wred[bw][:, hs:he, :], axis=1))   # (bn, 32)
    spp = jnp.concatenate(blocks, axis=-1)               # (bn, 960), lane-dense

    # ---- fc1 (bf16 MXU, f32 acc) + ReLU, fc2 as VPU mul + lane reduction,
    #      sigmoid
    h = jnp.dot(spp.astype(jnp.bfloat16), w1_ref[...],
                preferred_element_type=jnp.float32)
    h = jnp.maximum(h + b1_ref[...], 0.0)
    # TODO(synk): nn.Dropout(0.5) is inference-mode identity here.
    z = jnp.sum(h * w2_ref[...], axis=-1, keepdims=True) + b2_ref[...]
    o_ref[...] = jax.nn.sigmoid(z).reshape(o_ref.shape)


# --------------------------------------------------------------------------
# Host-side patch build and one-time weight preparation
# --------------------------------------------------------------------------
def _per_sample_patches(xpad_1d, lp):
    """(N, L+6) f32 -> (N, 7, 3*Lp) bf16 im2col; per sample, columns ordered
    (pool phase ph, pooled position i) with conv position = 3*i + ph."""
    n_, lpad = xpad_1d.shape
    l = lpad - 6
    p = jnp.stack([xpad_1d[:, k:k + l] for k in range(7)], axis=1)   # (N, 7, L)
    p = p.reshape(n_, 7, lp, 3)
    p = jnp.transpose(p, (0, 1, 3, 2))                               # (N, 7, 3, Lp)
    return p.reshape(n_, 7, 3 * lp).astype(jnp.bfloat16)


def _fuse_bn(conv_b, gamma, beta, mean, var, eps=1e-5):
    scale = gamma / jnp.sqrt(var + eps)
    shift = (conv_b - mean) * scale + beta
    return scale, shift


def prepare_params(params, l):
    """Fold BN into weights and pre-arrange every operand the fused kernel
    needs.  Call once per parameter set / sequence length."""
    assert l % 3 == 0, "MaxPool1d(3, stride=3): require L % 3 == 0 (see TODO)"
    lp = l // 3
    wo = lp
    wp = 2 * lp + 6

    # conv1d output channels emitted odd-first so image rows de-interleave by parity
    perm_ch = np.array([c for c in range(1, _C1, 2)] +
                       [c for c in range(0, _C1, 2)], dtype=np.int32)

    sA, shA = _fuse_bn(params["convA_b"], params["bnA1_gamma"], params["bnA1_beta"],
                       params["bnA1_mean"], params["bnA1_var"])
    sB, shB = _fuse_bn(params["convB_b"], params["bnB1_gamma"], params["bnB1_beta"],
                       params["bnB1_mean"], params["bnB1_var"])
    s1, sh1 = _fuse_bn(params["conv1_b"], params["bn1_gamma"], params["bn1_beta"],
                       params["bn1_mean"], params["bn1_var"])

    waT = (params["convA_w"].reshape(_C1, 7) * sA[:, None])[perm_ch].astype(jnp.bfloat16)
    wbT = (params["convB_w"].reshape(_C1, 7) * sB[:, None])[perm_ch].astype(jnp.bfloat16)
    shAp = shA[perm_ch].reshape(_C1, 1)
    shBp = shB[perm_ch].reshape(_C1, 1)

    # conv2d taps (kh, kw, oc) with BN scale folded; absorb kw taps, the
    # W-stride-2 and the W zero-padding into a (7*Wp, WO*32) bf16 weight whose
    # row order matches the kernel's kh-major lhs concatenation.
    wt = params["conv1_w"].reshape(_C1, 49).T.reshape(7, 7, _C1) * s1[None, None, :]
    kwm = jnp.arange(wp)[:, None] - 2 * jnp.arange(wo)[None, :]        # (Wp, WO)
    valid = (kwm >= 0) & (kwm < 7)
    w2m = wt[:, jnp.clip(kwm, 0, 6), :]                                # (7, Wp, WO, 32)
    w2m = jnp.where(valid[None, :, :, None], w2m, 0.0)
    w2m = w2m.reshape(7 * wp, wo * _C1).astype(jnp.bfloat16)
    sh1_row = jnp.tile(sh1, wo).reshape(1, wo * _C1)

    # fc1 rows permuted from torch's SPP flattening (oc*ps*ps + bh*ps + bw per
    # level) into the kernel's bin-major (level, bh, bw, oc) order; bf16 cast.
    perm_fc = []
    off = 0
    for ps in _POOL_LIST:
        for bh in range(ps):
            for bw in range(ps):
                for oc in range(_C1):
                    perm_fc.append(off + oc * ps * ps + bh * ps + bw)
        off += _C1 * ps * ps
    perm_fc = np.array(perm_fc, dtype=np.int32)
    w1 = jnp.transpose(params["fc1_w"])[perm_fc, :].astype(jnp.bfloat16)  # (960, 1024)

    return {
        "waT": waT, "shA": shAp, "wbT": wbT, "shB": shBp,
        "w2m": w2m, "sh1": sh1_row,
        "w1": w1, "b1": params["fc1_b"].reshape(1, -1),
        "w2": params["fc2_w"].reshape(1, -1), "b2": params["fc2_b"].reshape(1, 1),
    }


# --------------------------------------------------------------------------
# Full forward (mirrors DeepRamanModel.forward, inference mode)
# --------------------------------------------------------------------------
def deep_raman_forward(prep, x, *, bn=1):
    """x: (N, 2, L) float32 with L % 3 == 0.  Returns (N,) sigmoid scores.
    `bn` = samples per grid step (batch grid, 'parallel' semantics)."""
    n, two, l = x.shape
    assert two == 2
    # TODO(synk): torch MaxPool1d(3,3) silently truncates a tail remainder; we
    # require L % 3 == 0 instead of replicating the truncation.
    assert l % 3 == 0
    assert n % bn == 0
    lp = l // 3
    wo = lp
    wp = 2 * lp + 6

    xpad = jnp.pad(x, ((0, 0), (0, 0), (3, 3)))
    pa = _per_sample_patches(xpad[:, 0, :], lp)     # (N, 7, 3*Lp) bf16
    pb = _per_sample_patches(xpad[:, 1, :], lp)

    kernel = functools.partial(_fused_kernel, bn=bn, lp=lp)
    out = pl.pallas_call(
        kernel,
        out_shape=jax.ShapeDtypeStruct((n, 1, 1), jnp.float32),
        grid=(n // bn,),
        in_specs=[
            pl.BlockSpec((bn, 7, 3 * lp), lambda b: (b, 0, 0)),   # pa
            pl.BlockSpec((bn, 7, 3 * lp), lambda b: (b, 0, 0)),   # pb
            pl.BlockSpec((_C1, 7), lambda b: (0, 0)),             # waT
            pl.BlockSpec((_C1, 1), lambda b: (0, 0)),             # shA
            pl.BlockSpec((_C1, 7), lambda b: (0, 0)),             # wbT
            pl.BlockSpec((_C1, 1), lambda b: (0, 0)),             # shB
            pl.BlockSpec((7 * wp, wo * _C1), lambda b: (0, 0)),   # w2m
            pl.BlockSpec((1, wo * _C1), lambda b: (0, 0)),        # sh1
            pl.BlockSpec((_C1 * _NBINS, 1024), lambda b: (0, 0)),  # w1
            pl.BlockSpec((1, 1024), lambda b: (0, 0)),            # b1
            pl.BlockSpec((1, 1024), lambda b: (0, 0)),            # w2
            pl.BlockSpec((1, 1), lambda b: (0, 0)),               # b2
        ],
        out_specs=pl.BlockSpec((bn, 1, 1), lambda b: (b, 0, 0)),
        scratch_shapes=[
            pltpu.VMEM((2 * bn, _HP2, wp), jnp.float32),   # de-interleaved padded image
        ],
        compiler_params=pltpu.CompilerParams(
            dimension_semantics=("parallel",),
            vmem_limit_bytes=32 * 1024 * 1024),
    )(pa, pb, prep["waT"], prep["shA"], prep["wbT"], prep["shB"],
      prep["w2m"], prep["sh1"], prep["w1"], prep["b1"], prep["w2"], prep["b2"])
    return out[:, 0, 0]


# --------------------------------------------------------------------------
# Parameters (deterministic, matching the torch module __init__ shapes)
# --------------------------------------------------------------------------
def init_params(key):
    ks = jax.random.split(key, 5)
    p = {}
    p["convA_w"] = jax.random.normal(ks[0], (32, 1, 7), jnp.float32) * math.sqrt(2.0 / (32 * 7))
    p["convA_b"] = jnp.zeros((32,), jnp.float32)
    p["convB_w"] = jax.random.normal(ks[1], (32, 1, 7), jnp.float32) * math.sqrt(2.0 / (32 * 7))
    p["convB_b"] = jnp.zeros((32,), jnp.float32)
    p["conv1_w"] = jax.random.normal(ks[2], (32, 1, 7, 7), jnp.float32) * math.sqrt(2.0 / (32 * 49))
    p["conv1_b"] = jnp.zeros((32,), jnp.float32)
    for bn_name in ("bnA1", "bnB1", "bn1"):
        p[bn_name + "_gamma"] = jnp.ones((32,), jnp.float32)
        p[bn_name + "_beta"] = jnp.zeros((32,), jnp.float32)
        p[bn_name + "_mean"] = jnp.zeros((32,), jnp.float32)
        p[bn_name + "_var"] = jnp.ones((32,), jnp.float32)
    p["fc1_w"] = jax.random.normal(ks[3], (1024, 32 * 30), jnp.float32) * math.sqrt(2.0 / 1024)
    p["fc1_b"] = jnp.zeros((1024,), jnp.float32)
    p["fc2_w"] = jax.random.normal(ks[4], (1, 1024), jnp.float32) * math.sqrt(2.0 / 1)
    p["fc2_b"] = jnp.zeros((1,), jnp.float32)
    return p


# --------------------------------------------------------------------------
if __name__ == "__main__":
    key = jax.random.PRNGKey(0)
    pkey, xkey = jax.random.split(key)
    params = init_params(pkey)

    # batch=2, two spectra per sample, L=48 (divisible by 3 -> Lp=16, so the
    # concatenated conv2d input image is 32 x 32).
    x = jax.random.normal(xkey, (2, 2, 48), jnp.float32)

    prep = prepare_params(params, l=x.shape[-1])        # one-time weight prep
    fwd = jax.jit(deep_raman_forward)                   # bn=1 -> 2 parallel grid steps
    out = jax.block_until_ready(fwd(prep, x))
    assert out.shape == (2,), out.shape
    assert bool(jnp.all(jnp.isfinite(out)))
    print("KERNEL_OK")
</pallas_src>

<mosaic_0001>
module attributes {stable_mosaic.version = 11 : i64} {
  func.func @_fused_kernel(%arg0: i32, %arg1: memref<1x7x48xbf16, #tpu.memory_space<vmem>>, %arg2: memref<1x7x48xbf16, #tpu.memory_space<vmem>>, %arg3: memref<32x7xbf16, #tpu.memory_space<vmem>>, %arg4: memref<32x1xf32, #tpu.memory_space<vmem>>, %arg5: memref<32x7xbf16, #tpu.memory_space<vmem>>, %arg6: memref<32x1xf32, #tpu.memory_space<vmem>>, %arg7: memref<266x512xbf16, #tpu.memory_space<vmem>>, %arg8: memref<1x512xf32, #tpu.memory_space<vmem>>, %arg9: memref<960x1024xbf16, #tpu.memory_space<vmem>>, %arg10: memref<1x1024xf32, #tpu.memory_space<vmem>>, %arg11: memref<1x1024xf32, #tpu.memory_space<vmem>>, %arg12: memref<1x1xf32, #tpu.memory_space<vmem>>, %arg13: memref<1x1x1xf32, #tpu.memory_space<vmem>>, %arg14: memref<2x19x38xf32, #tpu.memory_space<vmem>>) attributes {dimension_semantics = [#tpu.dimension_semantics<parallel>], iteration_bounds = array<i64: 2>, scalar_prefetch = 0 : i64, scratch_operands = 1 : i64, tpu.core_type = #tpu.core_type<tc>, window_params = [{transform_indices = @transform_0, window_bounds = array<i64: 1, 7, 48>}, {transform_indices = @transform_1, window_bounds = array<i64: 1, 7, 48>}, {pipeline_mode = #tpu.pipeline_mode<synchronous>, transform_indices = @transform_2, window_bounds = array<i64: 32, 7>}, {pipeline_mode = #tpu.pipeline_mode<synchronous>, transform_indices = @transform_3, window_bounds = array<i64: 32, 1>}, {pipeline_mode = #tpu.pipeline_mode<synchronous>, transform_indices = @transform_4, window_bounds = array<i64: 32, 7>}, {pipeline_mode = #tpu.pipeline_mode<synchronous>, transform_indices = @transform_5, window_bounds = array<i64: 32, 1>}, {pipeline_mode = #tpu.pipeline_mode<synchronous>, transform_indices = @transform_6, window_bounds = array<i64: 266, 512>}, {pipeline_mode = #tpu.pipeline_mode<synchronous>, transform_indices = @transform_7, window_bounds = array<i64: 1, 512>}, {pipeline_mode = #tpu.pipeline_mode<synchronous>, transform_indices = @transform_8, window_bounds = array<i64: 960, 1024>}, {pipeline_mode = #tpu.pipeline_mode<synchronous>, transform_indices = @transform_9, window_bounds = array<i64: 1, 1024>}, {pipeline_mode = #tpu.pipeline_mode<synchronous>, transform_indices = @transform_10, window_bounds = array<i64: 1, 1024>}, {pipeline_mode = #tpu.pipeline_mode<synchronous>, transform_indices = @transform_11, window_bounds = array<i64: 1, 1>}, {transform_indices = @transform_12, window_bounds = array<i64: 1, 1, 1>}]} {
    %c0 = arith.constant 0 : index
    %c0_0 = arith.constant 0 : index
    %0 = vector.load %arg3[%c0, %c0_0] : memref<32x7xbf16, #tpu.memory_space<vmem>>, vector<32x7xbf16>
    %c0_1 = arith.constant 0 : index
    %c0_2 = arith.constant 0 : index
    %1 = vector.load %arg5[%c0_1, %c0_2] : memref<32x7xbf16, #tpu.memory_space<vmem>>, vector<32x7xbf16>
    %c0_3 = arith.constant 0 : index
    %c0_4 = arith.constant 0 : index
    %2 = vector.load %arg4[%c0_3, %c0_4] : memref<32x1xf32, #tpu.memory_space<vmem>>, vector<32x1xf32>
    %c0_5 = arith.constant 0 : index
    %c0_6 = arith.constant 0 : index
    %3 = vector.load %arg6[%c0_5, %c0_6] : memref<32x1xf32, #tpu.memory_space<vmem>>, vector<32x1xf32>
    %cst = arith.constant 0.000000e+00 : f32
    %4 = vector.broadcast %cst : f32 to vector<2x19x38xf32>
    %c0_7 = arith.constant 0 : index
    %c0_8 = arith.constant 0 : index
    %c0_9 = arith.constant 0 : index
    %5 = vector.load %arg14[%c0_7, %c0_8, %c0_9] : memref<2x19x38xf32, #tpu.memory_space<vmem>>, vector<2x19x38xf32>
    tpu.vector_store %arg14[%c0_7, %c0_8, %c0_9], %4 {strides = array<i32>} : memref<2x19x38xf32, #tpu.memory_space<vmem>>, vector<2x19x38xf32>,
    %c0_10 = arith.constant 0 : index
    %c0_11 = arith.constant 0 : index
    %c0_12 = arith.constant 0 : index
    %6 = vector.load %arg1[%c0_10, %c0_11, %c0_12] : memref<1x7x48xbf16, #tpu.memory_space<vmem>>, vector<1x7x48xbf16>
    %7 = vector.shape_cast %6 : vector<1x7x48xbf16> to vector<7x48xbf16>
    %cst_13 = arith.constant dense<0.000000e+00> : vector<32x48xf32>
    %8 = tpu.matmul %0, %7, %cst_13 {dimension_numbers = #tpu.dot_dimension_numbers<[1], [0], [0], [1], [0, 0, 1, 1], [], []>} : vector<32x7xbf16>, vector<7x48xbf16>, vector<32x48xf32> -> vector<32x48xf32>
    %9 = vector.broadcast %2 : vector<32x1xf32> to vector<32x48xf32>
    %10 = arith.addf %8, %9 : vector<32x48xf32>
    %cst_14 = arith.constant 0.000000e+00 : f32
    %11 = vector.broadcast %cst_14 : f32 to vector<32x48xf32>
    %12 = arith.maximumf %10, %11 : vector<32x48xf32>
    %13 = vector.extract_strided_slice %12 {offsets = [0, 0], sizes = [32, 16], strides = [1, 1]} : vector<32x48xf32> to vector<32x16xf32>
    %14 = vector.extract_strided_slice %12 {offsets = [0, 16], sizes = [32, 16], strides = [1, 1]} : vector<32x48xf32> to vector<32x16xf32>
    %15 = arith.maximumf %13, %14 : vector<32x16xf32>
    %16 = vector.extract_strided_slice %12 {offsets = [0, 32], sizes = [32, 16], strides = [1, 1]} : vector<32x48xf32> to vector<32x16xf32>
    %17 = arith.maximumf %15, %16 : vector<32x16xf32>
    %c0_15 = arith.constant 0 : index
    %c0_16 = arith.constant 0 : index
    %c0_17 = arith.constant 0 : index
    %18 = vector.load %arg2[%c0_15, %c0_16, %c0_17] : memref<1x7x48xbf16, #tpu.memory_space<vmem>>, vector<1x7x48xbf16>
    %19 = vector.shape_cast %18 : vector<1x7x48xbf16> to vector<7x48xbf16>
    %cst_18 = arith.constant dense<0.000000e+00> : vector<32x48xf32>
    %20 = tpu.matmul %1, %19, %cst_18 {dimension_numbers = #tpu.dot_dimension_numbers<[1], [0], [0], [1], [0, 0, 1, 1], [], []>} : vector<32x7xbf16>, vector<7x48xbf16>, vector<32x48xf32> -> vector<32x48xf32>
    %21 = vector.broadcast %3 : vector<32x1xf32> to vector<32x48xf32>
    %22 = arith.addf %20, %21 : vector<32x48xf32>
    %cst_19 = arith.constant 0.000000e+00 : f32
    %23 = vector.broadcast %cst_19 : f32 to vector<32x48xf32>
    %24 = arith.maximumf %22, %23 : vector<32x48xf32>
    %25 = vector.extract_strided_slice %24 {offsets = [0, 0], sizes = [32, 16], strides = [1, 1]} : vector<32x48xf32> to vector<32x16xf32>
    %26 = vector.extract_strided_slice %24 {offsets = [0, 16], sizes = [32, 16], strides = [1, 1]} : vector<32x48xf32> to vector<32x16xf32>
    %27 = arith.maximumf %25, %26 : vector<32x16xf32>
    %28 = vector.extract_strided_slice %24 {offsets = [0, 32], sizes = [32, 16], strides = [1, 1]} : vector<32x48xf32> to vector<32x16xf32>
    %29 = arith.maximumf %27, %28 : vector<32x16xf32>
    %30 = vector.extract_strided_slice %17 {offsets = [0, 0], sizes = [16, 16], strides = [1, 1]} : vector<32x16xf32> to vector<16x16xf32>
    %31 = vector.extract_strided_slice %29 {offsets = [0, 0], sizes = [16, 16], strides = [1, 1]} : vector<32x16xf32> to vector<16x16xf32>
    %32 = tpu.concatenate %30, %31 in 1 : vector<16x16xf32>, vector<16x16xf32> -> vector<16x32xf32>
    %c0_20 = arith.constant 0 : index
    %c2 = arith.constant 2 : index
    %c3 = arith.constant 3 : index
    %33 = vector.load %arg14[%c0_20, %c2, %c3] : memref<2x19x38xf32, #tpu.memory_space<vmem>>, vector<1x16x32xf32>
    %34 = vector.shape_cast %33 : vector<1x16x32xf32> to vector<16x32xf32>
    %35 = vector.shape_cast %32 : vector<16x32xf32> to vector<1x16x32xf32>
    tpu.vector_store %arg14[%c0_20, %c2, %c3], %35 {strides = array<i32>} : memref<2x19x38xf32, #tpu.memory_space<vmem>>, vector<1x16x32xf32>,
    %36 = vector.extract_strided_slice %17 {offsets = [16, 0], sizes = [16, 16], strides = [1, 1]} : vector<32x16xf32> to vector<16x16xf32>
    %37 = vector.extract_strided_slice %29 {offsets = [16, 0], sizes = [16, 16], strides = [1, 1]} : vector<32x16xf32> to vector<16x16xf32>
    %38 = tpu.concatenate %36, %37 in 1 : vector<16x16xf32>, vector<16x16xf32> -> vector<16x32xf32>
    %c1 = arith.constant 1 : index
    %c1_21 = arith.constant 1 : index
    %c3_22 = arith.constant 3 : index
    %39 = vector.load %arg14[%c1, %c1_21, %c3_22] : memref<2x19x38xf32, #tpu.memory_space<vmem>>, vector<1x16x32xf32>
    %40 = vector.shape_cast %39 : vector<1x16x32xf32> to vector<16x32xf32>
    %41 = vector.shape_cast %38 : vector<16x32xf32> to vector<1x16x32xf32>
    tpu.vector_store %arg14[%c1, %c1_21, %c3_22], %41 {strides = array<i32>} : memref<2x19x38xf32, #tpu.memory_space<vmem>>, vector<1x16x32xf32>,
    %c0_23 = arith.constant 0 : index
    %c0_24 = arith.constant 0 : index
    %c0_25 = arith.constant 0 : index
    %42 = vector.load %arg14[%c0_23, %c0_24, %c0_25] : memref<2x19x38xf32, #tpu.memory_space<vmem>>, vector<2x19x38xf32>
    %43 = vector.extract_strided_slice %42 {offsets = [0, 0, 0], sizes = [1, 16, 38], strides = [1, 1, 1]} : vector<2x19x38xf32> to vector<1x16x38xf32>
    %44 = vector.shape_cast %43 : vector<1x16x38xf32> to vector<16x38xf32>
    %45 = vector.extract_strided_slice %42 {offsets = [1, 0, 0], sizes = [1, 16, 38], strides = [1, 1, 1]} : vector<2x19x38xf32> to vector<1x16x38xf32>
    %46 = vector.shape_cast %45 : vector<1x16x38xf32> to vector<16x38xf32>
    %47 = vector.extract_strided_slice %42 {offsets = [0, 1, 0], sizes = [1, 16, 38], strides = [1, 1, 1]} : vector<2x19x38xf32> to vector<1x16x38xf32>
    %48 = vector.shape_cast %47 : vector<1x16x38xf32> to vector<16x38xf32>
    %49 = vector.extract_strided_slice %42 {offsets = [1, 1, 0], sizes = [1, 16, 38], strides = [1, 1, 1]} : vector<2x19x38xf32> to vector<1x16x38xf32>
    %50 = vector.shape_cast %49 : vector<1x16x38xf32> to vector<16x38xf32>
    %51 = vector.extract_strided_slice %42 {offsets = [0, 2, 0], sizes = [1, 16, 38], strides = [1, 1, 1]} : vector<2x19x38xf32> to vector<1x16x38xf32>
    %52 = vector.shape_cast %51 : vector<1x16x38xf32> to vector<16x38xf32>
    %53 = vector.extract_strided_slice %42 {offsets = [1, 2, 0], sizes = [1, 16, 38], strides = [1, 1, 1]} : vector<2x19x38xf32> to vector<1x16x38xf32>
    %54 = vector.shape_cast %53 : vector<1x16x38xf32> to vector<16x38xf32>
    %55 = vector.extract_strided_slice %42 {offsets = [0, 3, 0], sizes = [1, 16, 38], strides = [1, 1, 1]} : vector<2x19x38xf32> to vector<1x16x38xf32>
    %56 = vector.shape_cast %55 : vector<1x16x38xf32> to vector<16x38xf32>
    %57 = tpu.concatenate %44, %46, %48, %50, %52, %54, %56 in 1 : vector<16x38xf32>, vector<16x38xf32>, vector<16x38xf32>, vector<16x38xf32>, vector<16x38xf32>, vector<16x38xf32>, vector<16x38xf32> -> vector<16x266xf32>
    %58 = arith.truncf %57 : vector<16x266xf32> to vector<16x266xbf16>
    %c0_26 = arith.constant 0 : index
    %c0_27 = arith.constant 0 : index
    %59 = vector.load %arg7[%c0_26, %c0_27] : memref<266x512xbf16, #tpu.memory_space<vmem>>, vector<266x512xbf16>
    %cst_28 = arith.constant dense<0.000000e+00> : vector<16x512xf32>
    %60 = tpu.matmul %58, %59, %cst_28 {dimension_numbers = #tpu.dot_dimension_numbers<[1], [0], [0], [1], [0, 0, 1, 1], [], []>} : vector<16x266xbf16>, vector<266x512xbf16>, vector<16x512xf32> -> vector<16x512xf32>
    %c0_29 = arith.constant 0 : index
    %c0_30 = arith.constant 0 : index
    %61 = vector.load %arg8[%c0_29, %c0_30] : memref<1x512xf32, #tpu.memory_space<vmem>>, vector<1x512xf32>
    %62 = vector.broadcast %61 : vector<1x512xf32> to vector<16x512xf32>
    %63 = arith.addf %60, %62 : vector<16x512xf32>
    %cst_31 = arith.constant 0.000000e+00 : f32
    %64 = vector.broadcast %cst_31 : f32 to vector<16x512xf32>
    %65 = arith.maximumf %63, %64 : vector<16x512xf32>
    %66 = vector.extract_strided_slice %65 {offsets = [0, 0], sizes = [16, 256], strides = [1, 1]} : vector<16x512xf32> to vector<16x256xf32>
    %67 = vector.extract_strided_slice %65 {offsets = [0, 256], sizes = [16, 256], strides = [1, 1]} : vector<16x512xf32> to vector<16x256xf32>
    %68 = arith.maximumf %66, %67 : vector<16x256xf32>
    %69 = vector.extract_strided_slice %68 {offsets = [0, 0], sizes = [16, 128], strides = [1, 1]} : vector<16x256xf32> to vector<16x128xf32>
    %70 = vector.extract_strided_slice %68 {offsets = [0, 128], sizes = [16, 128], strides = [1, 1]} : vector<16x256xf32> to vector<16x128xf32>
    %71 = arith.maximumf %69, %70 : vector<16x128xf32>
    %72 = vector.extract_strided_slice %71 {offsets = [0, 0], sizes = [16, 64], strides = [1, 1]} : vector<16x128xf32> to vector<16x64xf32>
    %73 = vector.extract_strided_slice %71 {offsets = [0, 64], sizes = [16, 64], strides = [1, 1]} : vector<16x128xf32> to vector<16x64xf32>
    %74 = arith.maximumf %72, %73 : vector<16x64xf32>
    %75 = vector.extract_strided_slice %74 {offsets = [0, 0], sizes = [16, 32], strides = [1, 1]} : vector<16x64xf32> to vector<16x32xf32>
    %76 = vector.extract_strided_slice %74 {offsets = [0, 32], sizes = [16, 32], strides = [1, 1]} : vector<16x64xf32> to vector<16x32xf32>
    %77 = arith.maximumf %75, %76 : vector<16x32xf32>
    %78 = vector.shape_cast %77 : vector<16x32xf32> to vector<1x16x32xf32>
    %cst_32 = arith.constant dense<0xFF800000> : vector<1x32xf32>
    %79 = vector.multi_reduction <maximumf>, %78, %cst_32 [1] : vector<1x16x32xf32> to vector<1x32xf32>
    %80 = vector.extract_strided_slice %65 {offsets = [0, 0], sizes = [16, 256], strides = [1, 1]} : vector<16x512xf32> to vector<16x256xf32>
    %81 = vector.extract_strided_slice %80 {offsets = [0, 0], sizes = [16, 128], strides = [1, 1]} : vector<16x256xf32> to vector<16x128xf32>
    %82 = vector.extract_strided_slice %80 {offsets = [0, 128], sizes = [16, 128], strides = [1, 1]} : vector<16x256xf32> to vector<16x128xf32>
    %83 = arith.maximumf %81, %82 : vector<16x128xf32>
    %84 = vector.extract_strided_slice %83 {offsets = [0, 0], sizes = [16, 64], strides = [1, 1]} : vector<16x128xf32> to vector<16x64xf32>
    %85 = vector.extract_strided_slice %83 {offsets = [0, 64], sizes = [16, 64], strides = [1, 1]} : vector<16x128xf32> to vector<16x64xf32>
    %86 = arith.maximumf %84, %85 : vector<16x64xf32>
    %87 = vector.extract_strided_slice %86 {offsets = [0, 0], sizes = [16, 32], strides = [1, 1]} : vector<16x64xf32> to vector<16x32xf32>
    %88 = vector.extract_strided_slice %86 {offsets = [0, 32], sizes = [16, 32], strides = [1, 1]} : vector<16x64xf32> to vector<16x32xf32>
    %89 = arith.maximumf %87, %88 : vector<16x32xf32>
    %90 = vector.shape_cast %89 : vector<16x32xf32> to vector<1x16x32xf32>
    %91 = vector.extract_strided_slice %65 {offsets = [0, 256], sizes = [16, 256], strides = [1, 1]} : vector<16x512xf32> to vector<16x256xf32>
    %92 = vector.extract_strided_slice %91 {offsets = [0, 0], sizes = [16, 128], strides = [1, 1]} : vector<16x256xf32> to vector<16x128xf32>
    %93 = vector.extract_strided_slice %91 {offsets = [0, 128], sizes = [16, 128], strides = [1, 1]} : vector<16x256xf32> to vector<16x128xf32>
    %94 = arith.maximumf %92, %93 : vector<16x128xf32>
    %95 = vector.extract_strided_slice %94 {offsets = [0, 0], sizes = [16, 64], strides = [1, 1]} : vector<16x128xf32> to vector<16x64xf32>
    %96 = vector.extract_strided_slice %94 {offsets = [0, 64], sizes = [16, 64], strides = [1, 1]} : vector<16x128xf32> to vector<16x64xf32>
    %97 = arith.maximumf %95, %96 : vector<16x64xf32>
    %98 = vector.extract_strided_slice %97 {offsets = [0, 0], sizes = [16, 32], strides = [1, 1]} : vector<16x64xf32> to vector<16x32xf32>
    %99 = vector.extract_strided_slice %97 {offsets = [0, 32], sizes = [16, 32], strides = [1, 1]} : vector<16x64xf32> to vector<16x32xf32>
    %100 = arith.maximumf %98, %99 : vector<16x32xf32>
    %101 = vector.shape_cast %100 : vector<16x32xf32> to vector<1x16x32xf32>
    %102 = vector.extract_strided_slice %90 {offsets = [0, 0, 0], sizes = [1, 8, 32], strides = [1, 1, 1]} : vector<1x16x32xf32> to vector<1x8x32xf32>
    %cst_33 = arith.constant dense<0xFF800000> : vector<1x32xf32>
    %103 = vector.multi_reduction <maximumf>, %102, %cst_33 [1] : vector<1x8x32xf32> to vector<1x32xf32>
    %104 = vector.extract_strided_slice %101 {offsets = [0, 0, 0], sizes = [1, 8, 32], strides = [1, 1, 1]} : vector<1x16x32xf32> to vector<1x8x32xf32>
    %cst_34 = arith.constant dense<0xFF800000> : vector<1x32xf32>
    %105 = vector.multi_reduction <maximumf>, %104, %cst_34 [1] : vector<1x8x32xf32> to vector<1x32xf32>
    %106 = vector.extract_strided_slice %90 {offsets = [0, 8, 0], sizes = [1, 8, 32], strides = [1, 1, 1]} : vector<1x16x32xf32> to vector<1x8x32xf32>
    %cst_35 = arith.constant dense<0xFF800000> : vector<1x32xf32>
    %107 = vector.multi_reduction <maximumf>, %106, %cst_35 [1] : vector<1x8x32xf32> to vector<1x32xf32>
    %108 = vector.extract_strided_slice %101 {offsets = [0, 8, 0], sizes = [1, 8, 32], strides = [1, 1, 1]} : vector<1x16x32xf32> to vector<1x8x32xf32>
    %cst_36 = arith.constant dense<0xFF800000> : vector<1x32xf32>
    %109 = vector.multi_reduction <maximumf>, %108, %cst_36 [1] : vector<1x8x32xf32> to vector<1x32xf32>
    %110 = vector.extract_strided_slice %65 {offsets = [0, 0], sizes = [16, 192], strides = [1, 1]} : vector<16x512xf32> to vector<16x192xf32>
    %111 = vector.extract_strided_slice %110 {offsets = [0, 0], sizes = [16, 96], strides = [1, 1]} : vector<16x192xf32> to vector<16x96xf32>
    %112 = vector.extract_strided_slice %110 {offsets = [0, 96], sizes = [16, 96], strides = [1, 1]} : vector<16x192xf32> to vector<16x96xf32>
    %113 = arith.maximumf %111, %112 : vector<16x96xf32>
    %114 = vector.extract_strided_slice %113 {offsets = [0, 64], sizes = [16, 32], strides = [1, 1]} : vector<16x96xf32> to vector<16x32xf32>
    %115 = vector.extract_strided_slice %113 {offsets = [0, 0], sizes = [16, 32], strides = [1, 1]} : vector<16x96xf32> to vector<16x32xf32>
    %116 = vector.extract_strided_slice %113 {offsets = [0, 32], sizes = [16, 32], strides = [1, 1]} : vector<16x96xf32> to vector<16x32xf32>
    %117 = arith.maximumf %115, %116 : vector<16x32xf32>
    %118 = arith.maximumf %117, %114 : vector<16x32xf32>
    %119 = vector.shape_cast %118 : vector<16x32xf32> to vector<1x16x32xf32>
    %120 = vector.extract_strided_slice %65 {offsets = [0, 160], sizes = [16, 192], strides = [1, 1]} : vector<16x512xf32> to vector<16x192xf32>
    %121 = vector.extract_strided_slice %120 {offsets = [0, 0], sizes = [16, 96], strides = [1, 1]} : vector<16x192xf32> to vector<16x96xf32>
    %122 = vector.extract_strided_slice %120 {offsets = [0, 96], sizes = [16, 96], strides = [1, 1]} : vector<16x192xf32> to vector<16x96xf32>
    %123 = arith.maximumf %121, %122 : vector<16x96xf32>
    %124 = vector.extract_strided_slice %123 {offsets = [0, 64], sizes = [16, 32], strides = [1, 1]} : vector<16x96xf32> to vector<16x32xf32>
    %125 = vector.extract_strided_slice %123 {offsets = [0, 0], sizes = [16, 32], strides = [1, 1]} : vector<16x96xf32> to vector<16x32xf32>
    %126 = vector.extract_strided_slice %123 {offsets = [0, 32], sizes = [16, 32], strides = [1, 1]} : vector<16x96xf32> to vector<16x32xf32>
    %127 = arith.maximumf %125, %126 : vector<16x32xf32>
    %128 = arith.maximumf %127, %124 : vector<16x32xf32>
    %129 = vector.shape_cast %128 : vector<16x32xf32> to vector<1x16x32xf32>
    %130 = vector.extract_strided_slice %65 {offsets = [0, 320], sizes = [16, 192], strides = [1, 1]} : vector<16x512xf32> to vector<16x192xf32>
    %131 = vector.extract_strided_slice %130 {offsets = [0, 0], sizes = [16, 96], strides = [1, 1]} : vector<16x192xf32> to vector<16x96xf32>
    %132 = vector.extract_strided_slice %130 {offsets = [0, 96], sizes = [16, 96], strides = [1, 1]} : vector<16x192xf32> to vector<16x96xf32>
    %133 = arith.maximumf %131, %132 : vector<16x96xf32>
    %134 = vector.extract_strided_slice %133 {offsets = [0, 64], sizes = [16, 32], strides = [1, 1]} : vector<16x96xf32> to vector<16x32xf32>
    %135 = vector.extract_strided_slice %133 {offsets = [0, 0], sizes = [16, 32], strides = [1, 1]} : vector<16x96xf32> to vector<16x32xf32>
    %136 = vector.extract_strided_slice %133 {offsets = [0, 32], sizes = [16, 32], strides = [1, 1]} : vector<16x96xf32> to vector<16x32xf32>
    %137 = arith.maximumf %135, %136 : vector<16x32xf32>
    %138 = arith.maximumf %137, %134 : vector<16x32xf32>
    %139 = vector.shape_cast %138 : vector<16x32xf32> to vector<1x16x32xf32>
    %140 = vector.extract_strided_slice %119 {offsets = [0, 0, 0], sizes = [1, 6, 32], strides = [1, 1, 1]} : vector<1x16x32xf32> to vector<1x6x32xf32>
    %cst_37 = arith.constant dense<0xFF800000> : vector<1x32xf32>
    %141 = vector.multi_reduction <maximumf>, %140, %cst_37 [1] : vector<1x6x32xf32> to vector<1x32xf32>
    %142 = vector.extract_strided_slice %129 {offsets = [0, 0, 0], sizes = [1, 6, 32], strides = [1, 1, 1]} : vector<1x16x32xf32> to vector<1x6x32xf32>
    %cst_38 = arith.constant dense<0xFF800000> : vector<1x32xf32>
    %143 = vector.multi_reduction <maximumf>, %142, %cst_38 [1] : vector<1x6x32xf32> to vector<1x32xf32>
    %144 = vector.extract_strided_slice %139 {offsets = [0, 0, 0], sizes = [1, 6, 32], strides = [1, 1, 1]} : vector<1x16x32xf32> to vector<1x6x32xf32>
    %cst_39 = arith.constant dense<0xFF800000> : vector<1x32xf32>
    %145 = vector.multi_reduction <maximumf>, %144, %cst_39 [1] : vector<1x6x32xf32> to vector<1x32xf32>
    %146 = vector.extract_strided_slice %119 {offsets = [0, 5, 0], sizes = [1, 6, 32], strides = [1, 1, 1]} : vector<1x16x32xf32> to vector<1x6x32xf32>
    %cst_40 = arith.constant dense<0xFF800000> : vector<1x32xf32>
    %147 = vector.multi_reduction <maximumf>, %146, %cst_40 [1] : vector<1x6x32xf32> to vector<1x32xf32>
    %148 = vector.extract_strided_slice %129 {offsets = [0, 5, 0], sizes = [1, 6, 32], strides = [1, 1, 1]} : vector<1x16x32xf32> to vector<1x6x32xf32>
    %cst_41 = arith.constant dense<0xFF800000> : vector<1x32xf32>
    %149 = vector.multi_reduction <maximumf>, %148, %cst_41 [1] : vector<1x6x32xf32> to vector<1x32xf32>
    %150 = vector.extract_strided_slice %139 {offsets = [0, 5, 0], sizes = [1, 6, 32], strides = [1, 1, 1]} : vector<1x16x32xf32> to vector<1x6x32xf32>
    %cst_42 = arith.constant dense<0xFF800000> : vector<1x32xf32>
    %151 = vector.multi_reduction <maximumf>, %150, %cst_42 [1] : vector<1x6x32xf32> to vector<1x32xf32>
    %152 = vector.extract_strided_slice %119 {offsets = [0, 10, 0], sizes = [1, 6, 32], strides = [1, 1, 1]} : vector<1x16x32xf32> to vector<1x6x32xf32>
    %cst_43 = arith.constant dense<0xFF800000> : vector<1x32xf32>
    %153 = vector.multi_reduction <maximumf>, %152, %cst_43 [1] : vector<1x6x32xf32> to vector<1x32xf32>
    %154 = vector.extract_strided_slice %129 {offsets = [0, 10, 0], sizes = [1, 6, 32], strides = [1, 1, 1]} : vector<1x16x32xf32> to vector<1x6x32xf32>
    %cst_44 = arith.constant dense<0xFF800000> : vector<1x32xf32>
    %155 = vector.multi_reduction <maximumf>, %154, %cst_44 [1] : vector<1x6x32xf32> to vector<1x32xf32>
    %156 = vector.extract_strided_slice %139 {offsets = [0, 10, 0], sizes = [1, 6, 32], strides = [1, 1, 1]} : vector<1x16x32xf32> to vector<1x6x32xf32>
    %cst_45 = arith.constant dense<0xFF800000> : vector<1x32xf32>
    %157 = vector.multi_reduction <maximumf>, %156, %cst_45 [1] : vector<1x6x32xf32> to vector<1x32xf32>
    %158 = vector.extract_strided_slice %65 {offsets = [0, 0], sizes = [16, 128], strides = [1, 1]} : vector<16x512xf32> to vector<16x128xf32>
    %159 = vector.extract_strided_slice %158 {offsets = [0, 0], sizes = [16, 64], strides = [1, 1]} : vector<16x128xf32> to vector<16x64xf32>
    %160 = vector.extract_strided_slice %158 {offsets = [0, 64], sizes = [16, 64], strides = [1, 1]} : vector<16x128xf32> to vector<16x64xf32>
    %161 = arith.maximumf %159, %160 : vector<16x64xf32>
    %162 = vector.extract_strided_slice %161 {offsets = [0, 0], sizes = [16, 32], strides = [1, 1]} : vector<16x64xf32> to vector<16x32xf32>
    %163 = vector.extract_strided_slice %161 {offsets = [0, 32], sizes = [16, 32], strides = [1, 1]} : vector<16x64xf32> to vector<16x32xf32>
    %164 = arith.maximumf %162, %163 : vector<16x32xf32>
    %165 = vector.shape_cast %164 : vector<16x32xf32> to vector<1x16x32xf32>
    %166 = vector.extract_strided_slice %65 {offsets = [0, 128], sizes = [16, 128], strides = [1, 1]} : vector<16x512xf32> to vector<16x128xf32>
    %167 = vector.extract_strided_slice %166 {offsets = [0, 0], sizes = [16, 64], strides = [1, 1]} : vector<16x128xf32> to vector<16x64xf32>
    %168 = vector.extract_strided_slice %166 {offsets = [0, 64], sizes = [16, 64], strides = [1, 1]} : vector<16x128xf32> to vector<16x64xf32>
    %169 = arith.maximumf %167, %168 : vector<16x64xf32>
    %170 = vector.extract_strided_slice %169 {offsets = [0, 0], sizes = [16, 32], strides = [1, 1]} : vector<16x64xf32> to vector<16x32xf32>
    %171 = vector.extract_strided_slice %169 {offsets = [0, 32], sizes = [16, 32], strides = [1, 1]} : vector<16x64xf32> to vector<16x32xf32>
    %172 = arith.maximumf %170, %171 : vector<16x32xf32>
    %173 = vector.shape_cast %172 : vector<16x32xf32> to vector<1x16x32xf32>
    %174 = vector.extract_strided_slice %65 {offsets = [0, 256], sizes = [16, 128], strides = [1, 1]} : vector<16x512xf32> to vector<16x128xf32>
    %175 = vector.extract_strided_slice %174 {offsets = [0, 0], sizes = [16, 64], strides = [1, 1]} : vector<16x128xf32> to vector<16x64xf32>
    %176 = vector.extract_strided_slice %174 {offsets = [0, 64], sizes = [16, 64], strides = [1, 1]} : vector<16x128xf32> to vector<16x64xf32>
    %177 = arith.maximumf %175, %176 : vector<16x64xf32>
    %178 = vector.extract_strided_slice %177 {offsets = [0, 0], sizes = [16, 32], strides = [1, 1]} : vector<16x64xf32> to vector<16x32xf32>
    %179 = vector.extract_strided_slice %177 {offsets = [0, 32], sizes = [16, 32], strides = [1, 1]} : vector<16x64xf32> to vector<16x32xf32>
    %180 = arith.maximumf %178, %179 : vector<16x32xf32>
    %181 = vector.shape_cast %180 : vector<16x32xf32> to vector<1x16x32xf32>
    %182 = vector.extract_strided_slice %65 {offsets = [0, 384], sizes = [16, 128], strides = [1, 1]} : vector<16x512xf32> to vector<16x128xf32>
    %183 = vector.extract_strided_slice %182 {offsets = [0, 0], sizes = [16, 64], strides = [1, 1]} : vector<16x128xf32> to vector<16x64xf32>
    %184 = vector.extract_strided_slice %182 {offsets = [0, 64], sizes = [16, 64], strides = [1, 1]} : vector<16x128xf32> to vector<16x64xf32>
    %185 = arith.maximumf %183, %184 : vector<16x64xf32>
    %186 = vector.extract_strided_slice %185 {offsets = [0, 0], sizes = [16, 32], strides = [1, 1]} : vector<16x64xf32> to vector<16x32xf32>
    %187 = vector.extract_strided_slice %185 {offsets = [0, 32], sizes = [16, 32], strides = [1, 1]} : vector<16x64xf32> to vector<16x32xf32>
    %188 = arith.maximumf %186, %187 : vector<16x32xf32>
    %189 = vector.shape_cast %188 : vector<16x32xf32> to vector<1x16x32xf32>
    %190 = vector.extract_strided_slice %165 {offsets = [0, 0, 0], sizes = [1, 4, 32], strides = [1, 1, 1]} : vector<1x16x32xf32> to vector<1x4x32xf32>
    %cst_46 = arith.constant dense<0xFF800000> : vector<1x32xf32>
    %191 = vector.multi_reduction <maximumf>, %190, %cst_46 [1] : vector<1x4x32xf32> to vector<1x32xf32>
    %192 = vector.extract_strided_slice %173 {offsets = [0, 0, 0], sizes = [1, 4, 32], strides = [1, 1, 1]} : vector<1x16x32xf32> to vector<1x4x32xf32>
    %cst_47 = arith.constant dense<0xFF800000> : vector<1x32xf32>
    %193 = vector.multi_reduction <maximumf>, %192, %cst_47 [1] : vector<1x4x32xf32> to vector<1x32xf32>
    %194 = vector.extract_strided_slice %181 {offsets = [0, 0, 0], sizes = [1, 4, 32], strides = [1, 1, 1]} : vector<1x16x32xf32> to vector<1x4x32xf32>
    %cst_48 = arith.constant dense<0xFF800000> : vector<1x32xf32>
    %195 = vector.multi_reduction <maximumf>, %194, %cst_48 [1] : vector<1x4x32xf32> to vector<1x32xf32>
    %196 = vector.extract_strided_slice %189 {offsets = [0, 0, 0], sizes = [1, 4, 32], strides = [1, 1, 1]} : vector<1x16x32xf32> to vector<1x4x32xf32>
    %cst_49 = arith.constant dense<0xFF800000> : vector<1x32xf32>
    %197 = vector.multi_reduction <maximumf>, %196, %cst_49 [1] : vector<1x4x32xf32> to vector<1x32xf32>
    %198 = vector.extract_strided_slice %165 {offsets = [0, 4, 0], sizes = [1, 4, 32], strides = [1, 1, 1]} : vector<1x16x32xf32> to vector<1x4x32xf32>
    %cst_50 = arith.constant dense<0xFF800000> : vector<1x32xf32>
    %199 = vector.multi_reduction <maximumf>, %198, %cst_50 [1] : vector<1x4x32xf32> to vector<1x32xf32>
    %200 = vector.extract_strided_slice %173 {offsets = [0, 4, 0], sizes = [1, 4, 32], strides = [1, 1, 1]} : vector<1x16x32xf32> to vector<1x4x32xf32>
    %cst_51 = arith.constant dense<0xFF800000> : vector<1x32xf32>
    %201 = vector.multi_reduction <maximumf>, %200, %cst_51 [1] : vector<1x4x32xf32> to vector<1x32xf32>
    %202 = vector.extract_strided_slice %181 {offsets = [0, 4, 0], sizes = [1, 4, 32], strides = [1, 1, 1]} : vector<1x16x32xf32> to vector<1x4x32xf32>
    %cst_52 = arith.constant dense<0xFF800000> : vector<1x32xf32>
    %203 = vector.multi_reduction <maximumf>, %202, %cst_52 [1] : vector<1x4x32xf32> to vector<1x32xf32>
    %204 = vector.extract_strided_slice %189 {offsets = [0, 4, 0], sizes = [1, 4, 32], strides = [1, 1, 1]} : vector<1x16x32xf32> to vector<1x4x32xf32>
    %cst_53 = arith.constant dense<0xFF800000> : vector<1x32xf32>
    %205 = vector.multi_reduction <maximumf>, %204, %cst_53 [1] : vector<1x4x32xf32> to vector<1x32xf32>
    %206 = vector.extract_strided_slice %165 {offsets = [0, 8, 0], sizes = [1, 4, 32], strides = [1, 1, 1]} : vector<1x16x32xf32> to vector<1x4x32xf32>
    %cst_54 = arith.constant dense<0xFF800000> : vector<1x32xf32>
    %207 = vector.multi_reduction <maximumf>, %206, %cst_54 [1] : vector<1x4x32xf32> to vector<1x32xf32>
    %208 = vector.extract_strided_slice %173 {offsets = [0, 8, 0], sizes = [1, 4, 32], strides = [1, 1, 1]} : vector<1x16x32xf32> to vector<1x4x32xf32>
    %cst_55 = arith.constant dense<0xFF800000> : vector<1x32xf32>
    %209 = vector.multi_reduction <maximumf>, %208, %cst_55 [1] : vector<1x4x32xf32> to vector<1x32xf32>
    %210 = vector.extract_strided_slice %181 {offsets = [0, 8, 0], sizes = [1, 4, 32], strides = [1, 1, 1]} : vector<1x16x32xf32> to vector<1x4x32xf32>
    %cst_56 = arith.constant dense<0xFF800000> : vector<1x32xf32>
    %211 = vector.multi_reduction <maximumf>, %210, %cst_56 [1] : vector<1x4x32xf32> to vector<1x32xf32>
    %212 = vector.extract_strided_slice %189 {offsets = [0, 8, 0], sizes = [1, 4, 32], strides = [1, 1, 1]} : vector<1x16x32xf32> to vector<1x4x32xf32>
    %cst_57 = arith.constant dense<0xFF800000> : vector<1x32xf32>
    %213 = vector.multi_reduction <maximumf>, %212, %cst_57 [1] : vector<1x4x32xf32> to vector<1x32xf32>
    %214 = vector.extract_strided_slice %165 {offsets = [0, 12, 0], sizes = [1, 4, 32], strides = [1, 1, 1]} : vector<1x16x32xf32> to vector<1x4x32xf32>
    %cst_58 = arith.constant dense<0xFF800000> : vector<1x32xf32>
    %215 = vector.multi_reduction <maximumf>, %214, %cst_58 [1] : vector<1x4x32xf32> to vector<1x32xf32>
    %216 = vector.extract_strided_slice %173 {offsets = [0, 12, 0], sizes = [1, 4, 32], strides = [1, 1, 1]} : vector<1x16x32xf32> to vector<1x4x32xf32>
    %cst_59 = arith.constant dense<0xFF800000> : vector<1x32xf32>
    %217 = vector.multi_reduction <maximumf>, %216, %cst_59 [1] : vector<1x4x32xf32> to vector<1x32xf32>
    %218 = vector.extract_strided_slice %181 {offsets = [0, 12, 0], sizes = [1, 4, 32], strides = [1, 1, 1]} : vector<1x16x32xf32> to vector<1x4x32xf32>
    %cst_60 = arith.constant dense<0xFF800000> : vector<1x32xf32>
    %219 = vector.multi_reduction <maximumf>, %218, %cst_60 [1] : vector<1x4x32xf32> to vector<1x32xf32>
    %220 = vector.extract_strided_slice %189 {offsets = [0, 12, 0], sizes = [1, 4, 32], strides = [1, 1, 1]} : vector<1x16x32xf32> to vector<1x4x32xf32>
    %cst_61 = arith.constant dense<0xFF800000> : vector<1x32xf32>
    %221 = vector.multi_reduction <maximumf>, %220, %cst_61 [1] : vector<1x4x32xf32> to vector<1x32xf32>
    %222 = tpu.concatenate %79, %103, %105, %107, %109, %141, %143, %145, %147, %149, %151, %153, %155, %157, %191, %193 in 1 : vector<1x32xf32>, vector<1x32xf32>, vector<1x32xf32>, vector<1x32xf32>, vector<1x32xf32>, vector<1x32xf32>, vector<1x32xf32>, vector<1x32xf32>, vector<1x32xf32>, vector<1x32xf32>, vector<1x32xf32>, vector<1x32xf32>, vector<1x32xf32>, vector<1x32xf32>, vector<1x32xf32>, vector<1x32xf32> -> vector<1x512xf32>
    %223 = tpu.concatenate %195, %197, %199, %201, %203, %205, %207, %209, %211, %213, %215, %217, %219, %221 in 1 : vector<1x32xf32>, vector<1x32xf32>, vector<1x32xf32>, vector<1x32xf32>, vector<1x32xf32>, vector<1x32xf32>, vector<1x32xf32>, vector<1x32xf32>, vector<1x32xf32>, vector<1x32xf32>, vector<1x32xf32>, vector<1x32xf32>, vector<1x32xf32>, vector<1x32xf32> -> vector<1x448xf32>
    %224 = tpu.concatenate %222, %223 in 1 : vector<1x512xf32>, vector<1x448xf32> -> vector<1x960xf32>
    %225 = arith.truncf %224 : vector<1x960xf32> to vector<1x960xbf16>
    %c0_62 = arith.constant 0 : index
    %c0_63 = arith.constant 0 : index
    %226 = vector.load %arg9[%c0_62, %c0_63] : memref<960x1024xbf16, #tpu.memory_space<vmem>>, vector<960x1024xbf16>
    %cst_64 = arith.constant dense<0.000000e+00> : vector<1x1024xf32>
    %227 = tpu.matmul %225, %226, %cst_64 {dimension_numbers = #tpu.dot_dimension_numbers<[1], [0], [0], [1], [0, 0, 1, 1], [], []>} : vector<1x960xbf16>, vector<960x1024xbf16>, vector<1x1024xf32> -> vector<1x1024xf32>
    %c0_65 = arith.constant 0 : index
    %c0_66 = arith.constant 0 : index
    %228 = vector.load %arg10[%c0_65, %c0_66] : memref<1x1024xf32, #tpu.memory_space<vmem>>, vector<1x1024xf32>
    %229 = arith.addf %227, %228 : vector<1x1024xf32>
    %cst_67 = arith.constant 0.000000e+00 : f32
    %230 = vector.broadcast %cst_67 : f32 to vector<1x1024xf32>
    %231 = arith.maximumf %229, %230 : vector<1x1024xf32>
    %c0_68 = arith.constant 0 : index
    %c0_69 = arith.constant 0 : index
    %232 = vector.load %arg11[%c0_68, %c0_69] : memref<1x1024xf32, #tpu.memory_space<vmem>>, vector<1x1024xf32>
    %233 = arith.mulf %231, %232 : vector<1x1024xf32>
    %cst_70 = arith.constant dense<0.000000e+00> : vector<1xf32>
    %234 = vector.multi_reduction <add>, %233, %cst_70 [1] : vector<1x1024xf32> to vector<1xf32>
    %235 = vector.shape_cast %234 : vector<1xf32> to vector<1x1xf32>
    %c0_71 = arith.constant 0 : index
    %c0_72 = arith.constant 0 : index
    %236 = vector.load %arg12[%c0_71, %c0_72] : memref<1x1xf32, #tpu.memory_space<vmem>>, vector<1x1xf32>
    %237 = arith.addf %235, %236 : vector<1x1xf32>
    %238 = arith.negf %237 : vector<1x1xf32>
    %239 = math.exp %238 : vector<1x1xf32>
    %cst_73 = arith.constant 1.000000e+00 : f32
    %240 = vector.broadcast %cst_73 : f32 to vector<1x1xf32>
    %241 = arith.addf %240, %239 : vector<1x1xf32>
    %242 = arith.divf %240, %241 : vector<1x1xf32>
    %243 = vector.shape_cast %242 : vector<1x1xf32> to vector<1x1x1xf32>
    %c0_74 = arith.constant 0 : index
    %c0_75 = arith.constant 0 : index
    %c0_76 = arith.constant 0 : index
    %244 = vector.load %arg13[%c0_74, %c0_75, %c0_76] : memref<1x1x1xf32, #tpu.memory_space<vmem>>, vector<1x1x1xf32>
    tpu.vector_store %arg13[%c0_74, %c0_75, %c0_76], %243 {strides = array<i32>} : memref<1x1x1xf32, #tpu.memory_space<vmem>>, vector<1x1x1xf32>,
    return
  }
  func.func @transform_0(%arg0: i32) -> (i32, i32, i32) {
    %c0_i32 = arith.constant 0 : i32
    %c0_i32_0 = arith.constant 0 : i32
    %c0_i32_1 = arith.constant 0 : i32
    return %arg0, %c0_i32, %c0_i32_0 : i32, i32, i32
  }
  func.func @transform_1(%arg0: i32) -> (i32, i32, i32) {
    %c0_i32 = arith.constant 0 : i32
    %c0_i32_0 = arith.constant 0 : i32
    %c0_i32_1 = arith.constant 0 : i32
    return %arg0, %c0_i32, %c0_i32_0 : i32, i32, i32
  }
  func.func @transform_2(%arg0: i32) -> (i32, i32) {
    %c0_i32 = arith.constant 0 : i32
    %c0_i32_0 = arith.constant 0 : i32
    %c0_i32_1 = arith.constant 0 : i32
    return %c0_i32, %c0_i32_0 : i32, i32
  }
  func.func @transform_3(%arg0: i32) -> (i32, i32) {
    %c0_i32 = arith.constant 0 : i32
    %c0_i32_0 = arith.constant 0 : i32
    %c0_i32_1 = arith.constant 0 : i32
    return %c0_i32, %c0_i32_0 : i32, i32
  }
  func.func @transform_4(%arg0: i32) -> (i32, i32) {
    %c0_i32 = arith.constant 0 : i32
    %c0_i32_0 = arith.constant 0 : i32
    %c0_i32_1 = arith.constant 0 : i32
    return %c0_i32, %c0_i32_0 : i32, i32
  }
  func.func @transform_5(%arg0: i32) -> (i32, i32) {
    %c0_i32 = arith.constant 0 : i32
    %c0_i32_0 = arith.constant 0 : i32
    %c0_i32_1 = arith.constant 0 : i32
    return %c0_i32, %c0_i32_0 : i32, i32
  }
  func.func @transform_6(%arg0: i32) -> (i32, i32) {
    %c0_i32 = arith.constant 0 : i32
    %c0_i32_0 = arith.constant 0 : i32
    %c0_i32_1 = arith.constant 0 : i32
    return %c0_i32, %c0_i32_0 : i32, i32
  }
  func.func @transform_7(%arg0: i32) -> (i32, i32) {
    %c0_i32 = arith.constant 0 : i32
    %c0_i32_0 = arith.constant 0 : i32
    %c0_i32_1 = arith.constant 0 : i32
    return %c0_i32, %c0_i32_0 : i32, i32
  }
  func.func @transform_8(%arg0: i32) -> (i32, i32) {
    %c0_i32 = arith.constant 0 : i32
    %c0_i32_0 = arith.constant 0 : i32
    %c0_i32_1 = arith.constant 0 : i32
    return %c0_i32, %c0_i32_0 : i32, i32
  }
  func.func @transform_9(%arg0: i32) -> (i32, i32) {
    %c0_i32 = arith.constant 0 : i32
    %c0_i32_0 = arith.constant 0 : i32
    %c0_i32_1 = arith.constant 0 : i32
    return %c0_i32, %c0_i32_0 : i32, i32
  }
  func.func @transform_10(%arg0: i32) -> (i32, i32) {
    %c0_i32 = arith.constant 0 : i32
    %c0_i32_0 = arith.constant 0 : i32
    %c0_i32_1 = arith.constant 0 : i32
    return %c0_i32, %c0_i32_0 : i32, i32
  }
  func.func @transform_11(%arg0: i32) -> (i32, i32) {
    %c0_i32 = arith.constant 0 : i32
    %c0_i32_0 = arith.constant 0 : i32
    %c0_i32_1 = arith.constant 0 : i32
    return %c0_i32, %c0_i32_0 : i32, i32
  }
  func.func @transform_12(%arg0: i32) -> (i32, i32, i32) {
    %c0_i32 = arith.constant 0 : i32
    %c0_i32_0 = arith.constant 0 : i32
    %c0_i32_1 = arith.constant 0 : i32
    return %arg0, %c0_i32, %c0_i32_0 : i32, i32, i32
  }
}

</mosaic_0001>

<llo_original>
// kernel: deep_raman_forward.1
$region0: #{deep_raman_forward.1}
  #allocation0 [shape = 'u32[]', space=smem, size = 0x4, offset = 0x4, fixed_abs, tag = 'smem constant byte address 0x4 - core index']
  #allocation1 [shape = 'u32[72,128]{1,0:T(1,128)}', space=vmem, size = 0x9000, scoped, tag = 'internal scratch']
  #allocation2 [shape = 'f32[2,19,38]{2,1,0:T(8,128)}', space=vmem, size = 0x6000, scoped, tag = 'scratch operand']
  #allocation3 [shape = 'f32[1,1]{1,0:T(1,128)S(1)}', space=vmem, size = 0x200, scoped, tag = 'scoped memory for deep_raman_forward.1']
  %s0 = inlined_call_operand.vmem [shape: bf16[2,7,48], index: 0, kind: input, shape index: {}]
  %s1 = inlined_call_operand.vmem [shape: bf16[2,7,48], index: 1, kind: input, shape index: {}]
  %s2 = inlined_call_operand.vmem [shape: bf16[32,7], index: 2, kind: input, shape index: {}]
  %s3 = inlined_call_operand.vmem [shape: f32[32,1], index: 3, kind: input, shape index: {}]
  %s4 = inlined_call_operand.vmem [shape: bf16[32,7], index: 4, kind: input, shape index: {}]
  %s5 = inlined_call_operand.vmem [shape: f32[32,1], index: 5, kind: input, shape index: {}]
  %s6 = inlined_call_operand.hbm [shape: bf16[266,512], index: 6, kind: input, shape index: {}]
  %s7 = inlined_call_operand.hbm [shape: f32[1,512], index: 7, kind: input, shape index: {}]
  %s8 = inlined_call_operand.hbm [shape: bf16[960,1024], index: 8, kind: input, shape index: {}]
  %s9 = inlined_call_operand.hbm [shape: f32[1,1024], index: 9, kind: input, shape index: {}]
  %s10 = inlined_call_operand.hbm [shape: f32[1,1024], index: 10, kind: input, shape index: {}]
  %s11 = inlined_call_operand.<no memory space> [shape: f32[1,1], index: 11, kind: input, shape index: {}]
  %s12 = inlined_call_operand.vmem [shape: f32[2,1,1], index: 12, kind: output, shape index: {}]
  %s13 = sld [smem:[#allocation0]]
  $region101: #{deep_raman_forward.1} parent=0
    _
  %s15 = ssub.s32 1, %s13
  %s16 = scalar_select 0, %s15, %s13
  %v17 = vstv %s11
  %18 = vst [vmem:[#allocation3] sm:$0x1] %v17
  $region1: #{deep_raman_forward.1} parent=0
    #allocation4 [shape = 'u8[278528]{0}', space=vmem, size = 0x44000, scoped, tag = 'input window, operand 6, single buffered']
    #allocation5 [shape = 's32[2]{0}', space=sflag, size = 0x8, scoped, tag = 'scoped memory for deep_raman_forward.1']
    #allocation6 [shape = 'u8[2048]{0}', space=vmem, size = 0x800, scoped, tag = 'input window, operand 7, single buffered']
    #allocation7 [shape = 's32[1]{0}', space=sflag, size = 0x4, scoped, tag = 'scoped memory for deep_raman_forward.1']
    #allocation8 [shape = 'u8[1966080]{0}', space=vmem, size = 0x1e0000, scoped, tag = 'input window, operand 8, single buffered']
    #allocation9 [shape = 'u8[4096]{0}', space=vmem, size = 0x1000, scoped, tag = 'input window, operand 9, single buffered']
    #allocation10 [shape = 's32[1]{0}', space=sflag, size = 0x4, scoped, tag = 'scoped memory for deep_raman_forward.1']
    #allocation11 [shape = 'u8[4096]{0}', space=vmem, size = 0x1000, scoped, tag = 'input window, operand 10, single buffered']
    %19 = vsyncpa [#allocation5], 0
    %20 = vsyncpa [#allocation7], 0
    %21 = vsyncpa [#allocation10], 0
    loop: start=0, step=1, limit=4
    $region2: #{deep_raman_forward.1} parent=1 // loop_pre_header
      _
    $region3: #{deep_raman_forward.1} parent=1 // loop_header
      %s23 = sphi 0, %s27
      %p24 = scmp.ge.s32.totalorder %s23, 4
      %s33 = sphi 0, %s35
      %s36 = sphi 0, %s33
      %s37 = sphi 0, %s36
      %s53 = sphi 0, %s37
      %s59 = sphi 0, %s61
      %s62 = sphi 0, %s59
      %s63 = sphi 0, %s62
      %s79 = sphi 0, %s63
      %s83 = sphi 0, %s83
      %s85 = sphi 0, %s83
      %s86 = sphi 0, %s85
      %s100 = sphi 0, %s86
      %s104 = sphi 0, %s104
      %s106 = sphi 0, %s104
      %s107 = sphi 0, %s106
      %s121 = sphi 0, %s107
      %s125 = sphi 0, %s125
      %s127 = sphi 0, %s125
      %s128 = sphi 0, %s127
      %s142 = sphi 0, %s128
      %s146 = sphi 0, %s146
      %s148 = sphi 0, %s146
      %s149 = sphi 0, %s148
      %s163 = sphi 0, %s149
      %s167 = sphi 0, %s167
      %s169 = sphi 0, %s167
      %s170 = sphi 0, %s169
      %s184 = sphi 0, %s170
      %s188 = sphi 0, %s188
      %s190 = sphi 0, %s188
      %s191 = sphi 0, %s190
      %s205 = sphi 0, %s191
      %s209 = sphi 0, %s209
      %s211 = sphi 0, %s209
      %s212 = sphi 0, %s211
      %s226 = sphi 0, %s212
      %s230 = sphi 0, %s230
      %s232 = sphi 0, %s230
      %s233 = sphi 0, %s232
      %s247 = sphi 0, %s233
      %s251 = sphi 0, %s251
      %s253 = sphi 0, %s251
      %s254 = sphi 0, %s253
      %s268 = sphi 0, %s254
      %s272 = sphi 0, %s272
      %s274 = sphi 0, %s272
      %s275 = sphi 0, %s274
      %s289 = sphi 0, %s275
      %s295 = sphi 0, %s297
      %s298 = sphi 0, %s295
      %s299 = sphi 0, %s298
      %s315 = sphi 0, %s299
    $region4: #{deep_raman_forward.1} parent=1 // loop_header_branch
      %26 = sbr.rel (%p24) target = $region8
    $region5: #{deep_raman_forward.1} parent=1 // loop_body
      %s28 = ssub.s32 %s23, 1
      %s29 = ssub.s32 %s23, 2
      %s30 = sadd.s32 %s23, 1
      %s31 = ssub.s32 %s23, %s30
      %p32 = scmp.eq.s32.totalorder %s31, 0
      %s34 = sadd.s32 %s33, 1
      %s35 = scalar_select %p32, %s33, %s34
      %p38 = pneg %p32
      %p39 = scmp.eq.s32.totalorder %s23, 1
      %p40 = por %p38, %p39
      %p41 = scmp.ne.s32.totalorder %s33, %s36
      %p42 = scmp.eq.s32.totalorder %s23, 0
      %p43 = por %p41, %p42
      %p44 = scmp.ne.s32.totalorder %s33, %s36
      %p45 = scmp.eq.s32.totalorder %s28, 1
      %p46 = por %p44, %p45
      %p47 = scmp.ne.s32.totalorder %s36, %s37
      %p48 = scmp.eq.s32.totalorder %s28, 0
      %p49 = por %p47, %p48
      %p50 = scmp.ne.s32.totalorder %s36, %s37
      %p51 = scmp.eq.s32.totalorder %s29, 1
      %p52 = por %p50, %p51
      %p54 = scmp.ne.s32.totalorder %s37, %s53
      %p55 = scmp.eq.s32.totalorder %s29, 0
      %p56 = por %p54, %p55
      %s57 = ssub.s32 %s23, %s30
      %p58 = scmp.eq.s32.totalorder %s57, 0
      %s60 = sadd.s32 %s59, 1
      %s61 = scalar_select %p58, %s59, %s60
      %p64 = pneg %p58
      %p65 = scmp.eq.s32.totalorder %s23, 1
      %p66 = por %p64, %p65
      %p67 = scmp.ne.s32.totalorder %s59, %s62
      %p68 = scmp.eq.s32.totalorder %s23, 0
      %p69 = por %p67, %p68
      %p70 = scmp.ne.s32.totalorder %s59, %s62
      %p71 = scmp.eq.s32.totalorder %s28, 1
      %p72 = por %p70, %p71
      %p73 = scmp.ne.s32.totalorder %s62, %s63
      %p74 = scmp.eq.s32.totalorder %s28, 0
      %p75 = por %p73, %p74
      %p76 = scmp.ne.s32.totalorder %s62, %s63
      %p77 = scmp.eq.s32.totalorder %s29, 1
      %p78 = por %p76, %p77
      %p80 = scmp.ne.s32.totalorder %s63, %s79
      %p81 = scmp.eq.s32.totalorder %s29, 0
      %p82 = por %p80, %p81
      %s84 = sadd.s32 %s83, 1
      %p87 = scmp.eq.s32.totalorder %s23, 1
      %p88 = scmp.ne.s32.totalorder %s83, %s85
      %p89 = scmp.eq.s32.totalorder %s23, 0
      %p90 = por %p88, %p89
      %p91 = scmp.ne.s32.totalorder %s83, %s85
      %p92 = scmp.eq.s32.totalorder %s28, 1
      %p93 = por %p91, %p92
      %p94 = scmp.ne.s32.totalorder %s85, %s86
      %p95 = scmp.eq.s32.totalorder %s28, 0
      %p96 = por %p94, %p95
      %p97 = scmp.ne.s32.totalorder %s85, %s86
      %p98 = scmp.eq.s32.totalorder %s29, 1
      %p99 = por %p97, %p98
      %p101 = scmp.ne.s32.totalorder %s86, %s100
      %p102 = scmp.eq.s32.totalorder %s29, 0
      %p103 = por %p101, %p102
      %s105 = sadd.s32 %s104, 1
      %p108 = scmp.eq.s32.totalorder %s23, 1
      %p109 = scmp.ne.s32.totalorder %s104, %s106
      %p110 = scmp.eq.s32.totalorder %s23, 0
      %p111 = por %p109, %p110
      %p112 = scmp.ne.s32.totalorder %s104, %s106
      %p113 = scmp.eq.s32.totalorder %s28, 1
      %p114 = por %p112, %p113
      %p115 = scmp.ne.s32.totalorder %s106, %s107
      %p116 = scmp.eq.s32.totalorder %s28, 0
      %p117 = por %p115, %p116
      %p118 = scmp.ne.s32.totalorder %s106, %s107
      %p119 = scmp.eq.s32.totalorder %s29, 1
      %p120 = por %p118, %p119
      %p122 = scmp.ne.s32.totalorder %s107, %s121
      %p123 = scmp.eq.s32.totalorder %s29, 0
      %p124 = por %p122, %p123
      %s126 = sadd.s32 %s125, 1
      %p129 = scmp.eq.s32.totalorder %s23, 1
      %p130 = scmp.ne.s32.totalorder %s125, %s127
      %p131 = scmp.eq.s32.totalorder %s23, 0
      %p132 = por %p130, %p131
      %p133 = scmp.ne.s32.totalorder %s125, %s127
      %p134 = scmp.eq.s32.totalorder %s28, 1
      %p135 = por %p133, %p134
      %p136 = scmp.ne.s32.totalorder %s127, %s128
      %p137 = scmp.eq.s32.totalorder %s28, 0
      %p138 = por %p136, %p137
      %p139 = scmp.ne.s32.totalorder %s127, %s128
      %p140 = scmp.eq.s32.totalorder %s29, 1
      %p141 = por %p139, %p140
      %p143 = scmp.ne.s32.totalorder %s128, %s142
      %p144 = scmp.eq.s32.totalorder %s29, 0
      %p145 = por %p143, %p144
      %s147 = sadd.s32 %s146, 1
      %p150 = scmp.eq.s32.totalorder %s23, 1
      %p151 = scmp.ne.s32.totalorder %s146, %s148
      %p152 = scmp.eq.s32.totalorder %s23, 0
      %p153 = por %p151, %p152
      %p154 = scmp.ne.s32.totalorder %s146, %s148
      %p155 = scmp.eq.s32.totalorder %s28, 1
      %p156 = por %p154, %p155
      %p157 = scmp.ne.s32.totalorder %s148, %s149
      %p158 = scmp.eq.s32.totalorder %s28, 0
      %p159 = por %p157, %p158
      %p160 = scmp.ne.s32.totalorder %s148, %s149
      %p161 = scmp.eq.s32.totalorder %s29, 1
      %p162 = por %p160, %p161
      %p164 = scmp.ne.s32.totalorder %s149, %s163
      %p165 = scmp.eq.s32.totalorder %s29, 0
      %p166 = por %p164, %p165
      %s168 = sadd.s32 %s167, 1
      %p171 = scmp.eq.s32.totalorder %s23, 1
      %p172 = scmp.ne.s32.totalorder %s167, %s169
      %p173 = scmp.eq.s32.totalorder %s23, 0
      %p174 = por %p172, %p173
      %p175 = scmp.ne.s32.totalorder %s167, %s169
      %p176 = scmp.eq.s32.totalorder %s28, 1
      %p177 = por %p175, %p176
      %p178 = scmp.ne.s32.totalorder %s169, %s170
      %p179 = scmp.eq.s32.totalorder %s28, 0
      %p180 = por %p178, %p179
      %p181 = scmp.ne.s32.totalorder %s169, %s170
      %p182 = scmp.eq.s32.totalorder %s29, 1
      %p183 = por %p181, %p182
      %p185 = scmp.ne.s32.totalorder %s170, %s184
      %p186 = scmp.eq.s32.totalorder %s29, 0
      %p187 = por %p185, %p186
      %s189 = sadd.s32 %s188, 1
      %p192 = scmp.eq.s32.totalorder %s23, 1
      %p193 = scmp.ne.s32.totalorder %s188, %s190
      %p194 = scmp.eq.s32.totalorder %s23, 0
      %p195 = por %p193, %p194
      %p196 = scmp.ne.s32.totalorder %s188, %s190
      %p197 = scmp.eq.s32.totalorder %s28, 1
      %p198 = por %p196, %p197
      %p199 = scmp.ne.s32.totalorder %s190, %s191
      %p200 = scmp.eq.s32.totalorder %s28, 0
      %p201 = por %p199, %p200
      %p202 = scmp.ne.s32.totalorder %s190, %s191
      %p203 = scmp.eq.s32.totalorder %s29, 1
      %p204 = por %p202, %p203
      %p206 = scmp.ne.s32.totalorder %s191, %s205
      %p207 = scmp.eq.s32.totalorder %s29, 0
      %p208 = por %p206, %p207
      %s210 = sadd.s32 %s209, 1
      %p213 = scmp.eq.s32.totalorder %s23, 1
      %p214 = scmp.ne.s32.totalorder %s209, %s211
      %p215 = scmp.eq.s32.totalorder %s23, 0
      %p216 = por %p214, %p215
      %p217 = scmp.ne.s32.totalorder %s209, %s211
      %p218 = scmp.eq.s32.totalorder %s28, 1
      %p219 = por %p217, %p218
      %p220 = scmp.ne.s32.totalorder %s211, %s212
      %p221 = scmp.eq.s32.totalorder %s28, 0
      %p222 = por %p220, %p221
      %p223 = scmp.ne.s32.totalorder %s211, %s212
      %p224 = scmp.eq.s32.totalorder %s29, 1
      %p225 = por %p223, %p224
      %p227 = scmp.ne.s32.totalorder %s212, %s226
      %p228 = scmp.eq.s32.totalorder %s29, 0
      %p229 = por %p227, %p228
      %s231 = sadd.s32 %s230, 1
      %p234 = scmp.eq.s32.totalorder %s23, 1
      %p235 = scmp.ne.s32.totalorder %s230, %s232
      %p236 = scmp.eq.s32.totalorder %s23, 0
      %p237 = por %p235, %p236
      %p238 = scmp.ne.s32.totalorder %s230, %s232
      %p239 = scmp.eq.s32.totalorder %s28, 1
      %p240 = por %p238, %p239
      %p241 = scmp.ne.s32.totalorder %s232, %s233
      %p242 = scmp.eq.s32.totalorder %s28, 0
      %p243 = por %p241, %p242
      %p244 = scmp.ne.s32.totalorder %s232, %s233
      %p245 = scmp.eq.s32.totalorder %s29, 1
      %p246 = por %p244, %p245
      %p248 = scmp.ne.s32.totalorder %s233, %s247
      %p249 = scmp.eq.s32.totalorder %s29, 0
      %p250 = por %p248, %p249
      %s252 = sadd.s32 %s251, 1
      %p255 = scmp.eq.s32.totalorder %s23, 1
      %p256 = scmp.ne.s32.totalorder %s251, %s253
      %p257 = scmp.eq.s32.totalorder %s23, 0
      %p258 = por %p256, %p257
      %p259 = scmp.ne.s32.totalorder %s251, %s253
      %p260 = scmp.eq.s32.totalorder %s28, 1
      %p261 = por %p259, %p260
      %p262 = scmp.ne.s32.totalorder %s253, %s254
      %p263 = scmp.eq.s32.totalorder %s28, 0
      %p264 = por %p262, %p263
      %p265 = scmp.ne.s32.totalorder %s253, %s254
      %p266 = scmp.eq.s32.totalorder %s29, 1
      %p267 = por %p265, %p266
      %p269 = scmp.ne.s32.totalorder %s254, %s268
      %p270 = scmp.eq.s32.totalorder %s29, 0
      %p271 = por %p269, %p270
      %s273 = sadd.s32 %s272, 1
      %p276 = scmp.eq.s32.totalorder %s23, 1
      %p277 = scmp.ne.s32.totalorder %s272, %s274
      %p278 = scmp.eq.s32.totalorder %s23, 0
      %p279 = por %p277, %p278
      %p280 = scmp.ne.s32.totalorder %s272, %s274
      %p281 = scmp.eq.s32.totalorder %s28, 1
      %p282 = por %p280, %p281
      %p283 = scmp.ne.s32.totalorder %s274, %s275
      %p284 = scmp.eq.s32.totalorder %s28, 0
      %p285 = por %p283, %p284
      %p286 = scmp.ne.s32.totalorder %s274, %s275
      %p287 = scmp.eq.s32.totalorder %s29, 1
      %p288 = por %p286, %p287
      %p290 = scmp.ne.s32.totalorder %s275, %s289
      %p291 = scmp.eq.s32.totalorder %s29, 0
      %p292 = por %p290, %p291
      %s293 = ssub.s32 %s23, %s30
      %p294 = scmp.eq.s32.totalorder %s293, 0
      %s296 = sadd.s32 %s295, 1
      %s297 = scalar_select %p294, %s295, %s296
      %p300 = pneg %p294
      %p301 = scmp.eq.s32.totalorder %s23, 1
      %p302 = por %p300, %p301
      %p303 = scmp.ne.s32.totalorder %s295, %s298
      %p304 = scmp.eq.s32.totalorder %s23, 0
      %p305 = por %p303, %p304
      %p306 = scmp.ne.s32.totalorder %s295, %s298
      %p307 = scmp.eq.s32.totalorder %s28, 1
      %p308 = por %p306, %p307
      %p309 = scmp.ne.s32.totalorder %s298, %s299
      %p310 = scmp.eq.s32.totalorder %s28, 0
      %p311 = por %p309, %p310
      %p312 = scmp.ne.s32.totalorder %s298, %s299
      %p313 = scmp.eq.s32.totalorder %s29, 1
      %p314 = por %p312, %p313
      %p316 = scmp.ne.s32.totalorder %s299, %s315
      %p317 = scmp.eq.s32.totalorder %s29, 0
      %p318 = por %p316, %p317
      %p319 = scmp.le.s32.totalorder 1, %s23
      %p320 = scmp.lt.s32.totalorder %s23, 3
      %p321 = pnand %p319, %p320
      %p322 = pneg %p321
      // Predicated region
      $region9: #{deep_raman_forward.1} parent=5 // pred_check
        _
      $region10: #{deep_raman_forward.1} parent=5 // pred_check_branch
        %324 = sbr.rel (%p321) target = $region12
      $region11: #{deep_raman_forward.1} parent=5 // pred_region
        %s325 = ssub.s32 %s23, 1
        // Predicated region
        $region13: #{deep_raman_forward.1} parent=11 // pred_check
          %p326 = pneg %p96
        $region14: #{deep_raman_forward.1} parent=11 // pred_check_branch
          %328 = sbr.rel (%p326) target = $region16
        $region15: #{deep_raman_forward.1} parent=11 // pred_region
          _
        $region16: #{deep_raman_forward.1} parent=11 // pred_fallthru
          _
        // Predicated region
        $region17: #{deep_raman_forward.1} parent=11 // pred_check
          %p329 = pneg %p117
        $region18: #{deep_raman_forward.1} parent=11 // pred_check_branch
          %331 = sbr.rel (%p329) target = $region20
        $region19: #{deep_raman_forward.1} parent=11 // pred_region
          _
        $region20: #{deep_raman_forward.1} parent=11 // pred_fallthru
          _
        // Predicated region
        $region21: #{deep_raman_forward.1} parent=11 // pred_check
          %p332 = pneg %p138
        $region22: #{deep_raman_forward.1} parent=11 // pred_check_branch
          %334 = sbr.rel (%p332) target = $region24
        $region23: #{deep_raman_forward.1} parent=11 // pred_region
          _
        $region24: #{deep_raman_forward.1} parent=11 // pred_fallthru
          _
        // Predicated region
        $region25: #{deep_raman_forward.1} parent=11 // pred_check
          %p335 = pneg %p159
        $region26: #{deep_raman_forward.1} parent=11 // pred_check_branch
          %337 = sbr.rel (%p335) target = $region28
        $region27: #{deep_raman_forward.1} parent=11 // pred_region
          _
        $region28: #{deep_raman_forward.1} parent=11 // pred_fallthru
          _
        // Predicated region
        $region29: #{deep_raman_forward.1} parent=11 // pred_check
          %p338 = pneg %p180
        $region30: #{deep_raman_forward.1} parent=11 // pred_check_branch
          %340 = sbr.rel (%p338) target = $region32
        $region31: #{deep_raman_forward.1} parent=11 // pred_region
          %342 = vsyncadd [#allocation5], 0
          %s343 = sshll.u32 %s6, 4
          %s344 = int_to_ptr.hbm [resolvable:$true] %s343
          %s345 = sshll.u32 [#allocation4], 4
          %s346 = int_to_ptr.vmem [resolvable:$true] %s345
          %351 = dma.hbm_to_vmem [thread:$0]  %s344, 8704, %s346, [#allocation5], 256, 256, 16
        $region32: #{deep_raman_forward.1} parent=11 // pred_fallthru
          _
        // Predicated region
        $region33: #{deep_raman_forward.1} parent=11 // pred_check
          %p352 = pneg %p201
        $region34: #{deep_raman_forward.1} parent=11 // pred_check_branch
          %354 = sbr.rel (%p352) target = $region36
        $region35: #{deep_raman_forward.1} parent=11 // pred_region
          %356 = vsyncadd [#allocation7], 0
          %s358 = sshll.u32 %s7, 4
          %s359 = int_to_ptr.hbm [resolvable:$true] %s358
          %s360 = sshll.u32 [#allocation6], 4
          %s361 = int_to_ptr.vmem [resolvable:$true] %s360
          %363 = dma.hbm_to_vmem [thread:$0]  %s359, 64, %s361, [#allocation7]
        $region36: #{deep_raman_forward.1} parent=11 // pred_fallthru
          _
        // Predicated region
        $region37: #{deep_raman_forward.1} parent=11 // pred_check
          %p364 = pneg %p222
        $region38: #{deep_raman_forward.1} parent=11 // pred_check_branch
          %366 = sbr.rel (%p364) target = $region40
        $region39: #{deep_raman_forward.1} parent=11 // pred_region
          %368 = vsyncadd [#allocation7], 0
          %s369 = sshll.u32 %s8, 4
          %s370 = int_to_ptr.hbm [resolvable:$true] %s369
          %s371 = sshll.u32 [#allocation8], 4
          %s372 = int_to_ptr.vmem [resolvable:$true] %s371
          %377 = dma.hbm_to_vmem [thread:$0]  %s370, 61440, %s372, [#allocation7], 512, 512, 32
        $region40: #{deep_raman_forward.1} parent=11 // pred_fallthru
          _
        // Predicated region
        $region41: #{deep_raman_forward.1} parent=11 // pred_check
          %p378 = pneg %p243
        $region42: #{deep_raman_forward.1} parent=11 // pred_check_branch
          %380 = sbr.rel (%p378) target = $region44
        $region43: #{deep_raman_forward.1} parent=11 // pred_region
          %382 = vsyncadd [#allocation10], 0
          %s384 = sshll.u32 %s9, 4
          %s385 = int_to_ptr.hbm [resolvable:$true] %s384
          %s386 = sshll.u32 [#allocation9], 4
          %s387 = int_to_ptr.vmem [resolvable:$true] %s386
          %389 = dma.hbm_to_vmem [thread:$0]  %s385, 128, %s387, [#allocation10]
        $region44: #{deep_raman_forward.1} parent=11 // pred_fallthru
          _
        // Predicated region
        $region45: #{deep_raman_forward.1} parent=11 // pred_check
          %p390 = pneg %p264
        $region46: #{deep_raman_forward.1} parent=11 // pred_check_branch
          %392 = sbr.rel (%p390) target = $region48
        $region47: #{deep_raman_forward.1} parent=11 // pred_region
          %394 = vsyncadd [#allocation10], 0
          %s396 = sshll.u32 %s10, 4
          %s397 = int_to_ptr.hbm [resolvable:$true] %s396
          %s398 = sshll.u32 [#allocation11], 4
          %s399 = int_to_ptr.vmem [resolvable:$true] %s398
          %401 = dma.hbm_to_vmem [thread:$0]  %s397, 128, %s399, [#allocation10]
        $region48: #{deep_raman_forward.1} parent=11 // pred_fallthru
          _
        // Predicated region
        $region49: #{deep_raman_forward.1} parent=11 // pred_check
          %p402 = pneg %p285
        $region50: #{deep_raman_forward.1} parent=11 // pred_check_branch
          %404 = sbr.rel (%p402) target = $region52
        $region51: #{deep_raman_forward.1} parent=11 // pred_region
          _
        $region52: #{deep_raman_forward.1} parent=11 // pred_fallthru
          _
      $region12: #{deep_raman_forward.1} parent=5 // pred_fallthru
        _
      %p405 = scmp.lt.s32.totalorder %s23, 2
      // Predicated region
      $region53: #{deep_raman_forward.1} parent=5 // pred_check
        %p406 = pneg %p405
      $region54: #{deep_raman_forward.1} parent=5 // pred_check_branch
        %408 = sbr.rel (%p406) target = $region56
      $region55: #{deep_raman_forward.1} parent=5 // pred_region
        // Predicated region
        $region57: #{deep_raman_forward.1} parent=55 // pred_check
          %p409 = pneg %p43
        $region58: #{deep_raman_forward.1} parent=55 // pred_check_branch
          %411 = sbr.rel (%p409) target = $region60
        $region59: #{deep_raman_forward.1} parent=55 // pred_region
          %p412 = scmp.lt.s32.totalorder %s23, 1
          %s413 = scalar_select %p412, %s23, 1
          %s414 = smul.addr %s413, 4
          %s415 = scalar_lea.vmem %s0, %s414
        $region60: #{deep_raman_forward.1} parent=55 // pred_fallthru
          _
        // Predicated region
        $region61: #{deep_raman_forward.1} parent=55 // pred_check
          %p416 = pneg %p69
        $region62: #{deep_raman_forward.1} parent=55 // pred_check_branch
          %418 = sbr.rel (%p416) target = $region64
        $region63: #{deep_raman_forward.1} parent=55 // pred_region
          %p419 = scmp.lt.s32.totalorder %s23, 1
          %s420 = scalar_select %p419, %s23, 1
          %s421 = smul.addr %s420, 4
          %s422 = scalar_lea.vmem %s1, %s421
        $region64: #{deep_raman_forward.1} parent=55 // pred_fallthru
          _
      $region56: #{deep_raman_forward.1} parent=5 // pred_fallthru
        _
      %p423 = scmp.le.s32.totalorder 1, %s23
      %p424 = scmp.lt.s32.totalorder %s23, 3
      %p425 = pnand %p423, %p424
      %p426 = pneg %p425
      // Predicated region
      $region65: #{deep_raman_forward.1} parent=5 // pred_check
        _
      $region66: #{deep_raman_forward.1} parent=5 // pred_check_branch
        %428 = sbr.rel (%p425) target = $region68
      $region67: #{deep_raman_forward.1} parent=5 // pred_region
        %s429 = ssub.s32 %s23, 1
        // Predicated region
        $region69: #{deep_raman_forward.1} parent=67 // pred_check
          %p430 = pneg %p180
        $region70: #{deep_raman_forward.1} parent=67 // pred_check_branch
          %432 = sbr.rel (%p430) target = $region72
        $region71: #{deep_raman_forward.1} parent=67 // pred_region
          %434 = dma.done [#allocation5], 8704
        $region72: #{deep_raman_forward.1} parent=67 // pred_fallthru
          _
        // Predicated region
        $region73: #{deep_raman_forward.1} parent=67 // pred_check
          %p435 = pneg %p201
        $region74: #{deep_raman_forward.1} parent=67 // pred_check_branch
          %437 = sbr.rel (%p435) target = $region76
        $region75: #{deep_raman_forward.1} parent=67 // pred_region
          %439 = dma.done [#allocation7], 64
        $region76: #{deep_raman_forward.1} parent=67 // pred_fallthru
          _
        // Predicated region
        $region77: #{deep_raman_forward.1} parent=67 // pred_check
          %p440 = pneg %p222
        $region78: #{deep_raman_forward.1} parent=67 // pred_check_branch
          %442 = sbr.rel (%p440) target = $region80
        $region79: #{deep_raman_forward.1} parent=67 // pred_region
          %444 = dma.done [#allocation7], 61440
        $region80: #{deep_raman_forward.1} parent=67 // pred_fallthru
          _
        // Predicated region
        $region81: #{deep_raman_forward.1} parent=67 // pred_check
          %p445 = pneg %p243
        $region82: #{deep_raman_forward.1} parent=67 // pred_check_branch
          %447 = sbr.rel (%p445) target = $region84
        $region83: #{deep_raman_forward.1} parent=67 // pred_region
          %449 = dma.done [#allocation10], 128
        $region84: #{deep_raman_forward.1} parent=67 // pred_fallthru
          _
        // Predicated region
        $region85: #{deep_raman_forward.1} parent=67 // pred_check
          %p450 = pneg %p264
        $region86: #{deep_raman_forward.1} parent=67 // pred_check_branch
          %452 = sbr.rel (%p450) target = $region88
        $region87: #{deep_raman_forward.1} parent=67 // pred_region
          %454 = dma.done [#allocation10], 128
        $region88: #{deep_raman_forward.1} parent=67 // pred_fallthru
          _
        %p455 = scmp.lt.s32.totalorder %s28, 1
        %s456 = scalar_select %p455, %s28, 1
        %s457 = smul.addr %s456, 4
        %s458 = scalar_lea.vmem %s0, %s457
        %p459 = pneg %p49
        %p460 = pneg %p46
        %p461 = scmp.lt.s32.totalorder %s28, 1
        %s462 = scalar_select %p461, %s28, 1
        %s463 = smul.addr %s462, 4
        %s464 = scalar_lea.vmem %s1, %s463
        %p465 = pneg %p75
        %p466 = pneg %p72
        %p467 = pneg %p96
        %p468 = pneg %p93
        %p469 = pneg %p117
        %p470 = pneg %p114
        %p471 = pneg %p138
        %p472 = pneg %p135
        %p473 = pneg %p159
        %p474 = pneg %p156
        %p475 = pneg %p180
        %p476 = pneg %p177
        %p477 = pneg %p201
        %p478 = pneg %p198
        %p479 = pneg %p222
        %p480 = pneg %p219
        %p481 = pneg %p243
        %p482 = pneg %p240
        %p483 = pneg %p264
        %p484 = pneg %p261
        %p485 = pneg %p285
        %p486 = pneg %p282
        %p487 = pneg %p311
        %p488 = pneg %p308
        %p489 = scmp.lt.s32.totalorder %s28, 1
        %s490 = scalar_select %p489, %s28, 1
        %s491 = scalar_lea.vmem %s12, %s490
        %p492 = scmp.lt.s32.totalorder %s28, 1
        %s493 = scalar_select %p492, %s28, 1
        %s494 = smul.addr %s493, 4
        %s495 = scalar_lea.vmem %s0, %s494
        %p496 = scmp.lt.s32.totalorder %s28, 1
        %s497 = scalar_select %p496, %s28, 1
        %s498 = smul.addr %s497, 4
        %s499 = scalar_lea.vmem %s1, %s498
        %p500 = scmp.lt.s32.totalorder %s28, 1
        %s501 = scalar_select %p500, %s28, 1
        %s502 = scalar_lea.vmem %s12, %s501
        %v504 = vld [vmem:[%s2] sm:$0xf]
        %v505 = vld [vmem:[%s2 + $0x4] sm:$0xf]
        %v506 = vld [vmem:[%s2 + $0x8] sm:$0xf]
        %v507 = vld [vmem:[%s2 + $0xc] sm:$0xf]
        %v508 = vld [vmem:[%s4] sm:$0xf]
        %v509 = vld [vmem:[%s4 + $0x4] sm:$0xf]
        %v510 = vld [vmem:[%s4 + $0x8] sm:$0xf]
        %v511 = vld [vmem:[%s4 + $0xc] sm:$0xf]
        %v512 = vld [vmem:[%s3] sm:$0xff]
        %v513 = vld [vmem:[%s3 + $0x8] sm:$0xff]
        %v514 = vld [vmem:[%s3 + $0x10] sm:$0xff]
        %v515 = vld [vmem:[%s3 + $0x18] sm:$0xff]
        %v516 = vld [vmem:[%s5] sm:$0xff]
        %v517 = vld [vmem:[%s5 + $0x8] sm:$0xff]
        %v518 = vld [vmem:[%s5 + $0x10] sm:$0xff]
        %v519 = vld [vmem:[%s5 + $0x18] sm:$0xff]
        %vm520 = vcmask 310272
        %521 = vst.msk [vmem:[#allocation2] sm:$0xff] %vm520, 0.0
        %522 = vst.msk [vmem:[#allocation2 + $0x8] sm:$0xff] %vm520, 0.0
        %vm523 = vcmask 305152
        %524 = vst.msk [vmem:[#allocation2 + $0x10] sm:$0x7] %vm523, 0.0
        %525 = vst.msk [vmem:[#allocation2 + $0x18] sm:$0xff] %vm520, 0.0
        %526 = vst.msk [vmem:[#allocation2 + $0x20] sm:$0xff] %vm520, 0.0
        %527 = vst.msk [vmem:[#allocation2 + $0x28] sm:$0x7] %vm523, 0.0
        %v528 = vld [vmem:[%s495] sm:$0xf]
        %530 = vset.pattern.permute.xlu0 0
        %531 = vperm.xlu0 %530, %v512
        %v532 = vpop.permute.xlu0 %531
        %535 = vset.pattern.permute.xlu0 0
        %536 = vperm.xlu0 %535, %v513
        %v537 = vpop.permute.xlu0 %536
        %540 = vset.pattern.permute.xlu0 0
        %541 = vperm.xlu0 %540, %v514
        %v542 = vpop.permute.xlu0 %541
        %545 = vset.pattern.permute.xlu0 0
        %546 = vperm.xlu0 %545, %v515
        %v547 = vpop.permute.xlu0 %546
        %v553 = vunpack.c.l.b16 %v504
        %v554 = vunpack.c.l.b16 %v505
        %v555 = vunpack.c.l.b16 %v506
        %v556 = vunpack.c.l.b16 %v507
        %v557 = vpack.c.b16 %v554, %v553
        %v558 = vpack.c.b16 %v556, %v555
        %vm559 = vcmask 56320
        %v561 = vsel %vm559, %v557, 0
        %v564 = vsel %vm559, %v558, 0
        %vm566 = vcmask 1042432
        %vm567 = vcmask 1043456
        %v568 = vsel %vm566, 4294967295, 65535
        %v569 = vsel %vm567, %v568, 0
        %v571 = vand.u32 %v528, %v569
        %573 = vmatpush.bf16.msra.mxu0 0
        %574 = vmatpush.bf16.msra.mxu0 0
        %575 = vmatpush.bf16.msra.mxu0 0
        %576 = vmatpush.bf16.msra.mxu0 0
        %577 = vmatpush.bf16.msra.mxu0 0
        %578 = vmatpush.bf16.msra.mxu0 0
        %579 = vmatpush.bf16.msra.mxu0 0
        %580 = vmatpush.bf16.msra.mxu0 %v571
        %581 = vmatmul.bf16.gmra.mxu0 %v561
        %v582 = vpop.f32.mrf.mxu0
        %v583 = vadd.f32 %v532, %v582
        %v584 = vpop.f32.mrf.mxu0
        %v585 = vadd.f32 %v537, %v584
        %586 = vmatmul.bf16.gmra.mxu0 %v564
        %v587 = vpop.f32.mrf.mxu0
        %v588 = vadd.f32 %v542, %v587
        %v589 = vpop.f32.mrf.mxu0
        %v590 = vadd.f32 %v547, %v589
        %591 = vdwg.mxu0
        %v592 = vmax.f32 %v583, 0.0
        %v593 = vmax.f32 %v585, 0.0
        %v594 = vmax.f32 %v588, 0.0
        %v595 = vmax.f32 %v590, 0.0
        %600 = vrot.lane.b32.xlu0 %v592, 112
        %v601 = vpop.permute.xlu0 %600
        %602 = vrot.lane.b32.xlu0 %v593, 112
        %v603 = vpop.permute.xlu0 %602
        %604 = vrot.lane.b32.xlu0 %v594, 112
        %v605 = vpop.permute.xlu0 %604
        %606 = vrot.lane.b32.xlu0 %v595, 112
        %v607 = vpop.permute.xlu0 %606
        %v612 = vmax.f32 %v592, %v601
        %v613 = vmax.f32 %v593, %v603
        %v614 = vmax.f32 %v594, %v605
        %v615 = vmax.f32 %v595, %v607
        %616 = vrot.lane.b32.xlu0 %v592, 96
        %v617 = vpop.permute.xlu0 %616
        %618 = vrot.lane.b32.xlu0 %v593, 96
        %v619 = vpop.permute.xlu0 %618
        %620 = vrot.lane.b32.xlu0 %v594, 96
        %v621 = vpop.permute.xlu0 %620
        %622 = vrot.lane.b32.xlu0 %v595, 96
        %v623 = vpop.permute.xlu0 %622
        %v628 = vmax.f32 %v612, %v617
        %v629 = vmax.f32 %v613, %v619
        %v630 = vmax.f32 %v614, %v621
        %v631 = vmax.f32 %v615, %v623
        %v632 = vld [vmem:[%s499] sm:$0xf]
        %634 = vset.pattern.permute.xlu0 0
        %635 = vperm.xlu0 %634, %v516
        %v636 = vpop.permute.xlu0 %635
        %639 = vset.pattern.permute.xlu0 0
        %640 = vperm.xlu0 %639, %v517
        %v641 = vpop.permute.xlu0 %640
        %644 = vset.pattern.permute.xlu0 0
        %645 = vperm.xlu0 %644, %v518
        %v646 = vpop.permute.xlu0 %645
        %649 = vset.pattern.permute.xlu0 0
        %650 = vperm.xlu0 %649, %v519
        %v651 = vpop.permute.xlu0 %650
        %v657 = vunpack.c.l.b16 %v508
        %v658 = vunpack.c.l.b16 %v509
        %v659 = vunpack.c.l.b16 %v510
        %v660 = vunpack.c.l.b16 %v511
        %v661 = vpack.c.b16 %v658, %v657
        %v662 = vpack.c.b16 %v660, %v659
        %v664 = vsel %vm559, %v661, 0
        %v667 = vsel %vm559, %v662, 0
        %v670 = vand.u32 %v632, %v569
        %672 = vmatpush.bf16.msra.mxu0 0
        %673 = vmatpush.bf16.msra.mxu0 0
        %674 = vmatpush.bf16.msra.mxu0 0
        %675 = vmatpush.bf16.msra.mxu0 0
        %676 = vmatpush.bf16.msra.mxu0 0
        %677 = vmatpush.bf16.msra.mxu0 0
        %678 = vmatpush.bf16.msra.mxu0 0
        %679 = vmatpush.bf16.msra.mxu0 %v670
        %680 = vmatmul.bf16.gmra.mxu0 %v664
        %v681 = vpop.f32.mrf.mxu0
        %v682 = vadd.f32 %v636, %v681
        %v683 = vpop.f32.mrf.mxu0
        %v684 = vadd.f32 %v641, %v683
        %685 = vmatmul.bf16.gmra.mxu0 %v667
        %v686 = vpop.f32.mrf.mxu0
        %v687 = vadd.f32 %v646, %v686
        %v688 = vpop.f32.mrf.mxu0
        %v689 = vadd.f32 %v651, %v688
        %690 = vdwg.mxu0
        %v691 = vmax.f32 %v682, 0.0
        %v692 = vmax.f32 %v684, 0.0
        %v693 = vmax.f32 %v687, 0.0
        %v694 = vmax.f32 %v689, 0.0
        %699 = vrot.lane.b32.xlu0 %v691, 112
        %v700 = vpop.permute.xlu0 %699
        %701 = vrot.lane.b32.xlu0 %v692, 112
        %v702 = vpop.permute.xlu0 %701
        %703 = vrot.lane.b32.xlu0 %v693, 112
        %v704 = vpop.permute.xlu0 %703
        %705 = vrot.lane.b32.xlu0 %v694, 112
        %v706 = vpop.permute.xlu0 %705
        %v711 = vmax.f32 %v691, %v700
        %v712 = vmax.f32 %v692, %v702
        %v713 = vmax.f32 %v693, %v704
        %v714 = vmax.f32 %v694, %v706
        %715 = vrot.lane.b32.xlu0 %v691, 96
        %v716 = vpop.permute.xlu0 %715
        %717 = vrot.lane.b32.xlu0 %v692, 96
        %v718 = vpop.permute.xlu0 %717
        %719 = vrot.lane.b32.xlu0 %v693, 96
        %v720 = vpop.permute.xlu0 %719
        %721 = vrot.lane.b32.xlu0 %v694, 96
        %v722 = vpop.permute.xlu0 %721
        %v727 = vmax.f32 %v711, %v716
        %v728 = vmax.f32 %v712, %v718
        %v729 = vmax.f32 %v713, %v720
        %v730 = vmax.f32 %v714, %v722
        %733 = vrot.lane.b32.xlu0 %v727, 16
        %v734 = vpop.permute.xlu0 %733
        %735 = vrot.lane.b32.xlu0 %v728, 16
        %v736 = vpop.permute.xlu0 %735
        %vm739 = vcmask 130048
        %v740 = vsel %vm739, %v628, %v734
        %v741 = vsel %vm739, %v629, %v736
        %744 = vrot.lane.b32.xlu0 %v740, 3
        %v745 = vpop.permute.xlu0 %744
        %746 = vrot.lane.b32.xlu0 %v741, 3
        %v747 = vpop.permute.xlu0 %746
        %vm750 = vcmask 285720
        %751 = vst.msk [vmem:[#allocation2 + $0x2] sm:$0xff] %vm750, %v745
        %752 = vst.msk [vmem:[#allocation2 + $0xa] sm:$0xff] %vm750, %v747
        %755 = vrot.lane.b32.xlu0 %v729, 16
        %v756 = vpop.permute.xlu0 %755
        %757 = vrot.lane.b32.xlu0 %v730, 16
        %v758 = vpop.permute.xlu0 %757
        %v761 = vsel %vm739, %v630, %v756
        %v762 = vsel %vm739, %v631, %v758
        %765 = vrot.lane.b32.xlu0 %v761, 3
        %v766 = vpop.permute.xlu0 %765
        %767 = vrot.lane.b32.xlu0 %v762, 3
        %v768 = vpop.permute.xlu0 %767
        %s771 = scalar_lea.vmem [#allocation2], 24
        %772 = vst.msk [vmem:[%s771 + $0x1] sm:$0xff] %vm750, %v766
        %773 = vst.msk [vmem:[%s771 + $0x9] sm:$0xff] %vm750, %v768
        %v774 = vld [vmem:[#allocation2] sm:$0xff]
        %v775 = vld [vmem:[#allocation2 + $0x8] sm:$0xff]
        %v776 = vld [vmem:[#allocation2 + $0x10] sm:$0x7]
        %v777 = vld [vmem:[#allocation2 + $0x18] sm:$0xff]
        %v778 = vld [vmem:[#allocation2 + $0x20] sm:$0xff]
        %v779 = vld [vmem:[#allocation2 + $0x28] sm:$0x7]
        %782 = vrot.lane.b32.xlu0 %v777, 38
        %v783 = vpop.permute.xlu0 %782
        %784 = vrot.lane.b32.xlu0 %v778, 38
        %v785 = vpop.permute.xlu0 %784
        %vm791 = vcmask 1046528
        %v792 = vrot.slane %v774, 1
        %v793 = vrot.slane %v775, 1
        %v794 = vsel %vm791, %v792, %v793
        %v795 = vrot.slane %v776, 1
        %v796 = vsel %vm791, %v793, %v795
        %797 = vrot.lane.b32.xlu0 %v794, 76
        %v798 = vpop.permute.xlu0 %797
        %799 = vrot.lane.b32.xlu0 %v796, 76
        %v800 = vpop.permute.xlu0 %799
        %v804 = vrot.slane %v777, 1
        %v805 = vrot.slane %v778, 1
        %v806 = vsel %vm791, %v804, %v805
        %v807 = vrot.slane %v779, 1
        %v808 = vsel %vm791, %v805, %v807
        %809 = vrot.lane.b32.xlu0 %v806, 114
        %v810 = vpop.permute.xlu0 %809
        %811 = vrot.lane.b32.xlu0 %v808, 114
        %v812 = vpop.permute.xlu0 %811
        %vm815 = vcmask 1045504
        %v816 = vrot.slane %v774, 2
        %v817 = vrot.slane %v775, 2
        %v818 = vsel %vm815, %v816, %v817
        %v819 = vrot.slane %v776, 2
        %v820 = vsel %vm815, %v817, %v819
        %821 = vrot.lane.b32.xlu0 %v818, 24
        %v822 = vpop.permute.xlu0 %821
        %823 = vrot.lane.b32.xlu0 %v820, 24
        %v824 = vpop.permute.xlu0 %823
        %v827 = vrot.slane %v777, 2
        %v828 = vrot.slane %v778, 2
        %v829 = vsel %vm815, %v827, %v828
        %v830 = vrot.slane %v779, 2
        %v831 = vsel %vm815, %v828, %v830
        %832 = vrot.lane.b32.xlu0 %v829, 62
        %v833 = vpop.permute.xlu0 %832
        %834 = vrot.lane.b32.xlu0 %v831, 62
        %v835 = vpop.permute.xlu0 %834
        %vm838 = vcmask 1044480
        %v839 = vrot.slane %v774, 3
        %v840 = vrot.slane %v775, 3
        %v841 = vsel %vm838, %v839, %v840
        %v842 = vrot.slane %v776, 3
        %v843 = vsel %vm838, %v840, %v842
        %844 = vrot.lane.b32.xlu0 %v841, 100
        %v845 = vpop.permute.xlu0 %844
        %846 = vrot.lane.b32.xlu0 %v843, 100
        %v847 = vpop.permute.xlu0 %846
        %v850 = vsel %vm520, %v774, %v783
        %v851 = vsel %vm520, %v775, %v785
        %vm852 = vcmask 621568
        %v853 = vsel %vm852, %v850, %v798
        %v854 = vsel %vm852, %v851, %v800
        %vm855 = vcmask 932864
        %v856 = vsel %vm855, %v853, %v810
        %v857 = vsel %vm855, %v854, %v812
        %vm858 = vcmask 195584
        %v859 = vsel %vm858, %v810, %v822
        %v860 = vsel %vm858, %v812, %v824
        %vm861 = vcmask 506880
        %v862 = vsel %vm861, %v859, %v833
        %v863 = vsel %vm861, %v860, %v835
        %vm864 = vcmask 818176
        %v865 = vsel %vm864, %v862, %v845
        %v866 = vsel %vm864, %v863, %v847
        %v867 = vpack.c.bf16 %v857, %v856
        %v868 = vpack.c.bf16 %v866, %v865
        %v869 = vpack.c.bf16 %v847, %v845
        %v870 = vld [vmem:[#allocation4] sm:$0xff]
        %v871 = vld [vmem:[#allocation4 + $0x8] sm:$0xff]
        %v872 = vld [vmem:[#allocation4 + $0x10] sm:$0xff]
        %v873 = vld [vmem:[#allocation4 + $0x18] sm:$0xff]
        %v874 = vld [vmem:[#allocation4 + $0x20] sm:$0xff]
        %v875 = vld [vmem:[#allocation4 + $0x28] sm:$0xff]
        %v876 = vld [vmem:[#allocation4 + $0x30] sm:$0xff]
        %v877 = vld [vmem:[#allocation4 + $0x38] sm:$0xff]
        %v878 = vld [vmem:[#allocation4 + $0x40] sm:$0xff]
        %v879 = vld [vmem:[#allocation4 + $0x48] sm:$0xff]
        %v880 = vld [vmem:[#allocation4 + $0x50] sm:$0xff]
        %v881 = vld [vmem:[#allocation4 + $0x58] sm:$0xff]
        %v882 = vld [vmem:[#allocation4 + $0x60] sm:$0xff]
        %v883 = vld [vmem:[#allocation4 + $0x68] sm:$0xff]
        %v884 = vld [vmem:[#allocation4 + $0x70] sm:$0xff]
        %v885 = vld [vmem:[#allocation4 + $0x78] sm:$0xff]
        %v886 = vld [vmem:[#allocation4 + $0x80] sm:$0xff]
        %v887 = vld [vmem:[#allocation4 + $0x88] sm:$0xff]
        %v888 = vld [vmem:[#allocation4 + $0x90] sm:$0xff]
        %v889 = vld [vmem:[#allocation4 + $0x98] sm:$0xff]
        %v890 = vld [vmem:[#allocation4 + $0xa0] sm:$0xff]
        %v891 = vld [vmem:[#allocation4 + $0xa8] sm:$0xff]
        %v892 = vld [vmem:[#allocation4 + $0xb0] sm:$0xff]
        %v893 = vld [vmem:[#allocation4 + $0xb8] sm:$0xff]
        %v894 = vld [vmem:[#allocation4 + $0xc0] sm:$0xff]
        %v895 = vld [vmem:[#allocation4 + $0xc8] sm:$0xff]
        %v896 = vld [vmem:[#allocation4 + $0xd0] sm:$0xff]
        %v897 = vld [vmem:[#allocation4 + $0xd8] sm:$0xff]
        %v898 = vld [vmem:[#allocation4 + $0xe0] sm:$0xff]
        %v899 = vld [vmem:[#allocation4 + $0xe8] sm:$0xff]
        %v900 = vld [vmem:[#allocation4 + $0xf0] sm:$0xff]
        %v901 = vld [vmem:[#allocation4 + $0xf8] sm:$0xff]
        %v902 = vld [vmem:[#allocation4 + $0x100] sm:$0xff]
        %v903 = vld [vmem:[#allocation4 + $0x108] sm:$0xff]
        %v904 = vld [vmem:[#allocation4 + $0x110] sm:$0xff]
        %v905 = vld [vmem:[#allocation4 + $0x118] sm:$0xff]
        %v906 = vld [vmem:[#allocation4 + $0x120] sm:$0xff]
        %v907 = vld [vmem:[#allocation4 + $0x128] sm:$0xff]
        %v908 = vld [vmem:[#allocation4 + $0x130] sm:$0xff]
        %v909 = vld [vmem:[#allocation4 + $0x138] sm:$0xff]
        %v910 = vld [vmem:[#allocation4 + $0x140] sm:$0xff]
        %v911 = vld [vmem:[#allocation4 + $0x148] sm:$0xff]
        %v912 = vld [vmem:[#allocation4 + $0x150] sm:$0xff]
        %v913 = vld [vmem:[#allocation4 + $0x158] sm:$0xff]
        %v914 = vld [vmem:[#allocation4 + $0x160] sm:$0xff]
        %v915 = vld [vmem:[#allocation4 + $0x168] sm:$0xff]
        %v916 = vld [vmem:[#allocation4 + $0x170] sm:$0xff]
        %v917 = vld [vmem:[#allocation4 + $0x178] sm:$0xff]
        %v918 = vld [vmem:[#allocation4 + $0x180] sm:$0xff]
        %v919 = vld [vmem:[#allocation4 + $0x188] sm:$0xff]
        %v920 = vld [vmem:[#allocation4 + $0x190] sm:$0xff]
        %v921 = vld [vmem:[#allocation4 + $0x198] sm:$0xff]
        %v922 = vld [vmem:[#allocation4 + $0x1a0] sm:$0xff]
        %v923 = vld [vmem:[#allocation4 + $0x1a8] sm:$0xff]
        %v924 = vld [vmem:[#allocation4 + $0x1b0] sm:$0xff]
        %v925 = vld [vmem:[#allocation4 + $0x1b8] sm:$0xff]
        %v926 = vld [vmem:[#allocation4 + $0x1c0] sm:$0xff]
        %v927 = vld [vmem:[#allocation4 + $0x1c8] sm:$0xff]
        %v928 = vld [vmem:[#allocation4 + $0x1d0] sm:$0xff]
        %v929 = vld [vmem:[#allocation4 + $0x1d8] sm:$0xff]
        %v930 = vld [vmem:[#allocation4 + $0x1e0] sm:$0xff]
        %v931 = vld [vmem:[#allocation4 + $0x1e8] sm:$0xff]
        %v932 = vld [vmem:[#allocation4 + $0x1f0] sm:$0xff]
        %v933 = vld [vmem:[#allocation4 + $0x1f8] sm:$0xff]
        %v934 = vld [vmem:[#allocation4 + $0x200] sm:$0xff]
        %v935 = vld [vmem:[#allocation4 + $0x208] sm:$0xff]
        %v936 = vld [vmem:[#allocation4 + $0x210] sm:$0x11]
        %v937 = vld [vmem:[#allocation4 + $0x218] sm:$0x11]
        %v938 = vld [vmem:[#allocation6] sm:$0xf]
        %v940 = vperm.slane %v938, 0
        %v941 = vperm.slane %v938, 1
        %v942 = vperm.slane %v938, 2
        %v943 = vperm.slane %v938, 3
        %v1016 = vunpack.c.l.b16 %v870
        %v1017 = vunpack.c.h.b16 %v870
        %v1018 = vunpack.c.l.b16 %v871
        %v1019 = vunpack.c.h.b16 %v871
        %v1020 = vunpack.c.l.b16 %v872
        %v1021 = vunpack.c.h.b16 %v872
        %v1022 = vunpack.c.l.b16 %v873
        %v1023 = vunpack.c.h.b16 %v873
        %v1024 = vunpack.c.l.b16 %v874
        %v1025 = vunpack.c.h.b16 %v874
        %v1026 = vunpack.c.l.b16 %v875
        %v1027 = vunpack.c.h.b16 %v875
        %v1028 = vunpack.c.l.b16 %v876
        %v1029 = vunpack.c.h.b16 %v876
        %v1030 = vunpack.c.l.b16 %v877
        %v1031 = vunpack.c.h.b16 %v877
        %v1032 = vunpack.c.l.b16 %v878
        %v1033 = vunpack.c.h.b16 %v878
        %v1034 = vunpack.c.l.b16 %v879
        %v1035 = vunpack.c.h.b16 %v879
        %v1036 = vunpack.c.l.b16 %v880
        %v1037 = vunpack.c.h.b16 %v880
        %v1038 = vunpack.c.l.b16 %v881
        %v1039 = vunpack.c.h.b16 %v881
        %v1040 = vunpack.c.l.b16 %v882
        %v1041 = vunpack.c.h.b16 %v882
        %v1042 = vunpack.c.l.b16 %v883
        %v1043 = vunpack.c.h.b16 %v883
        %v1044 = vunpack.c.l.b16 %v884
        %v1045 = vunpack.c.h.b16 %v884
        %v1046 = vunpack.c.l.b16 %v885
        %v1047 = vunpack.c.h.b16 %v885
        %v1048 = vunpack.c.l.b16 %v886
        %v1049 = vunpack.c.h.b16 %v886
        %v1050 = vunpack.c.l.b16 %v887
        %v1051 = vunpack.c.h.b16 %v887
        %v1052 = vunpack.c.l.b16 %v888
        %v1053 = vunpack.c.h.b16 %v888
        %v1054 = vunpack.c.l.b16 %v889
        %v1055 = vunpack.c.h.b16 %v889
        %v1056 = vunpack.c.l.b16 %v890
        %v1057 = vunpack.c.h.b16 %v890
        %v1058 = vunpack.c.l.b16 %v891
        %v1059 = vunpack.c.h.b16 %v891
        %v1060 = vunpack.c.l.b16 %v892
        %v1061 = vunpack.c.h.b16 %v892
        %v1062 = vunpack.c.l.b16 %v893
        %v1063 = vunpack.c.h.b16 %v893
        %v1064 = vunpack.c.l.b16 %v894
        %v1065 = vunpack.c.h.b16 %v894
        %v1066 = vunpack.c.l.b16 %v895
        %v1067 = vunpack.c.h.b16 %v895
        %v1068 = vunpack.c.l.b16 %v896
        %v1069 = vunpack.c.h.b16 %v896
        %v1070 = vunpack.c.l.b16 %v897
        %v1071 = vunpack.c.h.b16 %v897
        %v1072 = vunpack.c.l.b16 %v898
        %v1073 = vunpack.c.h.b16 %v898
        %v1074 = vunpack.c.l.b16 %v899
        %v1075 = vunpack.c.h.b16 %v899
        %v1076 = vunpack.c.l.b16 %v900
        %v1077 = vunpack.c.h.b16 %v900
        %v1078 = vunpack.c.l.b16 %v901
        %v1079 = vunpack.c.h.b16 %v901
        %v1080 = vunpack.c.l.b16 %v902
        %v1081 = vunpack.c.h.b16 %v902
        %v1082 = vunpack.c.l.b16 %v903
        %v1083 = vunpack.c.h.b16 %v903
        %v1084 = vunpack.c.l.b16 %v904
        %v1085 = vunpack.c.h.b16 %v904
        %v1086 = vunpack.c.l.b16 %v905
        %v1087 = vunpack.c.h.b16 %v905
        %v1088 = vunpack.c.l.b16 %v906
        %v1089 = vunpack.c.h.b16 %v906
        %v1090 = vunpack.c.l.b16 %v907
        %v1091 = vunpack.c.h.b16 %v907
        %v1092 = vunpack.c.l.b16 %v908
        %v1093 = vunpack.c.h.b16 %v908
        %v1094 = vunpack.c.l.b16 %v909
        %v1095 = vunpack.c.h.b16 %v909
        %v1096 = vunpack.c.l.b16 %v910
        %v1097 = vunpack.c.h.b16 %v910
        %v1098 = vunpack.c.l.b16 %v911
        %v1099 = vunpack.c.h.b16 %v911
        %v1100 = vunpack.c.l.b16 %v912
        %v1101 = vunpack.c.h.b16 %v912
        %v1102 = vunpack.c.l.b16 %v913
        %v1103 = vunpack.c.h.b16 %v913
        %v1104 = vunpack.c.l.b16 %v914
        %v1105 = vunpack.c.h.b16 %v914
        %v1106 = vunpack.c.l.b16 %v915
        %v1107 = vunpack.c.h.b16 %v915
        %v1108 = vunpack.c.l.b16 %v916
        %v1109 = vunpack.c.h.b16 %v916
        %v1110 = vunpack.c.l.b16 %v917
        %v1111 = vunpack.c.h.b16 %v917
        %v1112 = vunpack.c.l.b16 %v918
        %v1113 = vunpack.c.h.b16 %v918
        %v1114 = vunpack.c.l.b16 %v919
        %v1115 = vunpack.c.h.b16 %v919
        %v1116 = vunpack.c.l.b16 %v920
        %v1117 = vunpack.c.h.b16 %v920
        %v1118 = vunpack.c.l.b16 %v921
        %v1119 = vunpack.c.h.b16 %v921
        %v1120 = vunpack.c.l.b16 %v922
        %v1121 = vunpack.c.h.b16 %v922
        %v1122 = vunpack.c.l.b16 %v923
        %v1123 = vunpack.c.h.b16 %v923
        %v1124 = vunpack.c.l.b16 %v924
        %v1125 = vunpack.c.h.b16 %v924
        %v1126 = vunpack.c.l.b16 %v925
        %v1127 = vunpack.c.h.b16 %v925
        %v1128 = vunpack.c.l.b16 %v926
        %v1129 = vunpack.c.h.b16 %v926
        %v1130 = vunpack.c.l.b16 %v927
        %v1131 = vunpack.c.h.b16 %v927
        %v1132 = vunpack.c.l.b16 %v928
        %v1133 = vunpack.c.h.b16 %v928
        %v1134 = vunpack.c.l.b16 %v929
        %v1135 = vunpack.c.h.b16 %v929
        %v1136 = vunpack.c.l.b16 %v930
        %v1137 = vunpack.c.h.b16 %v930
        %v1138 = vunpack.c.l.b16 %v931
        %v1139 = vunpack.c.h.b16 %v931
        %v1140 = vunpack.c.l.b16 %v932
        %v1141 = vunpack.c.h.b16 %v932
        %v1142 = vunpack.c.l.b16 %v933
        %v1143 = vunpack.c.h.b16 %v933
        %v1144 = vunpack.c.l.b16 %v934
        %v1145 = vunpack.c.h.b16 %v934
        %v1146 = vunpack.c.l.b16 %v935
        %v1147 = vunpack.c.h.b16 %v935
        %v1148 = vunpack.c.l.b16 %v936
        %v1149 = vunpack.c.h.b16 %v936
        %v1150 = vunpack.c.l.b16 %v937
        %v1151 = vunpack.c.h.b16 %v937
        %v1152 = vpack.c.b16 %v1020, %v1016
        %v1153 = vpack.c.b16 %v1021, %v1017
        %v1154 = vpack.c.b16 %v1022, %v1018
        %v1155 = vpack.c.b16 %v1023, %v1019
        %v1156 = vpack.c.b16 %v1028, %v1024
        %v1157 = vpack.c.b16 %v1029, %v1025
        %v1158 = vpack.c.b16 %v1030, %v1026
        %v1159 = vpack.c.b16 %v1031, %v1027
        %v1160 = vpack.c.b16 %v1036, %v1032
        %v1161 = vpack.c.b16 %v1037, %v1033
        %v1162 = vpack.c.b16 %v1038, %v1034
        %v1163 = vpack.c.b16 %v1039, %v1035
        %v1164 = vpack.c.b16 %v1044, %v1040
        %v1165 = vpack.c.b16 %v1045, %v1041
        %v1166 = vpack.c.b16 %v1046, %v1042
        %v1167 = vpack.c.b16 %v1047, %v1043
        %v1168 = vpack.c.b16 %v1052, %v1048
        %v1169 = vpack.c.b16 %v1053, %v1049
        %v1170 = vpack.c.b16 %v1054, %v1050
        %v1171 = vpack.c.b16 %v1055, %v1051
        %v1172 = vpack.c.b16 %v1060, %v1056
        %v1173 = vpack.c.b16 %v1061, %v1057
        %v1174 = vpack.c.b16 %v1062, %v1058
        %v1175 = vpack.c.b16 %v1063, %v1059
        %v1176 = vpack.c.b16 %v1068, %v1064
        %v1177 = vpack.c.b16 %v1069, %v1065
        %v1178 = vpack.c.b16 %v1070, %v1066
        %v1179 = vpack.c.b16 %v1071, %v1067
        %v1180 = vpack.c.b16 %v1076, %v1072
        %v1181 = vpack.c.b16 %v1077, %v1073
        %v1182 = vpack.c.b16 %v1078, %v1074
        %v1183 = vpack.c.b16 %v1079, %v1075
        %v1184 = vpack.c.b16 %v1084, %v1080
        %v1185 = vpack.c.b16 %v1085, %v1081
        %v1186 = vpack.c.b16 %v1086, %v1082
        %v1187 = vpack.c.b16 %v1087, %v1083
        %v1188 = vpack.c.b16 %v1092, %v1088
        %v1189 = vpack.c.b16 %v1093, %v1089
        %v1190 = vpack.c.b16 %v1094, %v1090
        %v1191 = vpack.c.b16 %v1095, %v1091
        %v1192 = vpack.c.b16 %v1100, %v1096
        %v1193 = vpack.c.b16 %v1101, %v1097
        %v1194 = vpack.c.b16 %v1102, %v1098
        %v1195 = vpack.c.b16 %v1103, %v1099
        %v1196 = vpack.c.b16 %v1108, %v1104
        %v1197 = vpack.c.b16 %v1109, %v1105
        %v1198 = vpack.c.b16 %v1110, %v1106
        %v1199 = vpack.c.b16 %v1111, %v1107
        %v1200 = vpack.c.b16 %v1116, %v1112
        %v1201 = vpack.c.b16 %v1117, %v1113
        %v1202 = vpack.c.b16 %v1118, %v1114
        %v1203 = vpack.c.b16 %v1119, %v1115
        %v1204 = vpack.c.b16 %v1124, %v1120
        %v1205 = vpack.c.b16 %v1125, %v1121
        %v1206 = vpack.c.b16 %v1126, %v1122
        %v1207 = vpack.c.b16 %v1127, %v1123
        %v1208 = vpack.c.b16 %v1132, %v1128
        %v1209 = vpack.c.b16 %v1133, %v1129
        %v1210 = vpack.c.b16 %v1134, %v1130
        %v1211 = vpack.c.b16 %v1135, %v1131
        %v1212 = vpack.c.b16 %v1140, %v1136
        %v1213 = vpack.c.b16 %v1141, %v1137
        %v1214 = vpack.c.b16 %v1142, %v1138
        %v1215 = vpack.c.b16 %v1143, %v1139
        %v1216 = vpack.c.b16 %v1148, %v1144
        %v1217 = vpack.c.b16 %v1149, %v1145
        %v1218 = vpack.c.b16 %v1150, %v1146
        %v1219 = vpack.c.b16 %v1151, %v1147
        %vm1284 = vcmask 80896
        %v1286 = vsel %vm1284, %v869, 0
        %v1289 = vsel %vm838, %v1216, 0
        %v1292 = vsel %vm838, %v1217, 0
        %v1295 = vsel %vm838, %v1218, 0
        %v1298 = vsel %vm838, %v1219, 0
        %1300 = vmatpush.bf16.msra.mxu0 %v1180
        %1301 = vmatpush.bf16.msra.mxu0 %v1176
        %1302 = vmatpush.bf16.msra.mxu0 %v1172
        %1303 = vmatpush.bf16.msra.mxu0 %v1168
        %1304 = vmatpush.bf16.msra.mxu0 %v1164
        %1305 = vmatpush.bf16.msra.mxu0 %v1160
        %1306 = vmatpush.bf16.msra.mxu0 %v1156
        %1307 = vmatpush.bf16.msra.mxu0 %v1152
        %1308 = vmatmul.bf16.gmra.mxu0 %v867
        %v1309 = vpop.f32.mrf.mxu0
        %v1310 = vadd.f32 %v940, %v1309
        %v1311 = vpop.f32.mrf.mxu0
        %v1312 = vadd.f32 %v940, %v1311
        %1313 = vdwg.mxu0
        %1314 = vmatpush.bf16.msra.mxu0 %v1212
        %1315 = vmatpush.bf16.msra.mxu0 %v1208
        %1316 = vmatpush.bf16.msra.mxu0 %v1204
        %1317 = vmatpush.bf16.msra.mxu0 %v1200
        %1318 = vmatpush.bf16.msra.mxu0 %v1196
        %1319 = vmatpush.bf16.msra.mxu0 %v1192
        %1320 = vmatpush.bf16.msra.mxu0 %v1188
        %1321 = vmatpush.bf16.msra.mxu0 %v1184
        %1322 = vmatmul.bf16.gmra.mxu0 %v868
        %v1323 = vpop.f32.mrf.mxu0
        %v1324 = vadd.f32 %v1310, %v1323
        %v1325 = vpop.f32.mrf.mxu0
        %v1326 = vadd.f32 %v1312, %v1325
        %1327 = vdwg.mxu0
        %1328 = vmatpush.bf16.msra.mxu0 0
        %1329 = vmatpush.bf16.msra.mxu0 0
        %1330 = vmatpush.bf16.msra.mxu0 0
        %1331 = vmatpush.bf16.msra.mxu0 0
        %1332 = vmatpush.bf16.msra.mxu0 0
        %1333 = vmatpush.bf16.msra.mxu0 0
        %1334 = vmatpush.bf16.msra.mxu0 0
        %1335 = vmatpush.bf16.msra.mxu0 %v1289
        %1336 = vmatmul.bf16.gmra.mxu0 %v1286
        %v1337 = vpop.f32.mrf.mxu0
        %v1338 = vadd.f32 %v1324, %v1337
        %v1339 = vpop.f32.mrf.mxu0
        %v1340 = vadd.f32 %v1326, %v1339
        %1341 = vdwg.mxu0
        %1342 = vmatpush.bf16.msra.mxu0 %v1181
        %1343 = vmatpush.bf16.msra.mxu0 %v1177
        %1344 = vmatpush.bf16.msra.mxu0 %v1173
        %1345 = vmatpush.bf16.msra.mxu0 %v1169
        %1346 = vmatpush.bf16.msra.mxu0 %v1165
        %1347 = vmatpush.bf16.msra.mxu0 %v1161
        %1348 = vmatpush.bf16.msra.mxu0 %v1157
        %1349 = vmatpush.bf16.msra.mxu0 %v1153
        %1350 = vmatmul.bf16.gmra.mxu0 %v867
        %v1351 = vpop.f32.mrf.mxu0
        %v1352 = vadd.f32 %v941, %v1351
        %v1353 = vpop.f32.mrf.mxu0
        %v1354 = vadd.f32 %v941, %v1353
        %1355 = vdwg.mxu0
        %1356 = vmatpush.bf16.msra.mxu0 %v1213
        %1357 = vmatpush.bf16.msra.mxu0 %v1209
        %1358 = vmatpush.bf16.msra.mxu0 %v1205
        %1359 = vmatpush.bf16.msra.mxu0 %v1201
        %1360 = vmatpush.bf16.msra.mxu0 %v1197
        %1361 = vmatpush.bf16.msra.mxu0 %v1193
        %1362 = vmatpush.bf16.msra.mxu0 %v1189
        %1363 = vmatpush.bf16.msra.mxu0 %v1185
        %1364 = vmatmul.bf16.gmra.mxu0 %v868
        %v1365 = vpop.f32.mrf.mxu0
        %v1366 = vadd.f32 %v1352, %v1365
        %v1367 = vpop.f32.mrf.mxu0
        %v1368 = vadd.f32 %v1354, %v1367
        %1369 = vdwg.mxu0
        %1370 = vmatpush.bf16.msra.mxu0 0
        %1371 = vmatpush.bf16.msra.mxu0 0
        %1372 = vmatpush.bf16.msra.mxu0 0
        %1373 = vmatpush.bf16.msra.mxu0 0
        %1374 = vmatpush.bf16.msra.mxu0 0
        %1375 = vmatpush.bf16.msra.mxu0 0
        %1376 = vmatpush.bf16.msra.mxu0 0
        %1377 = vmatpush.bf16.msra.mxu0 %v1292
        %1378 = vmatmul.bf16.gmra.mxu0 %v1286
        %v1379 = vpop.f32.mrf.mxu0
        %v1380 = vadd.f32 %v1366, %v1379
        %v1381 = vpop.f32.mrf.mxu0
        %v1382 = vadd.f32 %v1368, %v1381
        %1383 = vdwg.mxu0
        %1384 = vmatpush.bf16.msra.mxu0 %v1182
        %1385 = vmatpush.bf16.msra.mxu0 %v1178
        %1386 = vmatpush.bf16.msra.mxu0 %v1174
        %1387 = vmatpush.bf16.msra.mxu0 %v1170
        %1388 = vmatpush.bf16.msra.mxu0 %v1166
        %1389 = vmatpush.bf16.msra.mxu0 %v1162
        %1390 = vmatpush.bf16.msra.mxu0 %v1158
        %1391 = vmatpush.bf16.msra.mxu0 %v1154
        %1392 = vmatmul.bf16.gmra.mxu0 %v867
        %v1393 = vpop.f32.mrf.mxu0
        %v1394 = vadd.f32 %v942, %v1393
        %v1395 = vpop.f32.mrf.mxu0
        %v1396 = vadd.f32 %v942, %v1395
        %1397 = vdwg.mxu0
        %1398 = vmatpush.bf16.msra.mxu0 %v1214
        %1399 = vmatpush.bf16.msra.mxu0 %v1210
        %1400 = vmatpush.bf16.msra.mxu0 %v1206
        %1401 = vmatpush.bf16.msra.mxu0 %v1202
        %1402 = vmatpush.bf16.msra.mxu0 %v1198
        %1403 = vmatpush.bf16.msra.mxu0 %v1194
        %1404 = vmatpush.bf16.msra.mxu0 %v1190
        %1405 = vmatpush.bf16.msra.mxu0 %v1186
        %1406 = vmatmul.bf16.gmra.mxu0 %v868
        %v1407 = vpop.f32.mrf.mxu0
        %v1408 = vadd.f32 %v1394, %v1407
        %v1409 = vpop.f32.mrf.mxu0
        %v1410 = vadd.f32 %v1396, %v1409
        %1411 = vdwg.mxu0
        %1412 = vmatpush.bf16.msra.mxu0 0
        %1413 = vmatpush.bf16.msra.mxu0 0
        %1414 = vmatpush.bf16.msra.mxu0 0
        %1415 = vmatpush.bf16.msra.mxu0 0
        %1416 = vmatpush.bf16.msra.mxu0 0
        %1417 = vmatpush.bf16.msra.mxu0 0
        %1418 = vmatpush.bf16.msra.mxu0 0
        %1419 = vmatpush.bf16.msra.mxu0 %v1295
        %1420 = vmatmul.bf16.gmra.mxu0 %v1286
        %v1421 = vpop.f32.mrf.mxu0
        %v1422 = vadd.f32 %v1408, %v1421
        %v1423 = vpop.f32.mrf.mxu0
        %v1424 = vadd.f32 %v1410, %v1423
        %1425 = vdwg.mxu0
        %1426 = vmatpush.bf16.msra.mxu0 %v1183
        %1427 = vmatpush.bf16.msra.mxu0 %v1179
        %1428 = vmatpush.bf16.msra.mxu0 %v1175
        %1429 = vmatpush.bf16.msra.mxu0 %v1171
        %1430 = vmatpush.bf16.msra.mxu0 %v1167
        %1431 = vmatpush.bf16.msra.mxu0 %v1163
        %1432 = vmatpush.bf16.msra.mxu0 %v1159
        %1433 = vmatpush.bf16.msra.mxu0 %v1155
        %1434 = vmatmul.bf16.gmra.mxu0 %v867
        %v1435 = vpop.f32.mrf.mxu0
        %v1436 = vadd.f32 %v943, %v1435
        %v1437 = vpop.f32.mrf.mxu0
        %v1438 = vadd.f32 %v943, %v1437
        %1439 = vdwg.mxu0
        %1440 = vmatpush.bf16.msra.mxu0 %v1215
        %1441 = vmatpush.bf16.msra.mxu0 %v1211
        %1442 = vmatpush.bf16.msra.mxu0 %v1207
        %1443 = vmatpush.bf16.msra.mxu0 %v1203
        %1444 = vmatpush.bf16.msra.mxu0 %v1199
        %1445 = vmatpush.bf16.msra.mxu0 %v1195
        %1446 = vmatpush.bf16.msra.mxu0 %v1191
        %1447 = vmatpush.bf16.msra.mxu0 %v1187
        %1448 = vmatmul.bf16.gmra.mxu0 %v868
        %v1449 = vpop.f32.mrf.mxu0
        %v1450 = vadd.f32 %v1436, %v1449
        %v1451 = vpop.f32.mrf.mxu0
        %v1452 = vadd.f32 %v1438, %v1451
        %1453 = vdwg.mxu0
        %1454 = vmatpush.bf16.msra.mxu0 0
        %1455 = vmatpush.bf16.msra.mxu0 0
        %1456 = vmatpush.bf16.msra.mxu0 0
        %1457 = vmatpush.bf16.msra.mxu0 0
        %1458 = vmatpush.bf16.msra.mxu0 0
        %1459 = vmatpush.bf16.msra.mxu0 0
        %1460 = vmatpush.bf16.msra.mxu0 0
        %1461 = vmatpush.bf16.msra.mxu0 %v1298
        %1462 = vmatmul.bf16.gmra.mxu0 %v1286
        %v1463 = vpop.f32.mrf.mxu0
        %v1464 = vadd.f32 %v1450, %v1463
        %v1465 = vpop.f32.mrf.mxu0
        %v1466 = vadd.f32 %v1452, %v1465
        %1467 = vdwg.mxu0
        %v1468 = vmax.f32 %v1338, 0.0
        %v1469 = vmax.f32 %v1380, 0.0
        %v1470 = vmax.f32 %v1422, 0.0
        %v1471 = vmax.f32 %v1464, 0.0
        %v1472 = vmax.f32 %v1340, 0.0
        %v1473 = vmax.f32 %v1382, 0.0
        %v1474 = vmax.f32 %v1424, 0.0
        %v1475 = vmax.f32 %v1466, 0.0
        %v1476 = vmax.f32 %v1468, %v1470
        %v1477 = vmax.f32 %v1469, %v1471
        %v1478 = vmax.f32 %v1472, %v1474
        %v1479 = vmax.f32 %v1473, %v1475
        %v1480 = vmax.f32 %v1476, %v1477
        %v1481 = vmax.f32 %v1478, %v1479
        %1484 = vrot.lane.b32.xlu0 %v1480, 64
        %v1485 = vpop.permute.xlu0 %1484
        %1486 = vrot.lane.b32.xlu0 %v1481, 64
        %v1487 = vpop.permute.xlu0 %1486
        %v1490 = vmax.f32 %v1480, %v1485
        %v1491 = vmax.f32 %v1481, %v1487
        %1494 = vrot.lane.b32.xlu0 %v1490, 96
        %v1495 = vpop.permute.xlu0 %1494
        %1496 = vrot.lane.b32.xlu0 %v1491, 96
        %v1497 = vpop.permute.xlu0 %1496
        %v1500 = vmax.f32 %v1490, %v1495
        %v1501 = vmax.f32 %v1491, %v1497
        %vm1502 = vcmask 261120
        %v1503 = vsel %vm1502, %v1500, -inf
        %v1504 = vsel %vm1502, %v1501, -inf
        %v1505 = vmax.f32 %v1503, %v1504
        %v1506 = vrot.slane %v1505, 4
        %v1507 = vmax.f32 %v1505, %v1506
        %v1508 = vrot.slane %v1507, 2
        %v1509 = vmax.f32 %v1507, %v1508
        %v1510 = vrot.slane %v1509, 1
        %v1511 = vmax.f32 %v1509, %v1510
        %v1512 = vmax.f32 %v1468, %v1469
        %v1513 = vmax.f32 %v1472, %v1473
        %1516 = vrot.lane.b32.xlu0 %v1512, 64
        %v1517 = vpop.permute.xlu0 %1516
        %1518 = vrot.lane.b32.xlu0 %v1513, 64
        %v1519 = vpop.permute.xlu0 %1518
        %v1522 = vmax.f32 %v1512, %v1517
        %v1523 = vmax.f32 %v1513, %v1519
        %1526 = vrot.lane.b32.xlu0 %v1522, 96
        %v1527 = vpop.permute.xlu0 %1526
        %1528 = vrot.lane.b32.xlu0 %v1523, 96
        %v1529 = vpop.permute.xlu0 %1528
        %v1532 = vmax.f32 %v1522, %v1527
        %v1533 = vmax.f32 %v1523, %v1529
        %v1534 = vmax.f32 %v1470, %v1471
        %v1535 = vmax.f32 %v1474, %v1475
        %1538 = vrot.lane.b32.xlu0 %v1534, 64
        %v1539 = vpop.permute.xlu0 %1538
        %1540 = vrot.lane.b32.xlu0 %v1535, 64
        %v1541 = vpop.permute.xlu0 %1540
        %v1544 = vmax.f32 %v1534, %v1539
        %v1545 = vmax.f32 %v1535, %v1541
        %1548 = vrot.lane.b32.xlu0 %v1544, 96
        %v1549 = vpop.permute.xlu0 %1548
        %1550 = vrot.lane.b32.xlu0 %v1545, 96
        %v1551 = vpop.permute.xlu0 %1550
        %v1554 = vmax.f32 %v1544, %v1549
        %v1555 = vmax.f32 %v1545, %v1551
        %v1556 = vsel %vm1502, %v1532, -inf
        %v1557 = vrot.slane %v1556, 4
        %v1558 = vmax.f32 %v1556, %v1557
        %v1559 = vrot.slane %v1558, 2
        %v1560 = vmax.f32 %v1558, %v1559
        %v1561 = vrot.slane %v1560, 1
        %v1562 = vmax.f32 %v1560, %v1561
        %v1563 = vsel %vm1502, %v1554, -inf
        %v1564 = vrot.slane %v1563, 4
        %v1565 = vmax.f32 %v1563, %v1564
        %v1566 = vrot.slane %v1565, 2
        %v1567 = vmax.f32 %v1565, %v1566
        %v1568 = vrot.slane %v1567, 1
        %v1569 = vmax.f32 %v1567, %v1568
        %v1570 = vsel %vm1502, %v1533, -inf
        %v1571 = vrot.slane %v1570, 4
        %v1572 = vmax.f32 %v1570, %v1571
        %v1573 = vrot.slane %v1572, 2
        %v1574 = vmax.f32 %v1572, %v1573
        %v1575 = vrot.slane %v1574, 1
        %v1576 = vmax.f32 %v1574, %v1575
        %v1577 = vsel %vm1502, %v1555, -inf
        %v1578 = vrot.slane %v1577, 4
        %v1579 = vmax.f32 %v1577, %v1578
        %v1580 = vrot.slane %v1579, 2
        %v1581 = vmax.f32 %v1579, %v1580
        %v1582 = vrot.slane %v1581, 1
        %v1583 = vmax.f32 %v1581, %v1582
        %1588 = vrot.lane.b32.xlu0 %v1468, 32
        %v1589 = vpop.permute.xlu0 %1588
        %1590 = vrot.lane.b32.xlu0 %v1469, 32
        %v1591 = vpop.permute.xlu0 %1590
        %1592 = vrot.lane.b32.xlu0 %v1472, 32
        %v1593 = vpop.permute.xlu0 %1592
        %1594 = vrot.lane.b32.xlu0 %v1473, 32
        %v1595 = vpop.permute.xlu0 %1594
        %v1596 = vsel %vm1502, %v1589, %v1591
        %v1597 = vsel %vm1502, %v1593, %v1595
        %v1600 = vmax.f32 %v1468, %v1596
        %v1601 = vmax.f32 %v1472, %v1597
        %1604 = vrot.lane.b32.xlu0 %v1600, 96
        %v1605 = vpop.permute.xlu0 %1604
        %1606 = vrot.lane.b32.xlu0 %v1601, 96
        %v1607 = vpop.permute.xlu0 %1606
        %v1610 = vmax.f32 %v1600, %v1605
        %v1611 = vmax.f32 %v1601, %v1607
        %1612 = vrot.lane.b32.xlu0 %v1600, 64
        %v1613 = vpop.permute.xlu0 %1612
        %1614 = vrot.lane.b32.xlu0 %v1601, 64
        %v1615 = vpop.permute.xlu0 %1614
        %v1618 = vmax.f32 %v1610, %v1613
        %v1619 = vmax.f32 %v1611, %v1615
        %1622 = vrot.lane.b32.xlu0 %v1470, 32
        %v1623 = vpop.permute.xlu0 %1622
        %1624 = vrot.lane.b32.xlu0 %v1474, 32
        %v1625 = vpop.permute.xlu0 %1624
        %v1628 = vmax.f32 %v1469, %v1623
        %v1629 = vmax.f32 %v1473, %v1625
        %1632 = vrot.lane.b32.xlu0 %v1628, 96
        %v1633 = vpop.permute.xlu0 %1632
        %1634 = vrot.lane.b32.xlu0 %v1629, 96
        %v1635 = vpop.permute.xlu0 %1634
        %v1638 = vmax.f32 %v1628, %v1633
        %v1639 = vmax.f32 %v1629, %v1635
        %1640 = vrot.lane.b32.xlu0 %v1628, 64
        %v1641 = vpop.permute.xlu0 %1640
        %1642 = vrot.lane.b32.xlu0 %v1629, 64
        %v1643 = vpop.permute.xlu0 %1642
        %v1646 = vmax.f32 %v1638, %v1641
        %v1647 = vmax.f32 %v1639, %v1643
        %1650 = vrot.lane.b32.xlu0 %v1471, 32
        %v1651 = vpop.permute.xlu0 %1650
        %1652 = vrot.lane.b32.xlu0 %v1475, 32
        %v1653 = vpop.permute.xlu0 %1652
        %v1656 = vmax.f32 %v1470, %v1651
        %v1657 = vmax.f32 %v1471, %v1651
        %v1658 = vmax.f32 %v1474, %v1653
        %v1659 = vmax.f32 %v1475, %v1653
        %1662 = vrot.lane.b32.xlu0 %v1656, 96
        %v1663 = vpop.permute.xlu0 %1662
        %1664 = vrot.lane.b32.xlu0 %v1658, 96
        %v1665 = vpop.permute.xlu0 %1664
        %v1668 = vmax.f32 %v1656, %v1663
        %v1669 = vmax.f32 %v1658, %v1665
        %1672 = vrot.lane.b32.xlu0 %v1657, 64
        %v1673 = vpop.permute.xlu0 %1672
        %1674 = vrot.lane.b32.xlu0 %v1659, 64
        %v1675 = vpop.permute.xlu0 %1674
        %v1678 = vmax.f32 %v1668, %v1673
        %v1679 = vmax.f32 %v1669, %v1675
        %vm1680 = vcmask 259072
        %v1681 = vsel %vm1680, %v1618, -inf
        %v1682 = vrot.slane %v1681, 4
        %v1683 = vmax.f32 %v1681, %v1682
        %v1684 = vrot.slane %v1683, 2
        %v1685 = vmax.f32 %v1683, %v1684
        %v1686 = vrot.slane %v1685, 1
        %v1687 = vmax.f32 %v1685, %v1686
        %vm1688 = vcmask 521472
        %v1689 = vsel %vm1688, %v1646, -inf
        %v1690 = vrot.slane %v1689, 4
        %v1691 = vmax.f32 %v1689, %v1690
        %v1692 = vrot.slane %v1691, 2
        %v1693 = vmax.f32 %v1691, %v1692
        %v1694 = vrot.slane %v1693, 1
        %v1695 = vmax.f32 %v1693, %v1694
        %vm1696 = vcmask 783872
        %v1697 = vsel %vm1696, %v1678, -inf
        %v1698 = vrot.slane %v1697, 4
        %v1699 = vmax.f32 %v1697, %v1698
        %v1700 = vrot.slane %v1699, 2
        %v1701 = vmax.f32 %v1699, %v1700
        %v1702 = vrot.slane %v1701, 1
        %v1703 = vmax.f32 %v1701, %v1702
        %vm1704 = vcmask 261125
        %v1705 = vsel %vm1704, %v1618, -inf
        %vm1706 = vcmask 256000
        %v1707 = vsel %vm1706, %v1619, -inf
        %v1708 = vmax.f32 %v1705, %v1707
        %v1709 = vrot.slane %v1708, 4
        %v1710 = vmax.f32 %v1708, %v1709
        %v1711 = vrot.slane %v1710, 2
        %v1712 = vmax.f32 %v1710, %v1711
        %v1713 = vrot.slane %v1712, 1
        %v1714 = vmax.f32 %v1712, %v1713
        %vm1715 = vcmask 523525
        %v1716 = vsel %vm1715, %v1646, -inf
        %vm1717 = vcmask 518400
        %v1718 = vsel %vm1717, %v1647, -inf
        %v1719 = vmax.f32 %v1716, %v1718
        %v1720 = vrot.slane %v1719, 4
        %v1721 = vmax.f32 %v1719, %v1720
        %v1722 = vrot.slane %v1721, 2
        %v1723 = vmax.f32 %v1721, %v1722
        %v1724 = vrot.slane %v1723, 1
        %v1725 = vmax.f32 %v1723, %v1724
        %vm1726 = vcmask 785925
        %v1727 = vsel %vm1726, %v1678, -inf
        %vm1728 = vcmask 780800
        %v1729 = vsel %vm1728, %v1679, -inf
        %v1730 = vmax.f32 %v1727, %v1729
        %v1731 = vrot.slane %v1730, 4
        %v1732 = vmax.f32 %v1730, %v1731
        %v1733 = vrot.slane %v1732, 2
        %v1734 = vmax.f32 %v1732, %v1733
        %v1735 = vrot.slane %v1734, 1
        %v1736 = vmax.f32 %v1734, %v1735
        %vm1737 = vcmask 261122
        %v1738 = vsel %vm1737, %v1619, -inf
        %v1739 = vrot.slane %v1738, 4
        %v1740 = vmax.f32 %v1738, %v1739
        %v1741 = vrot.slane %v1740, 2
        %v1742 = vmax.f32 %v1740, %v1741
        %v1743 = vrot.slane %v1742, 1
        %v1744 = vmax.f32 %v1742, %v1743
        %vm1745 = vcmask 523522
        %v1746 = vsel %vm1745, %v1647, -inf
        %v1747 = vrot.slane %v1746, 4
        %v1748 = vmax.f32 %v1746, %v1747
        %v1749 = vrot.slane %v1748, 2
        %v1750 = vmax.f32 %v1748, %v1749
        %v1751 = vrot.slane %v1750, 1
        %v1752 = vmax.f32 %v1750, %v1751
        %vm1753 = vcmask 785922
        %v1754 = vsel %vm1753, %v1679, -inf
        %v1755 = vrot.slane %v1754, 4
        %v1756 = vmax.f32 %v1754, %v1755
        %v1757 = vrot.slane %v1756, 2
        %v1758 = vmax.f32 %v1756, %v1757
        %v1759 = vrot.slane %v1758, 1
        %v1760 = vmax.f32 %v1758, %v1759
        %1761 = vrot.lane.b32.xlu0 %v1468, 64
        %v1762 = vpop.permute.xlu0 %1761
        %1763 = vrot.lane.b32.xlu0 %v1472, 64
        %v1764 = vpop.permute.xlu0 %1763
        %v1767 = vmax.f32 %v1468, %v1762
        %v1768 = vmax.f32 %v1472, %v1764
        %1771 = vrot.lane.b32.xlu0 %v1767, 96
        %v1772 = vpop.permute.xlu0 %1771
        %1773 = vrot.lane.b32.xlu0 %v1768, 96
        %v1774 = vpop.permute.xlu0 %1773
        %v1777 = vmax.f32 %v1767, %v1772
        %v1778 = vmax.f32 %v1768, %v1774
        %1779 = vrot.lane.b32.xlu0 %v1469, 64
        %v1780 = vpop.permute.xlu0 %1779
        %1781 = vrot.lane.b32.xlu0 %v1473, 64
        %v1782 = vpop.permute.xlu0 %1781
        %v1785 = vmax.f32 %v1469, %v1780
        %v1786 = vmax.f32 %v1473, %v1782
        %1789 = vrot.lane.b32.xlu0 %v1785, 96
        %v1790 = vpop.permute.xlu0 %1789
        %1791 = vrot.lane.b32.xlu0 %v1786, 96
        %v1792 = vpop.permute.xlu0 %1791
        %v1795 = vmax.f32 %v1785, %v1790
        %v1796 = vmax.f32 %v1786, %v1792
        %1797 = vrot.lane.b32.xlu0 %v1470, 64
        %v1798 = vpop.permute.xlu0 %1797
        %1799 = vrot.lane.b32.xlu0 %v1474, 64
        %v1800 = vpop.permute.xlu0 %1799
        %v1803 = vmax.f32 %v1470, %v1798
        %v1804 = vmax.f32 %v1474, %v1800
        %1807 = vrot.lane.b32.xlu0 %v1803, 96
        %v1808 = vpop.permute.xlu0 %1807
        %1809 = vrot.lane.b32.xlu0 %v1804, 96
        %v1810 = vpop.permute.xlu0 %1809
        %v1813 = vmax.f32 %v1803, %v1808
        %v1814 = vmax.f32 %v1804, %v1810
        %1815 = vrot.lane.b32.xlu0 %v1471, 64
        %v1816 = vpop.permute.xlu0 %1815
        %1817 = vrot.lane.b32.xlu0 %v1475, 64
        %v1818 = vpop.permute.xlu0 %1817
        %v1821 = vmax.f32 %v1471, %v1816
        %v1822 = vmax.f32 %v1475, %v1818
        %1825 = vrot.lane.b32.xlu0 %v1821, 96
        %v1826 = vpop.permute.xlu0 %1825
        %1827 = vrot.lane.b32.xlu0 %v1822, 96
        %v1828 = vpop.permute.xlu0 %1827
        %v1831 = vmax.f32 %v1821, %v1826
        %v1832 = vmax.f32 %v1822, %v1828
        %vm1833 = vcmask 257024
        %v1834 = vsel %vm1833, %v1777, -inf
        %v1835 = vrot.slane %v1834, 4
        %v1836 = vmax.f32 %v1834, %v1835
        %v1837 = vrot.slane %v1836, 2
        %v1838 = vmax.f32 %v1836, %v1837
        %v1839 = vrot.slane %v1838, 1
        %v1840 = vmax.f32 %v1838, %v1839
        %v1841 = vsel %vm1833, %v1795, -inf
        %v1842 = vrot.slane %v1841, 4
        %v1843 = vmax.f32 %v1841, %v1842
        %v1844 = vrot.slane %v1843, 2
        %v1845 = vmax.f32 %v1843, %v1844
        %v1846 = vrot.slane %v1845, 1
        %v1847 = vmax.f32 %v1845, %v1846
        %v1848 = vsel %vm1833, %v1813, -inf
        %v1849 = vrot.slane %v1848, 4
        %v1850 = vmax.f32 %v1848, %v1849
        %v1851 = vrot.slane %v1850, 2
        %v1852 = vmax.f32 %v1850, %v1851
        %v1853 = vrot.slane %v1852, 1
        %v1854 = vmax.f32 %v1852, %v1853
        %v1855 = vsel %vm1833, %v1831, -inf
        %v1856 = vrot.slane %v1855, 4
        %v1857 = vmax.f32 %v1855, %v1856
        %v1858 = vrot.slane %v1857, 2
        %v1859 = vmax.f32 %v1857, %v1858
        %v1860 = vrot.slane %v1859, 1
        %v1861 = vmax.f32 %v1859, %v1860
        %vm1862 = vcmask 261124
        %v1863 = vsel %vm1862, %v1777, -inf
        %v1864 = vrot.slane %v1863, 4
        %v1865 = vmax.f32 %v1863, %v1864
        %v1866 = vrot.slane %v1865, 2
        %v1867 = vmax.f32 %v1865, %v1866
        %v1868 = vrot.slane %v1867, 1
        %v1869 = vmax.f32 %v1867, %v1868
        %v1870 = vsel %vm1862, %v1795, -inf
        %v1871 = vrot.slane %v1870, 4
        %v1872 = vmax.f32 %v1870, %v1871
        %v1873 = vrot.slane %v1872, 2
        %v1874 = vmax.f32 %v1872, %v1873
        %v1875 = vrot.slane %v1874, 1
        %v1876 = vmax.f32 %v1874, %v1875
        %v1877 = vsel %vm1862, %v1813, -inf
        %v1878 = vrot.slane %v1877, 4
        %v1879 = vmax.f32 %v1877, %v1878
        %v1880 = vrot.slane %v1879, 2
        %v1881 = vmax.f32 %v1879, %v1880
        %v1882 = vrot.slane %v1881, 1
        %v1883 = vmax.f32 %v1881, %v1882
        %v1884 = vsel %vm1862, %v1831, -inf
        %v1885 = vrot.slane %v1884, 4
        %v1886 = vmax.f32 %v1884, %v1885
        %v1887 = vrot.slane %v1886, 2
        %v1888 = vmax.f32 %v1886, %v1887
        %v1889 = vrot.slane %v1888, 1
        %v1890 = vmax.f32 %v1888, %v1889
        %v1891 = vsel %vm1833, %v1778, -inf
        %v1892 = vrot.slane %v1891, 4
        %v1893 = vmax.f32 %v1891, %v1892
        %v1894 = vrot.slane %v1893, 2
        %v1895 = vmax.f32 %v1893, %v1894
        %v1896 = vrot.slane %v1895, 1
        %v1897 = vmax.f32 %v1895, %v1896
        %v1898 = vsel %vm1833, %v1796, -inf
        %v1899 = vrot.slane %v1898, 4
        %v1900 = vmax.f32 %v1898, %v1899
        %v1901 = vrot.slane %v1900, 2
        %v1902 = vmax.f32 %v1900, %v1901
        %v1903 = vrot.slane %v1902, 1
        %v1904 = vmax.f32 %v1902, %v1903
        %v1905 = vsel %vm1833, %v1814, -inf
        %v1906 = vrot.slane %v1905, 4
        %v1907 = vmax.f32 %v1905, %v1906
        %v1908 = vrot.slane %v1907, 2
        %v1909 = vmax.f32 %v1907, %v1908
        %v1910 = vrot.slane %v1909, 1
        %v1911 = vmax.f32 %v1909, %v1910
        %v1912 = vsel %vm1833, %v1832, -inf
        %v1913 = vrot.slane %v1912, 4
        %v1914 = vmax.f32 %v1912, %v1913
        %v1915 = vrot.slane %v1914, 2
        %v1916 = vmax.f32 %v1914, %v1915
        %v1917 = vrot.slane %v1916, 1
        %v1918 = vmax.f32 %v1916, %v1917
        %v1919 = vsel %vm1862, %v1778, -inf
        %v1920 = vrot.slane %v1919, 4
        %v1921 = vmax.f32 %v1919, %v1920
        %v1922 = vrot.slane %v1921, 2
        %v1923 = vmax.f32 %v1921, %v1922
        %v1924 = vrot.slane %v1923, 1
        %v1925 = vmax.f32 %v1923, %v1924
        %v1926 = vsel %vm1862, %v1796, -inf
        %v1927 = vrot.slane %v1926, 4
        %v1928 = vmax.f32 %v1926, %v1927
        %v1929 = vrot.slane %v1928, 2
        %v1930 = vmax.f32 %v1928, %v1929
        %v1931 = vrot.slane %v1930, 1
        %v1932 = vmax.f32 %v1930, %v1931
        %v1933 = vsel %vm1862, %v1814, -inf
        %v1934 = vrot.slane %v1933, 4
        %v1935 = vmax.f32 %v1933, %v1934
        %v1936 = vrot.slane %v1935, 2
        %v1937 = vmax.f32 %v1935, %v1936
        %v1938 = vrot.slane %v1937, 1
        %v1939 = vmax.f32 %v1937, %v1938
        %v1940 = vsel %vm1862, %v1832, -inf
        %v1941 = vrot.slane %v1940, 4
        %v1942 = vmax.f32 %v1940, %v1941
        %v1943 = vrot.slane %v1942, 2
        %v1944 = vmax.f32 %v1942, %v1943
        %v1945 = vrot.slane %v1944, 1
        %v1946 = vmax.f32 %v1944, %v1945
        %1948 = vrot.lane.b32.xlu0 %v1562, 32
        %v1949 = vpop.permute.xlu0 %1948
        %1952 = vrot.lane.b32.xlu0 %v1569, 64
        %v1953 = vpop.permute.xlu0 %1952
        %1956 = vrot.lane.b32.xlu0 %v1576, 96
        %v1957 = vpop.permute.xlu0 %1956
        %1960 = vrot.lane.b32.xlu0 %v1687, 32
        %v1961 = vpop.permute.xlu0 %1960
        %1964 = vrot.lane.b32.xlu0 %v1695, 32
        %v1965 = vpop.permute.xlu0 %1964
        %1968 = vrot.lane.b32.xlu0 %v1703, 32
        %v1969 = vpop.permute.xlu0 %1968
        %1972 = vrot.lane.b32.xlu0 %v1744, 96
        %v1973 = vpop.permute.xlu0 %1972
        %1976 = vrot.lane.b32.xlu0 %v1752, 96
        %v1977 = vpop.permute.xlu0 %1976
        %1980 = vrot.lane.b32.xlu0 %v1760, 96
        %v1981 = vpop.permute.xlu0 %1980
        %1984 = vrot.lane.b32.xlu0 %v1840, 64
        %v1985 = vpop.permute.xlu0 %1984
        %1988 = vrot.lane.b32.xlu0 %v1847, 96
        %v1989 = vpop.permute.xlu0 %1988
        %v1991 = vsel %vm1502, %v1511, %v1949
        %vm1992 = vcmask 523264
        %v1993 = vsel %vm1992, %v1991, %v1953
        %vm1994 = vcmask 785408
        %v1995 = vsel %vm1994, %v1993, %v1957
        %v1996 = vsel %vm1502, %v1583, %v1961
        %v1997 = vsel %vm1992, %v1996, %v1965
        %v1998 = vsel %vm1994, %v1997, %v1969
        %v1999 = vsel %vm1502, %v1714, %v1725
        %v2000 = vsel %vm1992, %v1999, %v1736
        %v2001 = vsel %vm1994, %v2000, %v1973
        %v2002 = vsel %vm1502, %v1977, %v1981
        %v2003 = vsel %vm1992, %v2002, %v1985
        %v2004 = vsel %vm1994, %v2003, %v1989
        %2006 = vrot.lane.b32.xlu0 %v1861, 32
        %v2007 = vpop.permute.xlu0 %2006
        %2010 = vrot.lane.b32.xlu0 %v1869, 64
        %v2011 = vpop.permute.xlu0 %2010
        %2014 = vrot.lane.b32.xlu0 %v1876, 96
        %v2015 = vpop.permute.xlu0 %2014
        %2018 = vrot.lane.b32.xlu0 %v1890, 32
        %v2019 = vpop.permute.xlu0 %2018
        %2022 = vrot.lane.b32.xlu0 %v1897, 64
        %v2023 = vpop.permute.xlu0 %2022
        %2026 = vrot.lane.b32.xlu0 %v1904, 96
        %v2027 = vpop.permute.xlu0 %2026
        %2030 = vrot.lane.b32.xlu0 %v1918, 32
        %v2031 = vpop.permute.xlu0 %2030
        %2034 = vrot.lane.b32.xlu0 %v1925, 64
        %v2035 = vpop.permute.xlu0 %2034
        %2038 = vrot.lane.b32.xlu0 %v1932, 96
        %v2039 = vpop.permute.xlu0 %2038
        %2042 = vrot.lane.b32.xlu0 %v1946, 32
        %v2043 = vpop.permute.xlu0 %2042
        %v2045 = vsel %vm1502, %v1854, %v2007
        %v2046 = vsel %vm1992, %v2045, %v2011
        %v2047 = vsel %vm1994, %v2046, %v2015
        %v2048 = vsel %vm1502, %v1883, %v2019
        %v2049 = vsel %vm1992, %v2048, %v2023
        %v2050 = vsel %vm1994, %v2049, %v2027
        %v2051 = vsel %vm1502, %v1911, %v2031
        %v2052 = vsel %vm1992, %v2051, %v2035
        %v2053 = vsel %vm1994, %v2052, %v2039
        %v2054 = vsel %vm1502, %v1939, %v2043
        %v2055 = vpack.c.bf16 %v1995, %v1995
        %v2056 = vpack.c.bf16 %v1998, %v1998
        %v2057 = vpack.c.bf16 %v2001, %v2001
        %v2058 = vpack.c.bf16 %v2004, %v2004
        %v2059 = vpack.c.bf16 %v2047, %v2047
        %v2060 = vpack.c.bf16 %v2050, %v2050
        %v2061 = vpack.c.bf16 %v2053, %v2053
        %v2062 = vpack.c.bf16 %v2054, %v2054
        %v2063 = vld [vmem:[#allocation8] sm:$0xff]
        %v2064 = vld [vmem:[#allocation8 + $0x8] sm:$0xff]
        %v2065 = vld [vmem:[#allocation8 + $0x10] sm:$0xff]
        %v2066 = vld [vmem:[#allocation8 + $0x18] sm:$0xff]
        %v2067 = vld [vmem:[#allocation8 + $0x20] sm:$0xff]
        %v2068 = vld [vmem:[#allocation8 + $0x28] sm:$0xff]
        %v2069 = vld [vmem:[#allocation8 + $0x30] sm:$0xff]
        %v2070 = vld [vmem:[#allocation8 + $0x38] sm:$0xff]
        %v2071 = vld [vmem:[#allocation8 + $0x40] sm:$0xff]
        %v2072 = vld [vmem:[#allocation8 + $0x48] sm:$0xff]
        %v2073 = vld [vmem:[#allocation8 + $0x50] sm:$0xff]
        %v2074 = vld [vmem:[#allocation8 + $0x58] sm:$0xff]
        %v2075 = vld [vmem:[#allocation8 + $0x60] sm:$0xff]
        %v2076 = vld [vmem:[#allocation8 + $0x68] sm:$0xff]
        %v2077 = vld [vmem:[#allocation8 + $0x70] sm:$0xff]
        %v2078 = vld [vmem:[#allocation8 + $0x78] sm:$0xff]
        %v2079 = vld [vmem:[#allocation8 + $0x80] sm:$0xff]
        %v2080 = vld [vmem:[#allocation8 + $0x88] sm:$0xff]
        %v2081 = vld [vmem:[#allocation8 + $0x90] sm:$0xff]
        %v2082 = vld [vmem:[#allocation8 + $0x98] sm:$0xff]
        %v2083 = vld [vmem:[#allocation8 + $0xa0] sm:$0xff]
        %v2084 = vld [vmem:[#allocation8 + $0xa8] sm:$0xff]
        %v2085 = vld [vmem:[#allocation8 + $0xb0] sm:$0xff]
        %v2086 = vld [vmem:[#allocation8 + $0xb8] sm:$0xff]
        %v2087 = vld [vmem:[#allocation8 + $0xc0] sm:$0xff]
        %v2088 = vld [vmem:[#allocation8 + $0xc8] sm:$0xff]
        %v2089 = vld [vmem:[#allocation8 + $0xd0] sm:$0xff]
        %v2090 = vld [vmem:[#allocation8 + $0xd8] sm:$0xff]
        %v2091 = vld [vmem:[#allocation8 + $0xe0] sm:$0xff]
        %v2092 = vld [vmem:[#allocation8 + $0xe8] sm:$0xff]
        %v2093 = vld [vmem:[#allocation8 + $0xf0] sm:$0xff]
        %v2094 = vld [vmem:[#allocation8 + $0xf8] sm:$0xff]
        %v2095 = vld [vmem:[#allocation8 + $0x100] sm:$0xff]
        %v2096 = vld [vmem:[#allocation8 + $0x108] sm:$0xff]
        %v2097 = vld [vmem:[#allocation8 + $0x110] sm:$0xff]
        %v2098 = vld [vmem:[#allocation8 + $0x118] sm:$0xff]
        %v2099 = vld [vmem:[#allocation8 + $0x120] sm:$0xff]
        %v2100 = vld [vmem:[#allocation8 + $0x128] sm:$0xff]
        %v2101 = vld [vmem:[#allocation8 + $0x130] sm:$0xff]
        %v2102 = vld [vmem:[#allocation8 + $0x138] sm:$0xff]
        %v2103 = vld [vmem:[#allocation8 + $0x140] sm:$0xff]
        %v2104 = vld [vmem:[#allocation8 + $0x148] sm:$0xff]
        %v2105 = vld [vmem:[#allocation8 + $0x150] sm:$0xff]
        %v2106 = vld [vmem:[#allocation8 + $0x158] sm:$0xff]
        %v2107 = vld [vmem:[#allocation8 + $0x160] sm:$0xff]
        %v2108 = vld [vmem:[#allocation8 + $0x168] sm:$0xff]
        %v2109 = vld [vmem:[#allocation8 + $0x170] sm:$0xff]
        %v2110 = vld [vmem:[#allocation8 + $0x178] sm:$0xff]
        %v2111 = vld [vmem:[#allocation8 + $0x180] sm:$0xff]
        %v2112 = vld [vmem:[#allocation8 + $0x188] sm:$0xff]
        %v2113 = vld [vmem:[#allocation8 + $0x190] sm:$0xff]
        %v2114 = vld [vmem:[#allocation8 + $0x198] sm:$0xff]
        %v2115 = vld [vmem:[#allocation8 + $0x1a0] sm:$0xff]
        %v2116 = vld [vmem:[#allocation8 + $0x1a8] sm:$0xff]
        %v2117 = vld [vmem:[#allocation8 + $0x1b0] sm:$0xff]
        %v2118 = vld [vmem:[#allocation8 + $0x1b8] sm:$0xff]
        %v2119 = vld [vmem:[#allocation8 + $0x1c0] sm:$0xff]
        %v2120 = vld [vmem:[#allocation8 + $0x1c8] sm:$0xff]
        %v2121 = vld [vmem:[#allocation8 + $0x1d0] sm:$0xff]
        %v2122 = vld [vmem:[#allocation8 + $0x1d8] sm:$0xff]
        %v2123 = vld [vmem:[#allocation8 + $0x1e0] sm:$0xff]
        %v2124 = vld [vmem:[#allocation8 + $0x1e8] sm:$0xff]
        %v2125 = vld [vmem:[#allocation8 + $0x1f0] sm:$0xff]
        %v2126 = vld [vmem:[#allocation8 + $0x1f8] sm:$0xff]
        %v2127 = vld [vmem:[#allocation8 + $0x200] sm:$0xff]
        %v2128 = vld [vmem:[#allocation8 + $0x208] sm:$0xff]
        %v2129 = vld [vmem:[#allocation8 + $0x210] sm:$0xff]
        %v2130 = vld [vmem:[#allocation8 + $0x218] sm:$0xff]
        %v2131 = vld [vmem:[#allocation8 + $0x220] sm:$0xff]
        %v2132 = vld [vmem:[#allocation8 + $0x228] sm:$0xff]
        %v2133 = vld [vmem:[#allocation8 + $0x230] sm:$0xff]
        %v2134 = vld [vmem:[#allocation8 + $0x238] sm:$0xff]
        %v2135 = vld [vmem:[#allocation8 + $0x240] sm:$0xff]
        %v2136 = vld [vmem:[#allocation8 + $0x248] sm:$0xff]
        %v2137 = vld [vmem:[#allocation8 + $0x250] sm:$0xff]
        %v2138 = vld [vmem:[#allocation8 + $0x258] sm:$0xff]
        %v2139 = vld [vmem:[#allocation8 + $0x260] sm:$0xff]
        %v2140 = vld [vmem:[#allocation8 + $0x268] sm:$0xff]
        %v2141 = vld [vmem:[#allocation8 + $0x270] sm:$0xff]
        %v2142 = vld [vmem:[#allocation8 + $0x278] sm:$0xff]
        %v2143 = vld [vmem:[#allocation8 + $0x280] sm:$0xff]
        %v2144 = vld [vmem:[#allocation8 + $0x288] sm:$0xff]
        %v2145 = vld [vmem:[#allocation8 + $0x290] sm:$0xff]
        %v2146 = vld [vmem:[#allocation8 + $0x298] sm:$0xff]
        %v2147 = vld [vmem:[#allocation8 + $0x2a0] sm:$0xff]
        %v2148 = vld [vmem:[#allocation8 + $0x2a8] sm:$0xff]
        %v2149 = vld [vmem:[#allocation8 + $0x2b0] sm:$0xff]
        %v2150 = vld [vmem:[#allocation8 + $0x2b8] sm:$0xff]
        %v2151 = vld [vmem:[#allocation8 + $0x2c0] sm:$0xff]
        %v2152 = vld [vmem:[#allocation8 + $0x2c8] sm:$0xff]
        %v2153 = vld [vmem:[#allocation8 + $0x2d0] sm:$0xff]
        %v2154 = vld [vmem:[#allocation8 + $0x2d8] sm:$0xff]
        %v2155 = vld [vmem:[#allocation8 + $0x2e0] sm:$0xff]
        %v2156 = vld [vmem:[#allocation8 + $0x2e8] sm:$0xff]
        %v2157 = vld [vmem:[#allocation8 + $0x2f0] sm:$0xff]
        %v2158 = vld [vmem:[#allocation8 + $0x2f8] sm:$0xff]
        %v2159 = vld [vmem:[#allocation8 + $0x300] sm:$0xff]
        %v2160 = vld [vmem:[#allocation8 + $0x308] sm:$0xff]
        %v2161 = vld [vmem:[#allocation8 + $0x310] sm:$0xff]
        %v2162 = vld [vmem:[#allocation8 + $0x318] sm:$0xff]
        %v2163 = vld [vmem:[#allocation8 + $0x320] sm:$0xff]
        %v2164 = vld [vmem:[#allocation8 + $0x328] sm:$0xff]
        %v2165 = vld [vmem:[#allocation8 + $0x330] sm:$0xff]
        %v2166 = vld [vmem:[#allocation8 + $0x338] sm:$0xff]
        %v2167 = vld [vmem:[#allocation8 + $0x340] sm:$0xff]
        %v2168 = vld [vmem:[#allocation8 + $0x348] sm:$0xff]
        %v2169 = vld [vmem:[#allocation8 + $0x350] sm:$0xff]
        %v2170 = vld [vmem:[#allocation8 + $0x358] sm:$0xff]
        %v2171 = vld [vmem:[#allocation8 + $0x360] sm:$0xff]
        %v2172 = vld [vmem:[#allocation8 + $0x368] sm:$0xff]
        %v2173 = vld [vmem:[#allocation8 + $0x370] sm:$0xff]
        %v2174 = vld [vmem:[#allocation8 + $0x378] sm:$0xff]
        %v2175 = vld [vmem:[#allocation8 + $0x380] sm:$0xff]
        %v2176 = vld [vmem:[#allocation8 + $0x388] sm:$0xff]
        %v2177 = vld [vmem:[#allocation8 + $0x390] sm:$0xff]
        %v2178 = vld [vmem:[#allocation8 + $0x398] sm:$0xff]
        %v2179 = vld [vmem:[#allocation8 + $0x3a0] sm:$0xff]
        %v2180 = vld [vmem:[#allocation8 + $0x3a8] sm:$0xff]
        %v2181 = vld [vmem:[#allocation8 + $0x3b0] sm:$0xff]
        %v2182 = vld [vmem:[#allocation8 + $0x3b8] sm:$0xff]
        %v2183 = vld [vmem:[#allocation8 + $0x3c0] sm:$0xff]
        %v2184 = vld [vmem:[#allocation8 + $0x3c8] sm:$0xff]
        %v2185 = vld [vmem:[#allocation8 + $0x3d0] sm:$0xff]
        %v2186 = vld [vmem:[#allocation8 + $0x3d8] sm:$0xff]
        %v2187 = vld [vmem:[#allocation8 + $0x3e0] sm:$0xff]
        %v2188 = vld [vmem:[#allocation8 + $0x3e8] sm:$0xff]
        %v2189 = vld [vmem:[#allocation8 + $0x3f0] sm:$0xff]
        %v2190 = vld [vmem:[#allocation8 + $0x3f8] sm:$0xff]
        %v2191 = vld [vmem:[#allocation8 + $0x400] sm:$0xff]
        %v2192 = vld [vmem:[#allocation8 + $0x408] sm:$0xff]
        %v2193 = vld [vmem:[#allocation8 + $0x410] sm:$0xff]
        %v2194 = vld [vmem:[#allocation8 + $0x418] sm:$0xff]
        %v2195 = vld [vmem:[#allocation8 + $0x420] sm:$0xff]
        %v2196 = vld [vmem:[#allocation8 + $0x428] sm:$0xff]
        %v2197 = vld [vmem:[#allocation8 + $0x430] sm:$0xff]
        %v2198 = vld [vmem:[#allocation8 + $0x438] sm:$0xff]
        %v2199 = vld [vmem:[#allocation8 + $0x440] sm:$0xff]
        %v2200 = vld [vmem:[#allocation8 + $0x448] sm:$0xff]
        %v2201 = vld [vmem:[#allocation8 + $0x450] sm:$0xff]
        %v2202 = vld [vmem:[#allocation8 + $0x458] sm:$0xff]
        %v2203 = vld [vmem:[#allocation8 + $0x460] sm:$0xff]
        %v2204 = vld [vmem:[#allocation8 + $0x468] sm:$0xff]
        %v2205 = vld [vmem:[#allocation8 + $0x470] sm:$0xff]
        %v2206 = vld [vmem:[#allocation8 + $0x478] sm:$0xff]
        %v2207 = vld [vmem:[#allocation8 + $0x480] sm:$0xff]
        %v2208 = vld [vmem:[#allocation8 + $0x488] sm:$0xff]
        %v2209 = vld [vmem:[#allocation8 + $0x490] sm:$0xff]
        %v2210 = vld [vmem:[#allocation8 + $0x498] sm:$0xff]
        %v2211 = vld [vmem:[#allocation8 + $0x4a0] sm:$0xff]
        %v2212 = vld [vmem:[#allocation8 + $0x4a8] sm:$0xff]
        %v2213 = vld [vmem:[#allocation8 + $0x4b0] sm:$0xff]
        %v2214 = vld [vmem:[#allocation8 + $0x4b8] sm:$0xff]
        %v2215 = vld [vmem:[#allocation8 + $0x4c0] sm:$0xff]
        %v2216 = vld [vmem:[#allocation8 + $0x4c8] sm:$0xff]
        %v2217 = vld [vmem:[#allocation8 + $0x4d0] sm:$0xff]
        %v2218 = vld [vmem:[#allocation8 + $0x4d8] sm:$0xff]
        %v2219 = vld [vmem:[#allocation8 + $0x4e0] sm:$0xff]
        %v2220 = vld [vmem:[#allocation8 + $0x4e8] sm:$0xff]
        %v2221 = vld [vmem:[#allocation8 + $0x4f0] sm:$0xff]
        %v2222 = vld [vmem:[#allocation8 + $0x4f8] sm:$0xff]
        %v2223 = vld [vmem:[#allocation8 + $0x500] sm:$0xff]
        %v2224 = vld [vmem:[#allocation8 + $0x508] sm:$0xff]
        %v2225 = vld [vmem:[#allocation8 + $0x510] sm:$0xff]
        %v2226 = vld [vmem:[#allocation8 + $0x518] sm:$0xff]
        %v2227 = vld [vmem:[#allocation8 + $0x520] sm:$0xff]
        %v2228 = vld [vmem:[#allocation8 + $0x528] sm:$0xff]
        %v2229 = vld [vmem:[#allocation8 + $0x530] sm:$0xff]
        %v2230 = vld [vmem:[#allocation8 + $0x538] sm:$0xff]
        %v2231 = vld [vmem:[#allocation8 + $0x540] sm:$0xff]
        %v2232 = vld [vmem:[#allocation8 + $0x548] sm:$0xff]
        %v2233 = vld [vmem:[#allocation8 + $0x550] sm:$0xff]
        %v2234 = vld [vmem:[#allocation8 + $0x558] sm:$0xff]
        %v2235 = vld [vmem:[#allocation8 + $0x560] sm:$0xff]
        %v2236 = vld [vmem:[#allocation8 + $0x568] sm:$0xff]
        %v2237 = vld [vmem:[#allocation8 + $0x570] sm:$0xff]
        %v2238 = vld [vmem:[#allocation8 + $0x578] sm:$0xff]
        %v2239 = vld [vmem:[#allocation8 + $0x580] sm:$0xff]
        %v2240 = vld [vmem:[#allocation8 + $0x588] sm:$0xff]
        %v2241 = vld [vmem:[#allocation8 + $0x590] sm:$0xff]
        %v2242 = vld [vmem:[#allocation8 + $0x598] sm:$0xff]
        %v2243 = vld [vmem:[#allocation8 + $0x5a0] sm:$0xff]
        %v2244 = vld [vmem:[#allocation8 + $0x5a8] sm:$0xff]
        %v2245 = vld [vmem:[#allocation8 + $0x5b0] sm:$0xff]
        %v2246 = vld [vmem:[#allocation8 + $0x5b8] sm:$0xff]
        %v2247 = vld [vmem:[#allocation8 + $0x5c0] sm:$0xff]
        %v2248 = vld [vmem:[#allocation8 + $0x5c8] sm:$0xff]
        %v2249 = vld [vmem:[#allocation8 + $0x5d0] sm:$0xff]
        %v2250 = vld [vmem:[#allocation8 + $0x5d8] sm:$0xff]
        %v2251 = vld [vmem:[#allocation8 + $0x5e0] sm:$0xff]
        %v2252 = vld [vmem:[#allocation8 + $0x5e8] sm:$0xff]
        %v2253 = vld [vmem:[#allocation8 + $0x5f0] sm:$0xff]
        %v2254 = vld [vmem:[#allocation8 + $0x5f8] sm:$0xff]
        %v2255 = vld [vmem:[#allocation8 + $0x600] sm:$0xff]
        %v2256 = vld [vmem:[#allocation8 + $0x608] sm:$0xff]
        %v2257 = vld [vmem:[#allocation8 + $0x610] sm:$0xff]
        %v2258 = vld [vmem:[#allocation8 + $0x618] sm:$0xff]
        %v2259 = vld [vmem:[#allocation8 + $0x620] sm:$0xff]
        %v2260 = vld [vmem:[#allocation8 + $0x628] sm:$0xff]
        %v2261 = vld [vmem:[#allocation8 + $0x630] sm:$0xff]
        %v2262 = vld [vmem:[#allocation8 + $0x638] sm:$0xff]
        %v2263 = vld [vmem:[#allocation8 + $0x640] sm:$0xff]
        %v2264 = vld [vmem:[#allocation8 + $0x648] sm:$0xff]
        %v2265 = vld [vmem:[#allocation8 + $0x650] sm:$0xff]
        %v2266 = vld [vmem:[#allocation8 + $0x658] sm:$0xff]
        %v2267 = vld [vmem:[#allocation8 + $0x660] sm:$0xff]
        %v2268 = vld [vmem:[#allocation8 + $0x668] sm:$0xff]
        %v2269 = vld [vmem:[#allocation8 + $0x670] sm:$0xff]
        %v2270 = vld [vmem:[#allocation8 + $0x678] sm:$0xff]
        %v2271 = vld [vmem:[#allocation8 + $0x680] sm:$0xff]
        %v2272 = vld [vmem:[#allocation8 + $0x688] sm:$0xff]
        %v2273 = vld [vmem:[#allocation8 + $0x690] sm:$0xff]
        %v2274 = vld [vmem:[#allocation8 + $0x698] sm:$0xff]
        %v2275 = vld [vmem:[#allocation8 + $0x6a0] sm:$0xff]
        %v2276 = vld [vmem:[#allocation8 + $0x6a8] sm:$0xff]
        %v2277 = vld [vmem:[#allocation8 + $0x6b0] sm:$0xff]
        %v2278 = vld [vmem:[#allocation8 + $0x6b8] sm:$0xff]
        %v2279 = vld [vmem:[#allocation8 + $0x6c0] sm:$0xff]
        %v2280 = vld [vmem:[#allocation8 + $0x6c8] sm:$0xff]
        %v2281 = vld [vmem:[#allocation8 + $0x6d0] sm:$0xff]
        %v2282 = vld [vmem:[#allocation8 + $0x6d8] sm:$0xff]
        %v2283 = vld [vmem:[#allocation8 + $0x6e0] sm:$0xff]
        %v2284 = vld [vmem:[#allocation8 + $0x6e8] sm:$0xff]
        %v2285 = vld [vmem:[#allocation8 + $0x6f0] sm:$0xff]
        %v2286 = vld [vmem:[#allocation8 + $0x6f8] sm:$0xff]
        %v2287 = vld [vmem:[#allocation8 + $0x700] sm:$0xff]
        %v2288 = vld [vmem:[#allocation8 + $0x708] sm:$0xff]
        %v2289 = vld [vmem:[#allocation8 + $0x710] sm:$0xff]
        %v2290 = vld [vmem:[#allocation8 + $0x718] sm:$0xff]
        %v2291 = vld [vmem:[#allocation8 + $0x720] sm:$0xff]
        %v2292 = vld [vmem:[#allocation8 + $0x728] sm:$0xff]
        %v2293 = vld [vmem:[#allocation8 + $0x730] sm:$0xff]
        %v2294 = vld [vmem:[#allocation8 + $0x738] sm:$0xff]
        %v2295 = vld [vmem:[#allocation8 + $0x740] sm:$0xff]
        %v2296 = vld [vmem:[#allocation8 + $0x748] sm:$0xff]
        %v2297 = vld [vmem:[#allocation8 + $0x750] sm:$0xff]
        %v2298 = vld [vmem:[#allocation8 + $0x758] sm:$0xff]
        %v2299 = vld [vmem:[#allocation8 + $0x760] sm:$0xff]
        %v2300 = vld [vmem:[#allocation8 + $0x768] sm:$0xff]
        %v2301 = vld [vmem:[#allocation8 + $0x770] sm:$0xff]
        %v2302 = vld [vmem:[#allocation8 + $0x778] sm:$0xff]
        %v2303 = vld [vmem:[#allocation8 + $0x780] sm:$0xff]
        %v2304 = vld [vmem:[#allocation8 + $0x788] sm:$0xff]
        %v2305 = vld [vmem:[#allocation8 + $0x790] sm:$0xff]
        %v2306 = vld [vmem:[#allocation8 + $0x798] sm:$0xff]
        %v2307 = vld [vmem:[#allocation8 + $0x7a0] sm:$0xff]
        %v2308 = vld [vmem:[#allocation8 + $0x7a8] sm:$0xff]
        %v2309 = vld [vmem:[#allocation8 + $0x7b0] sm:$0xff]
        %v2310 = vld [vmem:[#allocation8 + $0x7b8] sm:$0xff]
        %v2311 = vld [vmem:[#allocation8 + $0x7c0] sm:$0xff]
        %v2312 = vld [vmem:[#allocation8 + $0x7c8] sm:$0xff]
        %v2313 = vld [vmem:[#allocation8 + $0x7d0] sm:$0xff]
        %v2314 = vld [vmem:[#allocation8 + $0x7d8] sm:$0xff]
        %v2315 = vld [vmem:[#allocation8 + $0x7e0] sm:$0xff]
        %v2316 = vld [vmem:[#allocation8 + $0x7e8] sm:$0xff]
        %v2317 = vld [vmem:[#allocation8 + $0x7f0] sm:$0xff]
        %v2318 = vld [vmem:[#allocation8 + $0x7f8] sm:$0xff]
        %v2319 = vld [vmem:[#allocation8 + $0x800] sm:$0xff]
        %v2320 = vld [vmem:[#allocation8 + $0x808] sm:$0xff]
        %v2321 = vld [vmem:[#allocation8 + $0x810] sm:$0xff]
        %v2322 = vld [vmem:[#allocation8 + $0x818] sm:$0xff]
        %v2323 = vld [vmem:[#allocation8 + $0x820] sm:$0xff]
        %v2324 = vld [vmem:[#allocation8 + $0x828] sm:$0xff]
        %v2325 = vld [vmem:[#allocation8 + $0x830] sm:$0xff]
        %v2326 = vld [vmem:[#allocation8 + $0x838] sm:$0xff]
        %v2327 = vld [vmem:[#allocation8 + $0x840] sm:$0xff]
        %v2328 = vld [vmem:[#allocation8 + $0x848] sm:$0xff]
        %v2329 = vld [vmem:[#allocation8 + $0x850] sm:$0xff]
        %v2330 = vld [vmem:[#allocation8 + $0x858] sm:$0xff]
        %v2331 = vld [vmem:[#allocation8 + $0x860] sm:$0xff]
        %v2332 = vld [vmem:[#allocation8 + $0x868] sm:$0xff]
        %v2333 = vld [vmem:[#allocation8 + $0x870] sm:$0xff]
        %v2334 = vld [vmem:[#allocation8 + $0x878] sm:$0xff]
        %v2335 = vld [vmem:[#allocation8 + $0x880] sm:$0xff]
        %v2336 = vld [vmem:[#allocation8 + $0x888] sm:$0xff]
        %v2337 = vld [vmem:[#allocation8 + $0x890] sm:$0xff]
        %v2338 = vld [vmem:[#allocation8 + $0x898] sm:$0xff]
        %v2339 = vld [vmem:[#allocation8 + $0x8a0] sm:$0xff]
        %v2340 = vld [vmem:[#allocation8 + $0x8a8] sm:$0xff]
        %v2341 = vld [vmem:[#allocation8 + $0x8b0] sm:$0xff]
        %v2342 = vld [vmem:[#allocation8 + $0x8b8] sm:$0xff]
        %v2343 = vld [vmem:[#allocation8 + $0x8c0] sm:$0xff]
        %v2344 = vld [vmem:[#allocation8 + $0x8c8] sm:$0xff]
        %v2345 = vld [vmem:[#allocation8 + $0x8d0] sm:$0xff]
        %v2346 = vld [vmem:[#allocation8 + $0x8d8] sm:$0xff]
        %v2347 = vld [vmem:[#allocation8 + $0x8e0] sm:$0xff]
        %v2348 = vld [vmem:[#allocation8 + $0x8e8] sm:$0xff]
        %v2349 = vld [vmem:[#allocation8 + $0x8f0] sm:$0xff]
        %v2350 = vld [vmem:[#allocation8 + $0x8f8] sm:$0xff]
        %v2351 = vld [vmem:[#allocation8 + $0x900] sm:$0xff]
        %v2352 = vld [vmem:[#allocation8 + $0x908] sm:$0xff]
        %v2353 = vld [vmem:[#allocation8 + $0x910] sm:$0xff]
        %v2354 = vld [vmem:[#allocation8 + $0x918] sm:$0xff]
        %v2355 = vld [vmem:[#allocation8 + $0x920] sm:$0xff]
        %v2356 = vld [vmem:[#allocation8 + $0x928] sm:$0xff]
        %v2357 = vld [vmem:[#allocation8 + $0x930] sm:$0xff]
        %v2358 = vld [vmem:[#allocation8 + $0x938] sm:$0xff]
        %v2359 = vld [vmem:[#allocation8 + $0x940] sm:$0xff]
        %v2360 = vld [vmem:[#allocation8 + $0x948] sm:$0xff]
        %v2361 = vld [vmem:[#allocation8 + $0x950] sm:$0xff]
        %v2362 = vld [vmem:[#allocation8 + $0x958] sm:$0xff]
        %v2363 = vld [vmem:[#allocation8 + $0x960] sm:$0xff]
        %v2364 = vld [vmem:[#allocation8 + $0x968] sm:$0xff]
        %v2365 = vld [vmem:[#allocation8 + $0x970] sm:$0xff]
        %v2366 = vld [vmem:[#allocation8 + $0x978] sm:$0xff]
        %v2367 = vld [vmem:[#allocation8 + $0x980] sm:$0xff]
        %v2368 = vld [vmem:[#allocation8 + $0x988] sm:$0xff]
        %v2369 = vld [vmem:[#allocation8 + $0x990] sm:$0xff]
        %v2370 = vld [vmem:[#allocation8 + $0x998] sm:$0xff]
        %v2371 = vld [vmem:[#allocation8 + $0x9a0] sm:$0xff]
        %v2372 = vld [vmem:[#allocation8 + $0x9a8] sm:$0xff]
        %v2373 = vld [vmem:[#allocation8 + $0x9b0] sm:$0xff]
        %v2374 = vld [vmem:[#allocation8 + $0x9b8] sm:$0xff]
        %v2375 = vld [vmem:[#allocation8 + $0x9c0] sm:$0xff]
        %v2376 = vld [vmem:[#allocation8 + $0x9c8] sm:$0xff]
        %v2377 = vld [vmem:[#allocation8 + $0x9d0] sm:$0xff]
        %v2378 = vld [vmem:[#allocation8 + $0x9d8] sm:$0xff]
        %v2379 = vld [vmem:[#allocation8 + $0x9e0] sm:$0xff]
        %v2380 = vld [vmem:[#allocation8 + $0x9e8] sm:$0xff]
        %v2381 = vld [vmem:[#allocation8 + $0x9f0] sm:$0xff]
        %v2382 = vld [vmem:[#allocation8 + $0x9f8] sm:$0xff]
        %v2383 = vld [vmem:[#allocation8 + $0xa00] sm:$0xff]
        %v2384 = vld [vmem:[#allocation8 + $0xa08] sm:$0xff]
        %v2385 = vld [vmem:[#allocation8 + $0xa10] sm:$0xff]
        %v2386 = vld [vmem:[#allocation8 + $0xa18] sm:$0xff]
        %v2387 = vld [vmem:[#allocation8 + $0xa20] sm:$0xff]
        %v2388 = vld [vmem:[#allocation8 + $0xa28] sm:$0xff]
        %v2389 = vld [vmem:[#allocation8 + $0xa30] sm:$0xff]
        %v2390 = vld [vmem:[#allocation8 + $0xa38] sm:$0xff]
        %v2391 = vld [vmem:[#allocation8 + $0xa40] sm:$0xff]
        %v2392 = vld [vmem:[#allocation8 + $0xa48] sm:$0xff]
        %v2393 = vld [vmem:[#allocation8 + $0xa50] sm:$0xff]
        %v2394 = vld [vmem:[#allocation8 + $0xa58] sm:$0xff]
        %v2395 = vld [vmem:[#allocation8 + $0xa60] sm:$0xff]
        %v2396 = vld [vmem:[#allocation8 + $0xa68] sm:$0xff]
        %v2397 = vld [vmem:[#allocation8 + $0xa70] sm:$0xff]
        %v2398 = vld [vmem:[#allocation8 + $0xa78] sm:$0xff]
        %v2399 = vld [vmem:[#allocation8 + $0xa80] sm:$0xff]
        %v2400 = vld [vmem:[#allocation8 + $0xa88] sm:$0xff]
        %v2401 = vld [vmem:[#allocation8 + $0xa90] sm:$0xff]
        %v2402 = vld [vmem:[#allocation8 + $0xa98] sm:$0xff]
        %v2403 = vld [vmem:[#allocation8 + $0xaa0] sm:$0xff]
        %v2404 = vld [vmem:[#allocation8 + $0xaa8] sm:$0xff]
        %v2405 = vld [vmem:[#allocation8 + $0xab0] sm:$0xff]
        %v2406 = vld [vmem:[#allocation8 + $0xab8] sm:$0xff]
        %v2407 = vld [vmem:[#allocation8 + $0xac0] sm:$0xff]
        %v2408 = vld [vmem:[#allocation8 + $0xac8] sm:$0xff]
        %v2409 = vld [vmem:[#allocation8 + $0xad0] sm:$0xff]
        %v2410 = vld [vmem:[#allocation8 + $0xad8] sm:$0xff]
        %v2411 = vld [vmem:[#allocation8 + $0xae0] sm:$0xff]
        %v2412 = vld [vmem:[#allocation8 + $0xae8] sm:$0xff]
        %v2413 = vld [vmem:[#allocation8 + $0xaf0] sm:$0xff]
        %v2414 = vld [vmem:[#allocation8 + $0xaf8] sm:$0xff]
        %v2415 = vld [vmem:[#allocation8 + $0xb00] sm:$0xff]
        %v2416 = vld [vmem:[#allocation8 + $0xb08] sm:$0xff]
        %v2417 = vld [vmem:[#allocation8 + $0xb10] sm:$0xff]
        %v2418 = vld [vmem:[#allocation8 + $0xb18] sm:$0xff]
        %v2419 = vld [vmem:[#allocation8 + $0xb20] sm:$0xff]
        %v2420 = vld [vmem:[#allocation8 + $0xb28] sm:$0xff]
        %v2421 = vld [vmem:[#allocation8 + $0xb30] sm:$0xff]
        %v2422 = vld [vmem:[#allocation8 + $0xb38] sm:$0xff]
        %v2423 = vld [vmem:[#allocation8 + $0xb40] sm:$0xff]
        %v2424 = vld [vmem:[#allocation8 + $0xb48] sm:$0xff]
        %v2425 = vld [vmem:[#allocation8 + $0xb50] sm:$0xff]
        %v2426 = vld [vmem:[#allocation8 + $0xb58] sm:$0xff]
        %v2427 = vld [vmem:[#allocation8 + $0xb60] sm:$0xff]
        %v2428 = vld [vmem:[#allocation8 + $0xb68] sm:$0xff]
        %v2429 = vld [vmem:[#allocation8 + $0xb70] sm:$0xff]
        %v2430 = vld [vmem:[#allocation8 + $0xb78] sm:$0xff]
        %v2431 = vld [vmem:[#allocation8 + $0xb80] sm:$0xff]
        %v2432 = vld [vmem:[#allocation8 + $0xb88] sm:$0xff]
        %v2433 = vld [vmem:[#allocation8 + $0xb90] sm:$0xff]
        %v2434 = vld [vmem:[#allocation8 + $0xb98] sm:$0xff]
        %v2435 = vld [vmem:[#allocation8 + $0xba0] sm:$0xff]
        %v2436 = vld [vmem:[#allocation8 + $0xba8] sm:$0xff]
        %v2437 = vld [vmem:[#allocation8 + $0xbb0] sm:$0xff]
        %v2438 = vld [vmem:[#allocation8 + $0xbb8] sm:$0xff]
        %v2439 = vld [vmem:[#allocation8 + $0xbc0] sm:$0xff]
        %v2440 = vld [vmem:[#allocation8 + $0xbc8] sm:$0xff]
        %v2441 = vld [vmem:[#allocation8 + $0xbd0] sm:$0xff]
        %v2442 = vld [vmem:[#allocation8 + $0xbd8] sm:$0xff]
        %v2443 = vld [vmem:[#allocation8 + $0xbe0] sm:$0xff]
        %v2444 = vld [vmem:[#allocation8 + $0xbe8] sm:$0xff]
        %v2445 = vld [vmem:[#allocation8 + $0xbf0] sm:$0xff]
        %v2446 = vld [vmem:[#allocation8 + $0xbf8] sm:$0xff]
        %v2447 = vld [vmem:[#allocation8 + $0xc00] sm:$0xff]
        %v2448 = vld [vmem:[#allocation8 + $0xc08] sm:$0xff]
        %v2449 = vld [vmem:[#allocation8 + $0xc10] sm:$0xff]
        %v2450 = vld [vmem:[#allocation8 + $0xc18] sm:$0xff]
        %v2451 = vld [vmem:[#allocation8 + $0xc20] sm:$0xff]
        %v2452 = vld [vmem:[#allocation8 + $0xc28] sm:$0xff]
        %v2453 = vld [vmem:[#allocation8 + $0xc30] sm:$0xff]
        %v2454 = vld [vmem:[#allocation8 + $0xc38] sm:$0xff]
        %v2455 = vld [vmem:[#allocation8 + $0xc40] sm:$0xff]
        %v2456 = vld [vmem:[#allocation8 + $0xc48] sm:$0xff]
        %v2457 = vld [vmem:[#allocation8 + $0xc50] sm:$0xff]
        %v2458 = vld [vmem:[#allocation8 + $0xc58] sm:$0xff]
        %v2459 = vld [vmem:[#allocation8 + $0xc60] sm:$0xff]
        %v2460 = vld [vmem:[#allocation8 + $0xc68] sm:$0xff]
        %v2461 = vld [vmem:[#allocation8 + $0xc70] sm:$0xff]
        %v2462 = vld [vmem:[#allocation8 + $0xc78] sm:$0xff]
        %v2463 = vld [vmem:[#allocation8 + $0xc80] sm:$0xff]
        %v2464 = vld [vmem:[#allocation8 + $0xc88] sm:$0xff]
        %v2465 = vld [vmem:[#allocation8 + $0xc90] sm:$0xff]
        %v2466 = vld [vmem:[#allocation8 + $0xc98] sm:$0xff]
        %v2467 = vld [vmem:[#allocation8 + $0xca0] sm:$0xff]
        %v2468 = vld [vmem:[#allocation8 + $0xca8] sm:$0xff]
        %v2469 = vld [vmem:[#allocation8 + $0xcb0] sm:$0xff]
        %v2470 = vld [vmem:[#allocation8 + $0xcb8] sm:$0xff]
        %v2471 = vld [vmem:[#allocation8 + $0xcc0] sm:$0xff]
        %v2472 = vld [vmem:[#allocation8 + $0xcc8] sm:$0xff]
        %v2473 = vld [vmem:[#allocation8 + $0xcd0] sm:$0xff]
        %v2474 = vld [vmem:[#allocation8 + $0xcd8] sm:$0xff]
        %v2475 = vld [vmem:[#allocation8 + $0xce0] sm:$0xff]
        %v2476 = vld [vmem:[#allocation8 + $0xce8] sm:$0xff]
        %v2477 = vld [vmem:[#allocation8 + $0xcf0] sm:$0xff]
        %v2478 = vld [vmem:[#allocation8 + $0xcf8] sm:$0xff]
        %v2479 = vld [vmem:[#allocation8 + $0xd00] sm:$0xff]
        %v2480 = vld [vmem:[#allocation8 + $0xd08] sm:$0xff]
        %v2481 = vld [vmem:[#allocation8 + $0xd10] sm:$0xff]
        %v2482 = vld [vmem:[#allocation8 + $0xd18] sm:$0xff]
        %v2483 = vld [vmem:[#allocation8 + $0xd20] sm:$0xff]
        %v2484 = vld [vmem:[#allocation8 + $0xd28] sm:$0xff]
        %v2485 = vld [vmem:[#allocation8 + $0xd30] sm:$0xff]
        %v2486 = vld [vmem:[#allocation8 + $0xd38] sm:$0xff]
        %v2487 = vld [vmem:[#allocation8 + $0xd40] sm:$0xff]
        %v2488 = vld [vmem:[#allocation8 + $0xd48] sm:$0xff]
        %v2489 = vld [vmem:[#allocation8 + $0xd50] sm:$0xff]
        %v2490 = vld [vmem:[#allocation8 + $0xd58] sm:$0xff]
        %v2491 = vld [vmem:[#allocation8 + $0xd60] sm:$0xff]
        %v2492 = vld [vmem:[#allocation8 + $0xd68] sm:$0xff]
        %v2493 = vld [vmem:[#allocation8 + $0xd70] sm:$0xff]
        %v2494 = vld [vmem:[#allocation8 + $0xd78] sm:$0xff]
        %v2495 = vld [vmem:[#allocation8 + $0xd80] sm:$0xff]
        %v2496 = vld [vmem:[#allocation8 + $0xd88] sm:$0xff]
        %v2497 = vld [vmem:[#allocation8 + $0xd90] sm:$0xff]
        %v2498 = vld [vmem:[#allocation8 + $0xd98] sm:$0xff]
        %v2499 = vld [vmem:[#allocation8 + $0xda0] sm:$0xff]
        %v2500 = vld [vmem:[#allocation8 + $0xda8] sm:$0xff]
        %v2501 = vld [vmem:[#allocation8 + $0xdb0] sm:$0xff]
        %v2502 = vld [vmem:[#allocation8 + $0xdb8] sm:$0xff]
        %v2503 = vld [vmem:[#allocation8 + $0xdc0] sm:$0xff]
        %v2504 = vld [vmem:[#allocation8 + $0xdc8] sm:$0xff]
        %v2505 = vld [vmem:[#allocation8 + $0xdd0] sm:$0xff]
        %v2506 = vld [vmem:[#allocation8 + $0xdd8] sm:$0xff]
        %v2507 = vld [vmem:[#allocation8 + $0xde0] sm:$0xff]
        %v2508 = vld [vmem:[#allocation8 + $0xde8] sm:$0xff]
        %v2509 = vld [vmem:[#allocation8 + $0xdf0] sm:$0xff]
        %v2510 = vld [vmem:[#allocation8 + $0xdf8] sm:$0xff]
        %v2511 = vld [vmem:[#allocation8 + $0xe00] sm:$0xff]
        %v2512 = vld [vmem:[#allocation8 + $0xe08] sm:$0xff]
        %v2513 = vld [vmem:[#allocation8 + $0xe10] sm:$0xff]
        %v2514 = vld [vmem:[#allocation8 + $0xe18] sm:$0xff]
        %v2515 = vld [vmem:[#allocation8 + $0xe20] sm:$0xff]
        %v2516 = vld [vmem:[#allocation8 + $0xe28] sm:$0xff]
        %v2517 = vld [vmem:[#allocation8 + $0xe30] sm:$0xff]
        %v2518 = vld [vmem:[#allocation8 + $0xe38] sm:$0xff]
        %v2519 = vld [vmem:[#allocation8 + $0xe40] sm:$0xff]
        %v2520 = vld [vmem:[#allocation8 + $0xe48] sm:$0xff]
        %v2521 = vld [vmem:[#allocation8 + $0xe50] sm:$0xff]
        %v2522 = vld [vmem:[#allocation8 + $0xe58] sm:$0xff]
        %v2523 = vld [vmem:[#allocation8 + $0xe60] sm:$0xff]
        %v2524 = vld [vmem:[#allocation8 + $0xe68] sm:$0xff]
        %v2525 = vld [vmem:[#allocation8 + $0xe70] sm:$0xff]
        %v2526 = vld [vmem:[#allocation8 + $0xe78] sm:$0xff]
        %v2527 = vld [vmem:[#allocation8 + $0xe80] sm:$0xff]
        %v2528 = vld [vmem:[#allocation8 + $0xe88] sm:$0xff]
        %v2529 = vld [vmem:[#allocation8 + $0xe90] sm:$0xff]
        %v2530 = vld [vmem:[#allocation8 + $0xe98] sm:$0xff]
        %v2531 = vld [vmem:[#allocation8 + $0xea0] sm:$0xff]
        %v2532 = vld [vmem:[#allocation8 + $0xea8] sm:$0xff]
        %v2533 = vld [vmem:[#allocation8 + $0xeb0] sm:$0xff]
        %v2534 = vld [vmem:[#allocation8 + $0xeb8] sm:$0xff]
        %v2535 = vld [vmem:[#allocation8 + $0xec0] sm:$0xff]
        %v2536 = vld [vmem:[#allocation8 + $0xec8] sm:$0xff]
        %v2537 = vld [vmem:[#allocation8 + $0xed0] sm:$0xff]
        %v2538 = vld [vmem:[#allocation8 + $0xed8] sm:$0xff]
        %v2539 = vld [vmem:[#allocation8 + $0xee0] sm:$0xff]
        %v2540 = vld [vmem:[#allocation8 + $0xee8] sm:$0xff]
        %v2541 = vld [vmem:[#allocation8 + $0xef0] sm:$0xff]
        %v2542 = vld [vmem:[#allocation8 + $0xef8] sm:$0xff]
        %v2543 = vld [vmem:[#allocation9] sm:$0xff]
        %v3024 = vunpack.c.l.b16 %v2063
        %v3025 = vunpack.c.h.b16 %v2063
        %v3026 = vunpack.c.l.b16 %v2064
        %v3027 = vunpack.c.h.b16 %v2064
        %v3028 = vunpack.c.l.b16 %v2065
        %v3029 = vunpack.c.h.b16 %v2065
        %v3030 = vunpack.c.l.b16 %v2066
        %v3031 = vunpack.c.h.b16 %v2066
        %v3032 = vunpack.c.l.b16 %v2067
        %v3033 = vunpack.c.h.b16 %v2067
        %v3034 = vunpack.c.l.b16 %v2068
        %v3035 = vunpack.c.h.b16 %v2068
        %v3036 = vunpack.c.l.b16 %v2069
        %v3037 = vunpack.c.h.b16 %v2069
        %v3038 = vunpack.c.l.b16 %v2070
        %v3039 = vunpack.c.h.b16 %v2070
        %v3040 = vunpack.c.l.b16 %v2071
        %v3041 = vunpack.c.h.b16 %v2071
        %v3042 = vunpack.c.l.b16 %v2072
        %v3043 = vunpack.c.h.b16 %v2072
        %v3044 = vunpack.c.l.b16 %v2073
        %v3045 = vunpack.c.h.b16 %v2073
        %v3046 = vunpack.c.l.b16 %v2074
        %v3047 = vunpack.c.h.b16 %v2074
        %v3048 = vunpack.c.l.b16 %v2075
        %v3049 = vunpack.c.h.b16 %v2075
        %v3050 = vunpack.c.l.b16 %v2076
        %v3051 = vunpack.c.h.b16 %v2076
        %v3052 = vunpack.c.l.b16 %v2077
        %v3053 = vunpack.c.h.b16 %v2077
        %v3054 = vunpack.c.l.b16 %v2078
        %v3055 = vunpack.c.h.b16 %v2078
        %v3056 = vunpack.c.l.b16 %v2079
        %v3057 = vunpack.c.h.b16 %v2079
        %v3058 = vunpack.c.l.b16 %v2080
        %v3059 = vunpack.c.h.b16 %v2080
        %v3060 = vunpack.c.l.b16 %v2081
        %v3061 = vunpack.c.h.b16 %v2081
        %v3062 = vunpack.c.l.b16 %v2082
        %v3063 = vunpack.c.h.b16 %v2082
        %v3064 = vunpack.c.l.b16 %v2083
        %v3065 = vunpack.c.h.b16 %v2083
        %v3066 = vunpack.c.l.b16 %v2084
        %v3067 = vunpack.c.h.b16 %v2084
        %v3068 = vunpack.c.l.b16 %v2085
        %v3069 = vunpack.c.h.b16 %v2085
        %v3070 = vunpack.c.l.b16 %v2086
        %v3071 = vunpack.c.h.b16 %v2086
        %v3072 = vunpack.c.l.b16 %v2087
        %v3073 = vunpack.c.h.b16 %v2087
        %v3074 = vunpack.c.l.b16 %v2088
        %v3075 = vunpack.c.h.b16 %v2088
        %v3076 = vunpack.c.l.b16 %v2089
        %v3077 = vunpack.c.h.b16 %v2089
        %v3078 = vunpack.c.l.b16 %v2090
        %v3079 = vunpack.c.h.b16 %v2090
        %v3080 = vunpack.c.l.b16 %v2091
        %v3081 = vunpack.c.h.b16 %v2091
        %v3082 = vunpack.c.l.b16 %v2092
        %v3083 = vunpack.c.h.b16 %v2092
        %v3084 = vunpack.c.l.b16 %v2093
        %v3085 = vunpack.c.h.b16 %v2093
        %v3086 = vunpack.c.l.b16 %v2094
        %v3087 = vunpack.c.h.b16 %v2094
        %v3088 = vunpack.c.l.b16 %v2095
        %v3089 = vunpack.c.h.b16 %v2095
        %v3090 = vunpack.c.l.b16 %v2096
        %v3091 = vunpack.c.h.b16 %v2096
        %v3092 = vunpack.c.l.b16 %v2097
        %v3093 = vunpack.c.h.b16 %v2097
        %v3094 = vunpack.c.l.b16 %v2098
        %v3095 = vunpack.c.h.b16 %v2098
        %v3096 = vunpack.c.l.b16 %v2099
        %v3097 = vunpack.c.h.b16 %v2099
        %v3098 = vunpack.c.l.b16 %v2100
        %v3099 = vunpack.c.h.b16 %v2100
        %v3100 = vunpack.c.l.b16 %v2101
        %v3101 = vunpack.c.h.b16 %v2101
        %v3102 = vunpack.c.l.b16 %v2102
        %v3103 = vunpack.c.h.b16 %v2102
        %v3104 = vunpack.c.l.b16 %v2103
        %v3105 = vunpack.c.h.b16 %v2103
        %v3106 = vunpack.c.l.b16 %v2104
        %v3107 = vunpack.c.h.b16 %v2104
        %v3108 = vunpack.c.l.b16 %v2105
        %v3109 = vunpack.c.h.b16 %v2105
        %v3110 = vunpack.c.l.b16 %v2106
        %v3111 = vunpack.c.h.b16 %v2106
        %v3112 = vunpack.c.l.b16 %v2107
        %v3113 = vunpack.c.h.b16 %v2107
        %v3114 = vunpack.c.l.b16 %v2108
        %v3115 = vunpack.c.h.b16 %v2108
        %v3116 = vunpack.c.l.b16 %v2109
        %v3117 = vunpack.c.h.b16 %v2109
        %v3118 = vunpack.c.l.b16 %v2110
        %v3119 = vunpack.c.h.b16 %v2110
        %v3120 = vunpack.c.l.b16 %v2111
        %v3121 = vunpack.c.h.b16 %v2111
        %v3122 = vunpack.c.l.b16 %v2112
        %v3123 = vunpack.c.h.b16 %v2112
        %v3124 = vunpack.c.l.b16 %v2113
        %v3125 = vunpack.c.h.b16 %v2113
        %v3126 = vunpack.c.l.b16 %v2114
        %v3127 = vunpack.c.h.b16 %v2114
        %v3128 = vunpack.c.l.b16 %v2115
        %v3129 = vunpack.c.h.b16 %v2115
        %v3130 = vunpack.c.l.b16 %v2116
        %v3131 = vunpack.c.h.b16 %v2116
        %v3132 = vunpack.c.l.b16 %v2117
        %v3133 = vunpack.c.h.b16 %v2117
        %v3134 = vunpack.c.l.b16 %v2118
        %v3135 = vunpack.c.h.b16 %v2118
        %v3136 = vunpack.c.l.b16 %v2119
        %v3137 = vunpack.c.h.b16 %v2119
        %v3138 = vunpack.c.l.b16 %v2120
        %v3139 = vunpack.c.h.b16 %v2120
        %v3140 = vunpack.c.l.b16 %v2121
        %v3141 = vunpack.c.h.b16 %v2121
        %v3142 = vunpack.c.l.b16 %v2122
        %v3143 = vunpack.c.h.b16 %v2122
        %v3144 = vunpack.c.l.b16 %v2123
        %v3145 = vunpack.c.h.b16 %v2123
        %v3146 = vunpack.c.l.b16 %v2124
        %v3147 = vunpack.c.h.b16 %v2124
        %v3148 = vunpack.c.l.b16 %v2125
        %v3149 = vunpack.c.h.b16 %v2125
        %v3150 = vunpack.c.l.b16 %v2126
        %v3151 = vunpack.c.h.b16 %v2126
        %v3152 = vunpack.c.l.b16 %v2127
        %v3153 = vunpack.c.h.b16 %v2127
        %v3154 = vunpack.c.l.b16 %v2128
        %v3155 = vunpack.c.h.b16 %v2128
        %v3156 = vunpack.c.l.b16 %v2129
        %v3157 = vunpack.c.h.b16 %v2129
        %v3158 = vunpack.c.l.b16 %v2130
        %v3159 = vunpack.c.h.b16 %v2130
        %v3160 = vunpack.c.l.b16 %v2131
        %v3161 = vunpack.c.h.b16 %v2131
        %v3162 = vunpack.c.l.b16 %v2132
        %v3163 = vunpack.c.h.b16 %v2132
        %v3164 = vunpack.c.l.b16 %v2133
        %v3165 = vunpack.c.h.b16 %v2133
        %v3166 = vunpack.c.l.b16 %v2134
        %v3167 = vunpack.c.h.b16 %v2134
        %v3168 = vunpack.c.l.b16 %v2135
        %v3169 = vunpack.c.h.b16 %v2135
        %v3170 = vunpack.c.l.b16 %v2136
        %v3171 = vunpack.c.h.b16 %v2136
        %v3172 = vunpack.c.l.b16 %v2137
        %v3173 = vunpack.c.h.b16 %v2137
        %v3174 = vunpack.c.l.b16 %v2138
        %v3175 = vunpack.c.h.b16 %v2138
        %v3176 = vunpack.c.l.b16 %v2139
        %v3177 = vunpack.c.h.b16 %v2139
        %v3178 = vunpack.c.l.b16 %v2140
        %v3179 = vunpack.c.h.b16 %v2140
        %v3180 = vunpack.c.l.b16 %v2141
        %v3181 = vunpack.c.h.b16 %v2141
        %v3182 = vunpack.c.l.b16 %v2142
        %v3183 = vunpack.c.h.b16 %v2142
        %v3184 = vunpack.c.l.b16 %v2143
        %v3185 = vunpack.c.h.b16 %v2143
        %v3186 = vunpack.c.l.b16 %v2144
        %v3187 = vunpack.c.h.b16 %v2144
        %v3188 = vunpack.c.l.b16 %v2145
        %v3189 = vunpack.c.h.b16 %v2145
        %v3190 = vunpack.c.l.b16 %v2146
        %v3191 = vunpack.c.h.b16 %v2146
        %v3192 = vunpack.c.l.b16 %v2147
        %v3193 = vunpack.c.h.b16 %v2147
        %v3194 = vunpack.c.l.b16 %v2148
        %v3195 = vunpack.c.h.b16 %v2148
        %v3196 = vunpack.c.l.b16 %v2149
        %v3197 = vunpack.c.h.b16 %v2149
        %v3198 = vunpack.c.l.b16 %v2150
        %v3199 = vunpack.c.h.b16 %v2150
        %v3200 = vunpack.c.l.b16 %v2151
        %v3201 = vunpack.c.h.b16 %v2151
        %v3202 = vunpack.c.l.b16 %v2152
        %v3203 = vunpack.c.h.b16 %v2152
        %v3204 = vunpack.c.l.b16 %v2153
        %v3205 = vunpack.c.h.b16 %v2153
        %v3206 = vunpack.c.l.b16 %v2154
        %v3207 = vunpack.c.h.b16 %v2154
        %v3208 = vunpack.c.l.b16 %v2155
        %v3209 = vunpack.c.h.b16 %v2155
        %v3210 = vunpack.c.l.b16 %v2156
        %v3211 = vunpack.c.h.b16 %v2156
        %v3212 = vunpack.c.l.b16 %v2157
        %v3213 = vunpack.c.h.b16 %v2157
        %v3214 = vunpack.c.l.b16 %v2158
        %v3215 = vunpack.c.h.b16 %v2158
        %v3216 = vunpack.c.l.b16 %v2159
        %v3217 = vunpack.c.h.b16 %v2159
        %v3218 = vunpack.c.l.b16 %v2160
        %v3219 = vunpack.c.h.b16 %v2160
        %v3220 = vunpack.c.l.b16 %v2161
        %v3221 = vunpack.c.h.b16 %v2161
        %v3222 = vunpack.c.l.b16 %v2162
        %v3223 = vunpack.c.h.b16 %v2162
        %v3224 = vunpack.c.l.b16 %v2163
        %v3225 = vunpack.c.h.b16 %v2163
        %v3226 = vunpack.c.l.b16 %v2164
        %v3227 = vunpack.c.h.b16 %v2164
        %v3228 = vunpack.c.l.b16 %v2165
        %v3229 = vunpack.c.h.b16 %v2165
        %v3230 = vunpack.c.l.b16 %v2166
        %v3231 = vunpack.c.h.b16 %v2166
        %v3232 = vunpack.c.l.b16 %v2167
        %v3233 = vunpack.c.h.b16 %v2167
        %v3234 = vunpack.c.l.b16 %v2168
        %v3235 = vunpack.c.h.b16 %v2168
        %v3236 = vunpack.c.l.b16 %v2169
        %v3237 = vunpack.c.h.b16 %v2169
        %v3238 = vunpack.c.l.b16 %v2170
        %v3239 = vunpack.c.h.b16 %v2170
        %v3240 = vunpack.c.l.b16 %v2171
        %v3241 = vunpack.c.h.b16 %v2171
        %v3242 = vunpack.c.l.b16 %v2172
        %v3243 = vunpack.c.h.b16 %v2172
        %v3244 = vunpack.c.l.b16 %v2173
        %v3245 = vunpack.c.h.b16 %v2173
        %v3246 = vunpack.c.l.b16 %v2174
        %v3247 = vunpack.c.h.b16 %v2174
        %v3248 = vunpack.c.l.b16 %v2175
        %v3249 = vunpack.c.h.b16 %v2175
        %v3250 = vunpack.c.l.b16 %v2176
        %v3251 = vunpack.c.h.b16 %v2176
        %v3252 = vunpack.c.l.b16 %v2177
        %v3253 = vunpack.c.h.b16 %v2177
        %v3254 = vunpack.c.l.b16 %v2178
        %v3255 = vunpack.c.h.b16 %v2178
        %v3256 = vunpack.c.l.b16 %v2179
        %v3257 = vunpack.c.h.b16 %v2179
        %v3258 = vunpack.c.l.b16 %v2180
        %v3259 = vunpack.c.h.b16 %v2180
        %v3260 = vunpack.c.l.b16 %v2181
        %v3261 = vunpack.c.h.b16 %v2181
        %v3262 = vunpack.c.l.b16 %v2182
        %v3263 = vunpack.c.h.b16 %v2182
        %v3264 = vunpack.c.l.b16 %v2183
        %v3265 = vunpack.c.h.b16 %v2183
        %v3266 = vunpack.c.l.b16 %v2184
        %v3267 = vunpack.c.h.b16 %v2184
        %v3268 = vunpack.c.l.b16 %v2185
        %v3269 = vunpack.c.h.b16 %v2185
        %v3270 = vunpack.c.l.b16 %v2186
        %v3271 = vunpack.c.h.b16 %v2186
        %v3272 = vunpack.c.l.b16 %v2187
        %v3273 = vunpack.c.h.b16 %v2187
        %v3274 = vunpack.c.l.b16 %v2188
        %v3275 = vunpack.c.h.b16 %v2188
        %v3276 = vunpack.c.l.b16 %v2189
        %v3277 = vunpack.c.h.b16 %v2189
        %v3278 = vunpack.c.l.b16 %v2190
        %v3279 = vunpack.c.h.b16 %v2190
        %v3280 = vunpack.c.l.b16 %v2191
        %v3281 = vunpack.c.h.b16 %v2191
        %v3282 = vunpack.c.l.b16 %v2192
        %v3283 = vunpack.c.h.b16 %v2192
        %v3284 = vunpack.c.l.b16 %v2193
        %v3285 = vunpack.c.h.b16 %v2193
        %v3286 = vunpack.c.l.b16 %v2194
        %v3287 = vunpack.c.h.b16 %v2194
        %v3288 = vunpack.c.l.b16 %v2195
        %v3289 = vunpack.c.h.b16 %v2195
        %v3290 = vunpack.c.l.b16 %v2196
        %v3291 = vunpack.c.h.b16 %v2196
        %v3292 = vunpack.c.l.b16 %v2197
        %v3293 = vunpack.c.h.b16 %v2197
        %v3294 = vunpack.c.l.b16 %v2198
        %v3295 = vunpack.c.h.b16 %v2198
        %v3296 = vunpack.c.l.b16 %v2199
        %v3297 = vunpack.c.h.b16 %v2199
        %v3298 = vunpack.c.l.b16 %v2200
        %v3299 = vunpack.c.h.b16 %v2200
        %v3300 = vunpack.c.l.b16 %v2201
        %v3301 = vunpack.c.h.b16 %v2201
        %v3302 = vunpack.c.l.b16 %v2202
        %v3303 = vunpack.c.h.b16 %v2202
        %v3304 = vunpack.c.l.b16 %v2203
        %v3305 = vunpack.c.h.b16 %v2203
        %v3306 = vunpack.c.l.b16 %v2204
        %v3307 = vunpack.c.h.b16 %v2204
        %v3308 = vunpack.c.l.b16 %v2205
        %v3309 = vunpack.c.h.b16 %v2205
        %v3310 = vunpack.c.l.b16 %v2206
        %v3311 = vunpack.c.h.b16 %v2206
        %v3312 = vunpack.c.l.b16 %v2207
        %v3313 = vunpack.c.h.b16 %v2207
        %v3314 = vunpack.c.l.b16 %v2208
        %v3315 = vunpack.c.h.b16 %v2208
        %v3316 = vunpack.c.l.b16 %v2209
        %v3317 = vunpack.c.h.b16 %v2209
        %v3318 = vunpack.c.l.b16 %v2210
        %v3319 = vunpack.c.h.b16 %v2210
        %v3320 = vunpack.c.l.b16 %v2211
        %v3321 = vunpack.c.h.b16 %v2211
        %v3322 = vunpack.c.l.b16 %v2212
        %v3323 = vunpack.c.h.b16 %v2212
        %v3324 = vunpack.c.l.b16 %v2213
        %v3325 = vunpack.c.h.b16 %v2213
        %v3326 = vunpack.c.l.b16 %v2214
        %v3327 = vunpack.c.h.b16 %v2214
        %v3328 = vunpack.c.l.b16 %v2215
        %v3329 = vunpack.c.h.b16 %v2215
        %v3330 = vunpack.c.l.b16 %v2216
        %v3331 = vunpack.c.h.b16 %v2216
        %v3332 = vunpack.c.l.b16 %v2217
        %v3333 = vunpack.c.h.b16 %v2217
        %v3334 = vunpack.c.l.b16 %v2218
        %v3335 = vunpack.c.h.b16 %v2218
        %v3336 = vunpack.c.l.b16 %v2219
        %v3337 = vunpack.c.h.b16 %v2219
        %v3338 = vunpack.c.l.b16 %v2220
        %v3339 = vunpack.c.h.b16 %v2220
        %v3340 = vunpack.c.l.b16 %v2221
        %v3341 = vunpack.c.h.b16 %v2221
        %v3342 = vunpack.c.l.b16 %v2222
        %v3343 = vunpack.c.h.b16 %v2222
        %v3344 = vunpack.c.l.b16 %v2223
        %v3345 = vunpack.c.h.b16 %v2223
        %v3346 = vunpack.c.l.b16 %v2224
        %v3347 = vunpack.c.h.b16 %v2224
        %v3348 = vunpack.c.l.b16 %v2225
        %v3349 = vunpack.c.h.b16 %v2225
        %v3350 = vunpack.c.l.b16 %v2226
        %v3351 = vunpack.c.h.b16 %v2226
        %v3352 = vunpack.c.l.b16 %v2227
        %v3353 = vunpack.c.h.b16 %v2227
        %v3354 = vunpack.c.l.b16 %v2228
        %v3355 = vunpack.c.h.b16 %v2228
        %v3356 = vunpack.c.l.b16 %v2229
        %v3357 = vunpack.c.h.b16 %v2229
        %v3358 = vunpack.c.l.b16 %v2230
        %v3359 = vunpack.c.h.b16 %v2230
        %v3360 = vunpack.c.l.b16 %v2231
        %v3361 = vunpack.c.h.b16 %v2231
        %v3362 = vunpack.c.l.b16 %v2232
        %v3363 = vunpack.c.h.b16 %v2232
        %v3364 = vunpack.c.l.b16 %v2233
        %v3365 = vunpack.c.h.b16 %v2233
        %v3366 = vunpack.c.l.b16 %v2234
        %v3367 = vunpack.c.h.b16 %v2234
        %v3368 = vunpack.c.l.b16 %v2235
        %v3369 = vunpack.c.h.b16 %v2235
        %v3370 = vunpack.c.l.b16 %v2236
        %v3371 = vunpack.c.h.b16 %v2236
        %v3372 = vunpack.c.l.b16 %v2237
        %v3373 = vunpack.c.h.b16 %v2237
        %v3374 = vunpack.c.l.b16 %v2238
        %v3375 = vunpack.c.h.b16 %v2238
        %v3376 = vunpack.c.l.b16 %v2239
        %v3377 = vunpack.c.h.b16 %v2239
        %v3378 = vunpack.c.l.b16 %v2240
        %v3379 = vunpack.c.h.b16 %v2240
        %v3380 = vunpack.c.l.b16 %v2241
        %v3381 = vunpack.c.h.b16 %v2241
        %v3382 = vunpack.c.l.b16 %v2242
        %v3383 = vunpack.c.h.b16 %v2242
        %v3384 = vunpack.c.l.b16 %v2243
        %v3385 = vunpack.c.h.b16 %v2243
        %v3386 = vunpack.c.l.b16 %v2244
        %v3387 = vunpack.c.h.b16 %v2244
        %v3388 = vunpack.c.l.b16 %v2245
        %v3389 = vunpack.c.h.b16 %v2245
        %v3390 = vunpack.c.l.b16 %v2246
        %v3391 = vunpack.c.h.b16 %v2246
        %v3392 = vunpack.c.l.b16 %v2247
        %v3393 = vunpack.c.h.b16 %v2247
        %v3394 = vunpack.c.l.b16 %v2248
        %v3395 = vunpack.c.h.b16 %v2248
        %v3396 = vunpack.c.l.b16 %v2249
        %v3397 = vunpack.c.h.b16 %v2249
        %v3398 = vunpack.c.l.b16 %v2250
        %v3399 = vunpack.c.h.b16 %v2250
        %v3400 = vunpack.c.l.b16 %v2251
        %v3401 = vunpack.c.h.b16 %v2251
        %v3402 = vunpack.c.l.b16 %v2252
        %v3403 = vunpack.c.h.b16 %v2252
        %v3404 = vunpack.c.l.b16 %v2253
        %v3405 = vunpack.c.h.b16 %v2253
        %v3406 = vunpack.c.l.b16 %v2254
        %v3407 = vunpack.c.h.b16 %v2254
        %v3408 = vunpack.c.l.b16 %v2255
        %v3409 = vunpack.c.h.b16 %v2255
        %v3410 = vunpack.c.l.b16 %v2256
        %v3411 = vunpack.c.h.b16 %v2256
        %v3412 = vunpack.c.l.b16 %v2257
        %v3413 = vunpack.c.h.b16 %v2257
        %v3414 = vunpack.c.l.b16 %v2258
        %v3415 = vunpack.c.h.b16 %v2258
        %v3416 = vunpack.c.l.b16 %v2259
        %v3417 = vunpack.c.h.b16 %v2259
        %v3418 = vunpack.c.l.b16 %v2260
        %v3419 = vunpack.c.h.b16 %v2260
        %v3420 = vunpack.c.l.b16 %v2261
        %v3421 = vunpack.c.h.b16 %v2261
        %v3422 = vunpack.c.l.b16 %v2262
        %v3423 = vunpack.c.h.b16 %v2262
        %v3424 = vunpack.c.l.b16 %v2263
        %v3425 = vunpack.c.h.b16 %v2263
        %v3426 = vunpack.c.l.b16 %v2264
        %v3427 = vunpack.c.h.b16 %v2264
        %v3428 = vunpack.c.l.b16 %v2265
        %v3429 = vunpack.c.h.b16 %v2265
        %v3430 = vunpack.c.l.b16 %v2266
        %v3431 = vunpack.c.h.b16 %v2266
        %v3432 = vunpack.c.l.b16 %v2267
        %v3433 = vunpack.c.h.b16 %v2267
        %v3434 = vunpack.c.l.b16 %v2268
        %v3435 = vunpack.c.h.b16 %v2268
        %v3436 = vunpack.c.l.b16 %v2269
        %v3437 = vunpack.c.h.b16 %v2269
        %v3438 = vunpack.c.l.b16 %v2270
        %v3439 = vunpack.c.h.b16 %v2270
        %v3440 = vunpack.c.l.b16 %v2271
        %v3441 = vunpack.c.h.b16 %v2271
        %v3442 = vunpack.c.l.b16 %v2272
        %v3443 = vunpack.c.h.b16 %v2272
        %v3444 = vunpack.c.l.b16 %v2273
        %v3445 = vunpack.c.h.b16 %v2273
        %v3446 = vunpack.c.l.b16 %v2274
        %v3447 = vunpack.c.h.b16 %v2274
        %v3448 = vunpack.c.l.b16 %v2275
        %v3449 = vunpack.c.h.b16 %v2275
        %v3450 = vunpack.c.l.b16 %v2276
        %v3451 = vunpack.c.h.b16 %v2276
        %v3452 = vunpack.c.l.b16 %v2277
        %v3453 = vunpack.c.h.b16 %v2277
        %v3454 = vunpack.c.l.b16 %v2278
        %v3455 = vunpack.c.h.b16 %v2278
        %v3456 = vunpack.c.l.b16 %v2279
        %v3457 = vunpack.c.h.b16 %v2279
        %v3458 = vunpack.c.l.b16 %v2280
        %v3459 = vunpack.c.h.b16 %v2280
        %v3460 = vunpack.c.l.b16 %v2281
        %v3461 = vunpack.c.h.b16 %v2281
        %v3462 = vunpack.c.l.b16 %v2282
        %v3463 = vunpack.c.h.b16 %v2282
        %v3464 = vunpack.c.l.b16 %v2283
        %v3465 = vunpack.c.h.b16 %v2283
        %v3466 = vunpack.c.l.b16 %v2284
        %v3467 = vunpack.c.h.b16 %v2284
        %v3468 = vunpack.c.l.b16 %v2285
        %v3469 = vunpack.c.h.b16 %v2285
        %v3470 = vunpack.c.l.b16 %v2286
        %v3471 = vunpack.c.h.b16 %v2286
        %v3472 = vunpack.c.l.b16 %v2287
        %v3473 = vunpack.c.h.b16 %v2287
        %v3474 = vunpack.c.l.b16 %v2288
        %v3475 = vunpack.c.h.b16 %v2288
        %v3476 = vunpack.c.l.b16 %v2289
        %v3477 = vunpack.c.h.b16 %v2289
        %v3478 = vunpack.c.l.b16 %v2290
        %v3479 = vunpack.c.h.b16 %v2290
        %v3480 = vunpack.c.l.b16 %v2291
        %v3481 = vunpack.c.h.b16 %v2291
        %v3482 = vunpack.c.l.b16 %v2292
        %v3483 = vunpack.c.h.b16 %v2292
        %v3484 = vunpack.c.l.b16 %v2293
        %v3485 = vunpack.c.h.b16 %v2293
        %v3486 = vunpack.c.l.b16 %v2294
        %v3487 = vunpack.c.h.b16 %v2294
        %v3488 = vunpack.c.l.b16 %v2295
        %v3489 = vunpack.c.h.b16 %v2295
        %v3490 = vunpack.c.l.b16 %v2296
        %v3491 = vunpack.c.h.b16 %v2296
        %v3492 = vunpack.c.l.b16 %v2297
        %v3493 = vunpack.c.h.b16 %v2297
        %v3494 = vunpack.c.l.b16 %v2298
        %v3495 = vunpack.c.h.b16 %v2298
        %v3496 = vunpack.c.l.b16 %v2299
        %v3497 = vunpack.c.h.b16 %v2299
        %v3498 = vunpack.c.l.b16 %v2300
        %v3499 = vunpack.c.h.b16 %v2300
        %v3500 = vunpack.c.l.b16 %v2301
        %v3501 = vunpack.c.h.b16 %v2301
        %v3502 = vunpack.c.l.b16 %v2302
        %v3503 = vunpack.c.h.b16 %v2302
        %v3504 = vunpack.c.l.b16 %v2303
        %v3505 = vunpack.c.h.b16 %v2303
        %v3506 = vunpack.c.l.b16 %v2304
        %v3507 = vunpack.c.h.b16 %v2304
        %v3508 = vunpack.c.l.b16 %v2305
        %v3509 = vunpack.c.h.b16 %v2305
        %v3510 = vunpack.c.l.b16 %v2306
        %v3511 = vunpack.c.h.b16 %v2306
        %v3512 = vunpack.c.l.b16 %v2307
        %v3513 = vunpack.c.h.b16 %v2307
        %v3514 = vunpack.c.l.b16 %v2308
        %v3515 = vunpack.c.h.b16 %v2308
        %v3516 = vunpack.c.l.b16 %v2309
        %v3517 = vunpack.c.h.b16 %v2309
        %v3518 = vunpack.c.l.b16 %v2310
        %v3519 = vunpack.c.h.b16 %v2310
        %v3520 = vunpack.c.l.b16 %v2311
        %v3521 = vunpack.c.h.b16 %v2311
        %v3522 = vunpack.c.l.b16 %v2312
        %v3523 = vunpack.c.h.b16 %v2312
        %v3524 = vunpack.c.l.b16 %v2313
        %v3525 = vunpack.c.h.b16 %v2313
        %v3526 = vunpack.c.l.b16 %v2314
        %v3527 = vunpack.c.h.b16 %v2314
        %v3528 = vunpack.c.l.b16 %v2315
        %v3529 = vunpack.c.h.b16 %v2315
        %v3530 = vunpack.c.l.b16 %v2316
        %v3531 = vunpack.c.h.b16 %v2316
        %v3532 = vunpack.c.l.b16 %v2317
        %v3533 = vunpack.c.h.b16 %v2317
        %v3534 = vunpack.c.l.b16 %v2318
        %v3535 = vunpack.c.h.b16 %v2318
        %v3536 = vunpack.c.l.b16 %v2319
        %v3537 = vunpack.c.h.b16 %v2319
        %v3538 = vunpack.c.l.b16 %v2320
        %v3539 = vunpack.c.h.b16 %v2320
        %v3540 = vunpack.c.l.b16 %v2321
        %v3541 = vunpack.c.h.b16 %v2321
        %v3542 = vunpack.c.l.b16 %v2322
        %v3543 = vunpack.c.h.b16 %v2322
        %v3544 = vunpack.c.l.b16 %v2323
        %v3545 = vunpack.c.h.b16 %v2323
        %v3546 = vunpack.c.l.b16 %v2324
        %v3547 = vunpack.c.h.b16 %v2324
        %v3548 = vunpack.c.l.b16 %v2325
        %v3549 = vunpack.c.h.b16 %v2325
        %v3550 = vunpack.c.l.b16 %v2326
        %v3551 = vunpack.c.h.b16 %v2326
        %v3552 = vunpack.c.l.b16 %v2327
        %v3553 = vunpack.c.h.b16 %v2327
        %v3554 = vunpack.c.l.b16 %v2328
        %v3555 = vunpack.c.h.b16 %v2328
        %v3556 = vunpack.c.l.b16 %v2329
        %v3557 = vunpack.c.h.b16 %v2329
        %v3558 = vunpack.c.l.b16 %v2330
        %v3559 = vunpack.c.h.b16 %v2330
        %v3560 = vunpack.c.l.b16 %v2331
        %v3561 = vunpack.c.h.b16 %v2331
        %v3562 = vunpack.c.l.b16 %v2332
        %v3563 = vunpack.c.h.b16 %v2332
        %v3564 = vunpack.c.l.b16 %v2333
        %v3565 = vunpack.c.h.b16 %v2333
        %v3566 = vunpack.c.l.b16 %v2334
        %v3567 = vunpack.c.h.b16 %v2334
        %v3568 = vunpack.c.l.b16 %v2335
        %v3569 = vunpack.c.h.b16 %v2335
        %v3570 = vunpack.c.l.b16 %v2336
        %v3571 = vunpack.c.h.b16 %v2336
        %v3572 = vunpack.c.l.b16 %v2337
        %v3573 = vunpack.c.h.b16 %v2337
        %v3574 = vunpack.c.l.b16 %v2338
        %v3575 = vunpack.c.h.b16 %v2338
        %v3576 = vunpack.c.l.b16 %v2339
        %v3577 = vunpack.c.h.b16 %v2339
        %v3578 = vunpack.c.l.b16 %v2340
        %v3579 = vunpack.c.h.b16 %v2340
        %v3580 = vunpack.c.l.b16 %v2341
        %v3581 = vunpack.c.h.b16 %v2341
        %v3582 = vunpack.c.l.b16 %v2342
        %v3583 = vunpack.c.h.b16 %v2342
        %v3584 = vunpack.c.l.b16 %v2343
        %v3585 = vunpack.c.h.b16 %v2343
        %v3586 = vunpack.c.l.b16 %v2344
        %v3587 = vunpack.c.h.b16 %v2344
        %v3588 = vunpack.c.l.b16 %v2345
        %v3589 = vunpack.c.h.b16 %v2345
        %v3590 = vunpack.c.l.b16 %v2346
        %v3591 = vunpack.c.h.b16 %v2346
        %v3592 = vunpack.c.l.b16 %v2347
        %v3593 = vunpack.c.h.b16 %v2347
        %v3594 = vunpack.c.l.b16 %v2348
        %v3595 = vunpack.c.h.b16 %v2348
        %v3596 = vunpack.c.l.b16 %v2349
        %v3597 = vunpack.c.h.b16 %v2349
        %v3598 = vunpack.c.l.b16 %v2350
        %v3599 = vunpack.c.h.b16 %v2350
        %v3600 = vunpack.c.l.b16 %v2351
        %v3601 = vunpack.c.h.b16 %v2351
        %v3602 = vunpack.c.l.b16 %v2352
        %v3603 = vunpack.c.h.b16 %v2352
        %v3604 = vunpack.c.l.b16 %v2353
        %v3605 = vunpack.c.h.b16 %v2353
        %v3606 = vunpack.c.l.b16 %v2354
        %v3607 = vunpack.c.h.b16 %v2354
        %v3608 = vunpack.c.l.b16 %v2355
        %v3609 = vunpack.c.h.b16 %v2355
        %v3610 = vunpack.c.l.b16 %v2356
        %v3611 = vunpack.c.h.b16 %v2356
        %v3612 = vunpack.c.l.b16 %v2357
        %v3613 = vunpack.c.h.b16 %v2357
        %v3614 = vunpack.c.l.b16 %v2358
        %v3615 = vunpack.c.h.b16 %v2358
        %v3616 = vunpack.c.l.b16 %v2359
        %v3617 = vunpack.c.h.b16 %v2359
        %v3618 = vunpack.c.l.b16 %v2360
        %v3619 = vunpack.c.h.b16 %v2360
        %v3620 = vunpack.c.l.b16 %v2361
        %v3621 = vunpack.c.h.b16 %v2361
        %v3622 = vunpack.c.l.b16 %v2362
        %v3623 = vunpack.c.h.b16 %v2362
        %v3624 = vunpack.c.l.b16 %v2363
        %v3625 = vunpack.c.h.b16 %v2363
        %v3626 = vunpack.c.l.b16 %v2364
        %v3627 = vunpack.c.h.b16 %v2364
        %v3628 = vunpack.c.l.b16 %v2365
        %v3629 = vunpack.c.h.b16 %v2365
        %v3630 = vunpack.c.l.b16 %v2366
        %v3631 = vunpack.c.h.b16 %v2366
        %v3632 = vunpack.c.l.b16 %v2367
        %v3633 = vunpack.c.h.b16 %v2367
        %v3634 = vunpack.c.l.b16 %v2368
        %v3635 = vunpack.c.h.b16 %v2368
        %v3636 = vunpack.c.l.b16 %v2369
        %v3637 = vunpack.c.h.b16 %v2369
        %v3638 = vunpack.c.l.b16 %v2370
        %v3639 = vunpack.c.h.b16 %v2370
        %v3640 = vunpack.c.l.b16 %v2371
        %v3641 = vunpack.c.h.b16 %v2371
        %v3642 = vunpack.c.l.b16 %v2372
        %v3643 = vunpack.c.h.b16 %v2372
        %v3644 = vunpack.c.l.b16 %v2373
        %v3645 = vunpack.c.h.b16 %v2373
        %v3646 = vunpack.c.l.b16 %v2374
        %v3647 = vunpack.c.h.b16 %v2374
        %v3648 = vunpack.c.l.b16 %v2375
        %v3649 = vunpack.c.h.b16 %v2375
        %v3650 = vunpack.c.l.b16 %v2376
        %v3651 = vunpack.c.h.b16 %v2376
        %v3652 = vunpack.c.l.b16 %v2377
        %v3653 = vunpack.c.h.b16 %v2377
        %v3654 = vunpack.c.l.b16 %v2378
        %v3655 = vunpack.c.h.b16 %v2378
        %v3656 = vunpack.c.l.b16 %v2379
        %v3657 = vunpack.c.h.b16 %v2379
        %v3658 = vunpack.c.l.b16 %v2380
        %v3659 = vunpack.c.h.b16 %v2380
        %v3660 = vunpack.c.l.b16 %v2381
        %v3661 = vunpack.c.h.b16 %v2381
        %v3662 = vunpack.c.l.b16 %v2382
        %v3663 = vunpack.c.h.b16 %v2382
        %v3664 = vunpack.c.l.b16 %v2383
        %v3665 = vunpack.c.h.b16 %v2383
        %v3666 = vunpack.c.l.b16 %v2384
        %v3667 = vunpack.c.h.b16 %v2384
        %v3668 = vunpack.c.l.b16 %v2385
        %v3669 = vunpack.c.h.b16 %v2385
        %v3670 = vunpack.c.l.b16 %v2386
        %v3671 = vunpack.c.h.b16 %v2386
        %v3672 = vunpack.c.l.b16 %v2387
        %v3673 = vunpack.c.h.b16 %v2387
        %v3674 = vunpack.c.l.b16 %v2388
        %v3675 = vunpack.c.h.b16 %v2388
        %v3676 = vunpack.c.l.b16 %v2389
        %v3677 = vunpack.c.h.b16 %v2389
        %v3678 = vunpack.c.l.b16 %v2390
        %v3679 = vunpack.c.h.b16 %v2390
        %v3680 = vunpack.c.l.b16 %v2391
        %v3681 = vunpack.c.h.b16 %v2391
        %v3682 = vunpack.c.l.b16 %v2392
        %v3683 = vunpack.c.h.b16 %v2392
        %v3684 = vunpack.c.l.b16 %v2393
        %v3685 = vunpack.c.h.b16 %v2393
        %v3686 = vunpack.c.l.b16 %v2394
        %v3687 = vunpack.c.h.b16 %v2394
        %v3688 = vunpack.c.l.b16 %v2395
        %v3689 = vunpack.c.h.b16 %v2395
        %v3690 = vunpack.c.l.b16 %v2396
        %v3691 = vunpack.c.h.b16 %v2396
        %v3692 = vunpack.c.l.b16 %v2397
        %v3693 = vunpack.c.h.b16 %v2397
        %v3694 = vunpack.c.l.b16 %v2398
        %v3695 = vunpack.c.h.b16 %v2398
        %v3696 = vunpack.c.l.b16 %v2399
        %v3697 = vunpack.c.h.b16 %v2399
        %v3698 = vunpack.c.l.b16 %v2400
        %v3699 = vunpack.c.h.b16 %v2400
        %v3700 = vunpack.c.l.b16 %v2401
        %v3701 = vunpack.c.h.b16 %v2401
        %v3702 = vunpack.c.l.b16 %v2402
        %v3703 = vunpack.c.h.b16 %v2402
        %v3704 = vunpack.c.l.b16 %v2403
        %v3705 = vunpack.c.h.b16 %v2403
        %v3706 = vunpack.c.l.b16 %v2404
        %v3707 = vunpack.c.h.b16 %v2404
        %v3708 = vunpack.c.l.b16 %v2405
        %v3709 = vunpack.c.h.b16 %v2405
        %v3710 = vunpack.c.l.b16 %v2406
        %v3711 = vunpack.c.h.b16 %v2406
        %v3712 = vunpack.c.l.b16 %v2407
        %v3713 = vunpack.c.h.b16 %v2407
        %v3714 = vunpack.c.l.b16 %v2408
        %v3715 = vunpack.c.h.b16 %v2408
        %v3716 = vunpack.c.l.b16 %v2409
        %v3717 = vunpack.c.h.b16 %v2409
        %v3718 = vunpack.c.l.b16 %v2410
        %v3719 = vunpack.c.h.b16 %v2410
        %v3720 = vunpack.c.l.b16 %v2411
        %v3721 = vunpack.c.h.b16 %v2411
        %v3722 = vunpack.c.l.b16 %v2412
        %v3723 = vunpack.c.h.b16 %v2412
        %v3724 = vunpack.c.l.b16 %v2413
        %v3725 = vunpack.c.h.b16 %v2413
        %v3726 = vunpack.c.l.b16 %v2414
        %v3727 = vunpack.c.h.b16 %v2414
        %v3728 = vunpack.c.l.b16 %v2415
        %v3729 = vunpack.c.h.b16 %v2415
        %v3730 = vunpack.c.l.b16 %v2416
        %v3731 = vunpack.c.h.b16 %v2416
        %v3732 = vunpack.c.l.b16 %v2417
        %v3733 = vunpack.c.h.b16 %v2417
        %v3734 = vunpack.c.l.b16 %v2418
        %v3735 = vunpack.c.h.b16 %v2418
        %v3736 = vunpack.c.l.b16 %v2419
        %v3737 = vunpack.c.h.b16 %v2419
        %v3738 = vunpack.c.l.b16 %v2420
        %v3739 = vunpack.c.h.b16 %v2420
        %v3740 = vunpack.c.l.b16 %v2421
        %v3741 = vunpack.c.h.b16 %v2421
        %v3742 = vunpack.c.l.b16 %v2422
        %v3743 = vunpack.c.h.b16 %v2422
        %v3744 = vunpack.c.l.b16 %v2423
        %v3745 = vunpack.c.h.b16 %v2423
        %v3746 = vunpack.c.l.b16 %v2424
        %v3747 = vunpack.c.h.b16 %v2424
        %v3748 = vunpack.c.l.b16 %v2425
        %v3749 = vunpack.c.h.b16 %v2425
        %v3750 = vunpack.c.l.b16 %v2426
        %v3751 = vunpack.c.h.b16 %v2426
        %v3752 = vunpack.c.l.b16 %v2427
        %v3753 = vunpack.c.h.b16 %v2427
        %v3754 = vunpack.c.l.b16 %v2428
        %v3755 = vunpack.c.h.b16 %v2428
        %v3756 = vunpack.c.l.b16 %v2429
        %v3757 = vunpack.c.h.b16 %v2429
        %v3758 = vunpack.c.l.b16 %v2430
        %v3759 = vunpack.c.h.b16 %v2430
        %v3760 = vunpack.c.l.b16 %v2431
        %v3761 = vunpack.c.h.b16 %v2431
        %v3762 = vunpack.c.l.b16 %v2432
        %v3763 = vunpack.c.h.b16 %v2432
        %v3764 = vunpack.c.l.b16 %v2433
        %v3765 = vunpack.c.h.b16 %v2433
        %v3766 = vunpack.c.l.b16 %v2434
        %v3767 = vunpack.c.h.b16 %v2434
        %v3768 = vunpack.c.l.b16 %v2435
        %v3769 = vunpack.c.h.b16 %v2435
        %v3770 = vunpack.c.l.b16 %v2436
        %v3771 = vunpack.c.h.b16 %v2436
        %v3772 = vunpack.c.l.b16 %v2437
        %v3773 = vunpack.c.h.b16 %v2437
        %v3774 = vunpack.c.l.b16 %v2438
        %v3775 = vunpack.c.h.b16 %v2438
        %v3776 = vunpack.c.l.b16 %v2439
        %v3777 = vunpack.c.h.b16 %v2439
        %v3778 = vunpack.c.l.b16 %v2440
        %v3779 = vunpack.c.h.b16 %v2440
        %v3780 = vunpack.c.l.b16 %v2441
        %v3781 = vunpack.c.h.b16 %v2441
        %v3782 = vunpack.c.l.b16 %v2442
        %v3783 = vunpack.c.h.b16 %v2442
        %v3784 = vunpack.c.l.b16 %v2443
        %v3785 = vunpack.c.h.b16 %v2443
        %v3786 = vunpack.c.l.b16 %v2444
        %v3787 = vunpack.c.h.b16 %v2444
        %v3788 = vunpack.c.l.b16 %v2445
        %v3789 = vunpack.c.h.b16 %v2445
        %v3790 = vunpack.c.l.b16 %v2446
        %v3791 = vunpack.c.h.b16 %v2446
        %v3792 = vunpack.c.l.b16 %v2447
        %v3793 = vunpack.c.h.b16 %v2447
        %v3794 = vunpack.c.l.b16 %v2448
        %v3795 = vunpack.c.h.b16 %v2448
        %v3796 = vunpack.c.l.b16 %v2449
        %v3797 = vunpack.c.h.b16 %v2449
        %v3798 = vunpack.c.l.b16 %v2450
        %v3799 = vunpack.c.h.b16 %v2450
        %v3800 = vunpack.c.l.b16 %v2451
        %v3801 = vunpack.c.h.b16 %v2451
        %v3802 = vunpack.c.l.b16 %v2452
        %v3803 = vunpack.c.h.b16 %v2452
        %v3804 = vunpack.c.l.b16 %v2453
        %v3805 = vunpack.c.h.b16 %v2453
        %v3806 = vunpack.c.l.b16 %v2454
        %v3807 = vunpack.c.h.b16 %v2454
        %v3808 = vunpack.c.l.b16 %v2455
        %v3809 = vunpack.c.h.b16 %v2455
        %v3810 = vunpack.c.l.b16 %v2456
        %v3811 = vunpack.c.h.b16 %v2456
        %v3812 = vunpack.c.l.b16 %v2457
        %v3813 = vunpack.c.h.b16 %v2457
        %v3814 = vunpack.c.l.b16 %v2458
        %v3815 = vunpack.c.h.b16 %v2458
        %v3816 = vunpack.c.l.b16 %v2459
        %v3817 = vunpack.c.h.b16 %v2459
        %v3818 = vunpack.c.l.b16 %v2460
        %v3819 = vunpack.c.h.b16 %v2460
        %v3820 = vunpack.c.l.b16 %v2461
        %v3821 = vunpack.c.h.b16 %v2461
        %v3822 = vunpack.c.l.b16 %v2462
        %v3823 = vunpack.c.h.b16 %v2462
        %v3824 = vunpack.c.l.b16 %v2463
        %v3825 = vunpack.c.h.b16 %v2463
        %v3826 = vunpack.c.l.b16 %v2464
        %v3827 = vunpack.c.h.b16 %v2464
        %v3828 = vunpack.c.l.b16 %v2465
        %v3829 = vunpack.c.h.b16 %v2465
        %v3830 = vunpack.c.l.b16 %v2466
        %v3831 = vunpack.c.h.b16 %v2466
        %v3832 = vunpack.c.l.b16 %v2467
        %v3833 = vunpack.c.h.b16 %v2467
        %v3834 = vunpack.c.l.b16 %v2468
        %v3835 = vunpack.c.h.b16 %v2468
        %v3836 = vunpack.c.l.b16 %v2469
        %v3837 = vunpack.c.h.b16 %v2469
        %v3838 = vunpack.c.l.b16 %v2470
        %v3839 = vunpack.c.h.b16 %v2470
        %v3840 = vunpack.c.l.b16 %v2471
        %v3841 = vunpack.c.h.b16 %v2471
        %v3842 = vunpack.c.l.b16 %v2472
        %v3843 = vunpack.c.h.b16 %v2472
        %v3844 = vunpack.c.l.b16 %v2473
        %v3845 = vunpack.c.h.b16 %v2473
        %v3846 = vunpack.c.l.b16 %v2474
        %v3847 = vunpack.c.h.b16 %v2474
        %v3848 = vunpack.c.l.b16 %v2475
        %v3849 = vunpack.c.h.b16 %v2475
        %v3850 = vunpack.c.l.b16 %v2476
        %v3851 = vunpack.c.h.b16 %v2476
        %v3852 = vunpack.c.l.b16 %v2477
        %v3853 = vunpack.c.h.b16 %v2477
        %v3854 = vunpack.c.l.b16 %v2478
        %v3855 = vunpack.c.h.b16 %v2478
        %v3856 = vunpack.c.l.b16 %v2479
        %v3857 = vunpack.c.h.b16 %v2479
        %v3858 = vunpack.c.l.b16 %v2480
        %v3859 = vunpack.c.h.b16 %v2480
        %v3860 = vunpack.c.l.b16 %v2481
        %v3861 = vunpack.c.h.b16 %v2481
        %v3862 = vunpack.c.l.b16 %v2482
        %v3863 = vunpack.c.h.b16 %v2482
        %v3864 = vunpack.c.l.b16 %v2483
        %v3865 = vunpack.c.h.b16 %v2483
        %v3866 = vunpack.c.l.b16 %v2484
        %v3867 = vunpack.c.h.b16 %v2484
        %v3868 = vunpack.c.l.b16 %v2485
        %v3869 = vunpack.c.h.b16 %v2485
        %v3870 = vunpack.c.l.b16 %v2486
        %v3871 = vunpack.c.h.b16 %v2486
        %v3872 = vunpack.c.l.b16 %v2487
        %v3873 = vunpack.c.h.b16 %v2487
        %v3874 = vunpack.c.l.b16 %v2488
        %v3875 = vunpack.c.h.b16 %v2488
        %v3876 = vunpack.c.l.b16 %v2489
        %v3877 = vunpack.c.h.b16 %v2489
        %v3878 = vunpack.c.l.b16 %v2490
        %v3879 = vunpack.c.h.b16 %v2490
        %v3880 = vunpack.c.l.b16 %v2491
        %v3881 = vunpack.c.h.b16 %v2491
        %v3882 = vunpack.c.l.b16 %v2492
        %v3883 = vunpack.c.h.b16 %v2492
        %v3884 = vunpack.c.l.b16 %v2493
        %v3885 = vunpack.c.h.b16 %v2493
        %v3886 = vunpack.c.l.b16 %v2494
        %v3887 = vunpack.c.h.b16 %v2494
        %v3888 = vunpack.c.l.b16 %v2495
        %v3889 = vunpack.c.h.b16 %v2495
        %v3890 = vunpack.c.l.b16 %v2496
        %v3891 = vunpack.c.h.b16 %v2496
        %v3892 = vunpack.c.l.b16 %v2497
        %v3893 = vunpack.c.h.b16 %v2497
        %v3894 = vunpack.c.l.b16 %v2498
        %v3895 = vunpack.c.h.b16 %v2498
        %v3896 = vunpack.c.l.b16 %v2499
        %v3897 = vunpack.c.h.b16 %v2499
        %v3898 = vunpack.c.l.b16 %v2500
        %v3899 = vunpack.c.h.b16 %v2500
        %v3900 = vunpack.c.l.b16 %v2501
        %v3901 = vunpack.c.h.b16 %v2501
        %v3902 = vunpack.c.l.b16 %v2502
        %v3903 = vunpack.c.h.b16 %v2502
        %v3904 = vunpack.c.l.b16 %v2503
        %v3905 = vunpack.c.h.b16 %v2503
        %v3906 = vunpack.c.l.b16 %v2504
        %v3907 = vunpack.c.h.b16 %v2504
        %v3908 = vunpack.c.l.b16 %v2505
        %v3909 = vunpack.c.h.b16 %v2505
        %v3910 = vunpack.c.l.b16 %v2506
        %v3911 = vunpack.c.h.b16 %v2506
        %v3912 = vunpack.c.l.b16 %v2507
        %v3913 = vunpack.c.h.b16 %v2507
        %v3914 = vunpack.c.l.b16 %v2508
        %v3915 = vunpack.c.h.b16 %v2508
        %v3916 = vunpack.c.l.b16 %v2509
        %v3917 = vunpack.c.h.b16 %v2509
        %v3918 = vunpack.c.l.b16 %v2510
        %v3919 = vunpack.c.h.b16 %v2510
        %v3920 = vunpack.c.l.b16 %v2511
        %v3921 = vunpack.c.h.b16 %v2511
        %v3922 = vunpack.c.l.b16 %v2512
        %v3923 = vunpack.c.h.b16 %v2512
        %v3924 = vunpack.c.l.b16 %v2513
        %v3925 = vunpack.c.h.b16 %v2513
        %v3926 = vunpack.c.l.b16 %v2514
        %v3927 = vunpack.c.h.b16 %v2514
        %v3928 = vunpack.c.l.b16 %v2515
        %v3929 = vunpack.c.h.b16 %v2515
        %v3930 = vunpack.c.l.b16 %v2516
        %v3931 = vunpack.c.h.b16 %v2516
        %v3932 = vunpack.c.l.b16 %v2517
        %v3933 = vunpack.c.h.b16 %v2517
        %v3934 = vunpack.c.l.b16 %v2518
        %v3935 = vunpack.c.h.b16 %v2518
        %v3936 = vunpack.c.l.b16 %v2519
        %v3937 = vunpack.c.h.b16 %v2519
        %v3938 = vunpack.c.l.b16 %v2520
        %v3939 = vunpack.c.h.b16 %v2520
        %v3940 = vunpack.c.l.b16 %v2521
        %v3941 = vunpack.c.h.b16 %v2521
        %v3942 = vunpack.c.l.b16 %v2522
        %v3943 = vunpack.c.h.b16 %v2522
        %v3944 = vunpack.c.l.b16 %v2523
        %v3945 = vunpack.c.h.b16 %v2523
        %v3946 = vunpack.c.l.b16 %v2524
        %v3947 = vunpack.c.h.b16 %v2524
        %v3948 = vunpack.c.l.b16 %v2525
        %v3949 = vunpack.c.h.b16 %v2525
        %v3950 = vunpack.c.l.b16 %v2526
        %v3951 = vunpack.c.h.b16 %v2526
        %v3952 = vunpack.c.l.b16 %v2527
        %v3953 = vunpack.c.h.b16 %v2527
        %v3954 = vunpack.c.l.b16 %v2528
        %v3955 = vunpack.c.h.b16 %v2528
        %v3956 = vunpack.c.l.b16 %v2529
        %v3957 = vunpack.c.h.b16 %v2529
        %v3958 = vunpack.c.l.b16 %v2530
        %v3959 = vunpack.c.h.b16 %v2530
        %v3960 = vunpack.c.l.b16 %v2531
        %v3961 = vunpack.c.h.b16 %v2531
        %v3962 = vunpack.c.l.b16 %v2532
        %v3963 = vunpack.c.h.b16 %v2532
        %v3964 = vunpack.c.l.b16 %v2533
        %v3965 = vunpack.c.h.b16 %v2533
        %v3966 = vunpack.c.l.b16 %v2534
        %v3967 = vunpack.c.h.b16 %v2534
        %v3968 = vunpack.c.l.b16 %v2535
        %v3969 = vunpack.c.h.b16 %v2535
        %v3970 = vunpack.c.l.b16 %v2536
        %v3971 = vunpack.c.h.b16 %v2536
        %v3972 = vunpack.c.l.b16 %v2537
        %v3973 = vunpack.c.h.b16 %v2537
        %v3974 = vunpack.c.l.b16 %v2538
        %v3975 = vunpack.c.h.b16 %v2538
        %v3976 = vunpack.c.l.b16 %v2539
        %v3977 = vunpack.c.h.b16 %v2539
        %v3978 = vunpack.c.l.b16 %v2540
        %v3979 = vunpack.c.h.b16 %v2540
        %v3980 = vunpack.c.l.b16 %v2541
        %v3981 = vunpack.c.h.b16 %v2541
        %v3982 = vunpack.c.l.b16 %v2542
        %v3983 = vunpack.c.h.b16 %v2542
        %v3984 = vpack.c.b16 %v3032, %v3024
        %v3985 = vpack.c.b16 %v3033, %v3025
        %v3986 = vpack.c.b16 %v3034, %v3026
        %v3987 = vpack.c.b16 %v3035, %v3027
        %v3988 = vpack.c.b16 %v3036, %v3028
        %v3989 = vpack.c.b16 %v3037, %v3029
        %v3990 = vpack.c.b16 %v3038, %v3030
        %v3991 = vpack.c.b16 %v3039, %v3031
        %v3992 = vpack.c.b16 %v3048, %v3040
        %v3993 = vpack.c.b16 %v3049, %v3041
        %v3994 = vpack.c.b16 %v3050, %v3042
        %v3995 = vpack.c.b16 %v3051, %v3043
        %v3996 = vpack.c.b16 %v3052, %v3044
        %v3997 = vpack.c.b16 %v3053, %v3045
        %v3998 = vpack.c.b16 %v3054, %v3046
        %v3999 = vpack.c.b16 %v3055, %v3047
        %v4000 = vpack.c.b16 %v3064, %v3056
        %v4001 = vpack.c.b16 %v3065, %v3057
        %v4002 = vpack.c.b16 %v3066, %v3058
        %v4003 = vpack.c.b16 %v3067, %v3059
        %v4004 = vpack.c.b16 %v3068, %v3060
        %v4005 = vpack.c.b16 %v3069, %v3061
        %v4006 = vpack.c.b16 %v3070, %v3062
        %v4007 = vpack.c.b16 %v3071, %v3063
        %v4008 = vpack.c.b16 %v3080, %v3072
        %v4009 = vpack.c.b16 %v3081, %v3073
        %v4010 = vpack.c.b16 %v3082, %v3074
        %v4011 = vpack.c.b16 %v3083, %v3075
        %v4012 = vpack.c.b16 %v3084, %v3076
        %v4013 = vpack.c.b16 %v3085, %v3077
        %v4014 = vpack.c.b16 %v3086, %v3078
        %v4015 = vpack.c.b16 %v3087, %v3079
        %v4016 = vpack.c.b16 %v3096, %v3088
        %v4017 = vpack.c.b16 %v3097, %v3089
        %v4018 = vpack.c.b16 %v3098, %v3090
        %v4019 = vpack.c.b16 %v3099, %v3091
        %v4020 = vpack.c.b16 %v3100, %v3092
        %v4021 = vpack.c.b16 %v3101, %v3093
        %v4022 = vpack.c.b16 %v3102, %v3094
        %v4023 = vpack.c.b16 %v3103, %v3095
        %v4024 = vpack.c.b16 %v3112, %v3104
        %v4025 = vpack.c.b16 %v3113, %v3105
        %v4026 = vpack.c.b16 %v3114, %v3106
        %v4027 = vpack.c.b16 %v3115, %v3107
        %v4028 = vpack.c.b16 %v3116, %v3108
        %v4029 = vpack.c.b16 %v3117, %v3109
        %v4030 = vpack.c.b16 %v3118, %v3110
        %v4031 = vpack.c.b16 %v3119, %v3111
        %v4032 = vpack.c.b16 %v3128, %v3120
        %v4033 = vpack.c.b16 %v3129, %v3121
        %v4034 = vpack.c.b16 %v3130, %v3122
        %v4035 = vpack.c.b16 %v3131, %v3123
        %v4036 = vpack.c.b16 %v3132, %v3124
        %v4037 = vpack.c.b16 %v3133, %v3125
        %v4038 = vpack.c.b16 %v3134, %v3126
        %v4039 = vpack.c.b16 %v3135, %v3127
        %v4040 = vpack.c.b16 %v3144, %v3136
        %v4041 = vpack.c.b16 %v3145, %v3137
        %v4042 = vpack.c.b16 %v3146, %v3138
        %v4043 = vpack.c.b16 %v3147, %v3139
        %v4044 = vpack.c.b16 %v3148, %v3140
        %v4045 = vpack.c.b16 %v3149, %v3141
        %v4046 = vpack.c.b16 %v3150, %v3142
        %v4047 = vpack.c.b16 %v3151, %v3143
        %v4048 = vpack.c.b16 %v3160, %v3152
        %v4049 = vpack.c.b16 %v3161, %v3153
        %v4050 = vpack.c.b16 %v3162, %v3154
        %v4051 = vpack.c.b16 %v3163, %v3155
        %v4052 = vpack.c.b16 %v3164, %v3156
        %v4053 = vpack.c.b16 %v3165, %v3157
        %v4054 = vpack.c.b16 %v3166, %v3158
        %v4055 = vpack.c.b16 %v3167, %v3159
        %v4056 = vpack.c.b16 %v3176, %v3168
        %v4057 = vpack.c.b16 %v3177, %v3169
        %v4058 = vpack.c.b16 %v3178, %v3170
        %v4059 = vpack.c.b16 %v3179, %v3171
        %v4060 = vpack.c.b16 %v3180, %v3172
        %v4061 = vpack.c.b16 %v3181, %v3173
        %v4062 = vpack.c.b16 %v3182, %v3174
        %v4063 = vpack.c.b16 %v3183, %v3175
        %v4064 = vpack.c.b16 %v3192, %v3184
        %v4065 = vpack.c.b16 %v3193, %v3185
        %v4066 = vpack.c.b16 %v3194, %v3186
        %v4067 = vpack.c.b16 %v3195, %v3187
        %v4068 = vpack.c.b16 %v3196, %v3188
        %v4069 = vpack.c.b16 %v3197, %v3189
        %v4070 = vpack.c.b16 %v3198, %v3190
        %v4071 = vpack.c.b16 %v3199, %v3191
        %v4072 = vpack.c.b16 %v3208, %v3200
        %v4073 = vpack.c.b16 %v3209, %v3201
        %v4074 = vpack.c.b16 %v3210, %v3202
        %v4075 = vpack.c.b16 %v3211, %v3203
        %v4076 = vpack.c.b16 %v3212, %v3204
        %v4077 = vpack.c.b16 %v3213, %v3205
        %v4078 = vpack.c.b16 %v3214, %v3206
        %v4079 = vpack.c.b16 %v3215, %v3207
        %v4080 = vpack.c.b16 %v3224, %v3216
        %v4081 = vpack.c.b16 %v3225, %v3217
        %v4082 = vpack.c.b16 %v3226, %v3218
        %v4083 = vpack.c.b16 %v3227, %v3219
        %v4084 = vpack.c.b16 %v3228, %v3220
        %v4085 = vpack.c.b16 %v3229, %v3221
        %v4086 = vpack.c.b16 %v3230, %v3222
        %v4087 = vpack.c.b16 %v3231, %v3223
        %v4088 = vpack.c.b16 %v3240, %v3232
        %v4089 = vpack.c.b16 %v3241, %v3233
        %v4090 = vpack.c.b16 %v3242, %v3234
        %v4091 = vpack.c.b16 %v3243, %v3235
        %v4092 = vpack.c.b16 %v3244, %v3236
        %v4093 = vpack.c.b16 %v3245, %v3237
        %v4094 = vpack.c.b16 %v3246, %v3238
        %v4095 = vpack.c.b16 %v3247, %v3239
        %v4096 = vpack.c.b16 %v3256, %v3248
        %v4097 = vpack.c.b16 %v3257, %v3249
        %v4098 = vpack.c.b16 %v3258, %v3250
        %v4099 = vpack.c.b16 %v3259, %v3251
        %v4100 = vpack.c.b16 %v3260, %v3252
        %v4101 = vpack.c.b16 %v3261, %v3253
        %v4102 = vpack.c.b16 %v3262, %v3254
        %v4103 = vpack.c.b16 %v3263, %v3255
        %v4104 = vpack.c.b16 %v3272, %v3264
        %v4105 = vpack.c.b16 %v3273, %v3265
        %v4106 = vpack.c.b16 %v3274, %v3266
        %v4107 = vpack.c.b16 %v3275, %v3267
        %v4108 = vpack.c.b16 %v3276, %v3268
        %v4109 = vpack.c.b16 %v3277, %v3269
        %v4110 = vpack.c.b16 %v3278, %v3270
        %v4111 = vpack.c.b16 %v3279, %v3271
        %v4112 = vpack.c.b16 %v3288, %v3280
        %v4113 = vpack.c.b16 %v3289, %v3281
        %v4114 = vpack.c.b16 %v3290, %v3282
        %v4115 = vpack.c.b16 %v3291, %v3283
        %v4116 = vpack.c.b16 %v3292, %v3284
        %v4117 = vpack.c.b16 %v3293, %v3285
        %v4118 = vpack.c.b16 %v3294, %v3286
        %v4119 = vpack.c.b16 %v3295, %v3287
        %v4120 = vpack.c.b16 %v3304, %v3296
        %v4121 = vpack.c.b16 %v3305, %v3297
        %v4122 = vpack.c.b16 %v3306, %v3298
        %v4123 = vpack.c.b16 %v3307, %v3299
        %v4124 = vpack.c.b16 %v3308, %v3300
        %v4125 = vpack.c.b16 %v3309, %v3301
        %v4126 = vpack.c.b16 %v3310, %v3302
        %v4127 = vpack.c.b16 %v3311, %v3303
        %v4128 = vpack.c.b16 %v3320, %v3312
        %v4129 = vpack.c.b16 %v3321, %v3313
        %v4130 = vpack.c.b16 %v3322, %v3314
        %v4131 = vpack.c.b16 %v3323, %v3315
        %v4132 = vpack.c.b16 %v3324, %v3316
        %v4133 = vpack.c.b16 %v3325, %v3317
        %v4134 = vpack.c.b16 %v3326, %v3318
        %v4135 = vpack.c.b16 %v3327, %v3319
        %v4136 = vpack.c.b16 %v3336, %v3328
        %v4137 = vpack.c.b16 %v3337, %v3329
        %v4138 = vpack.c.b16 %v3338, %v3330
        %v4139 = vpack.c.b16 %v3339, %v3331
        %v4140 = vpack.c.b16 %v3340, %v3332
        %v4141 = vpack.c.b16 %v3341, %v3333
        %v4142 = vpack.c.b16 %v3342, %v3334
        %v4143 = vpack.c.b16 %v3343, %v3335
        %v4144 = vpack.c.b16 %v3352, %v3344
        %v4145 = vpack.c.b16 %v3353, %v3345
        %v4146 = vpack.c.b16 %v3354, %v3346
        %v4147 = vpack.c.b16 %v3355, %v3347
        %v4148 = vpack.c.b16 %v3356, %v3348
        %v4149 = vpack.c.b16 %v3357, %v3349
        %v4150 = vpack.c.b16 %v3358, %v3350
        %v4151 = vpack.c.b16 %v3359, %v3351
        %v4152 = vpack.c.b16 %v3368, %v3360
        %v4153 = vpack.c.b16 %v3369, %v3361
        %v4154 = vpack.c.b16 %v3370, %v3362
        %v4155 = vpack.c.b16 %v3371, %v3363
        %v4156 = vpack.c.b16 %v3372, %v3364
        %v4157 = vpack.c.b16 %v3373, %v3365
        %v4158 = vpack.c.b16 %v3374, %v3366
        %v4159 = vpack.c.b16 %v3375, %v3367
        %v4160 = vpack.c.b16 %v3384, %v3376
        %v4161 = vpack.c.b16 %v3385, %v3377
        %v4162 = vpack.c.b16 %v3386, %v3378
        %v4163 = vpack.c.b16 %v3387, %v3379
        %v4164 = vpack.c.b16 %v3388, %v3380
        %v4165 = vpack.c.b16 %v3389, %v3381
        %v4166 = vpack.c.b16 %v3390, %v3382
        %v4167 = vpack.c.b16 %v3391, %v3383
        %v4168 = vpack.c.b16 %v3400, %v3392
        %v4169 = vpack.c.b16 %v3401, %v3393
        %v4170 = vpack.c.b16 %v3402, %v3394
        %v4171 = vpack.c.b16 %v3403, %v3395
        %v4172 = vpack.c.b16 %v3404, %v3396
        %v4173 = vpack.c.b16 %v3405, %v3397
        %v4174 = vpack.c.b16 %v3406, %v3398
        %v4175 = vpack.c.b16 %v3407, %v3399
        %v4176 = vpack.c.b16 %v3416, %v3408
        %v4177 = vpack.c.b16 %v3417, %v3409
        %v4178 = vpack.c.b16 %v3418, %v3410
        %v4179 = vpack.c.b16 %v3419, %v3411
        %v4180 = vpack.c.b16 %v3420, %v3412
        %v4181 = vpack.c.b16 %v3421, %v3413
        %v4182 = vpack.c.b16 %v3422, %v3414
        %v4183 = vpack.c.b16 %v3423, %v3415
        %v4184 = vpack.c.b16 %v3432, %v3424
        %v4185 = vpack.c.b16 %v3433, %v3425
        %v4186 = vpack.c.b16 %v3434, %v3426
        %v4187 = vpack.c.b16 %v3435, %v3427
        %v4188 = vpack.c.b16 %v3436, %v3428
        %v4189 = vpack.c.b16 %v3437, %v3429
        %v4190 = vpack.c.b16 %v3438, %v3430
        %v4191 = vpack.c.b16 %v3439, %v3431
        %v4192 = vpack.c.b16 %v3448, %v3440
        %v4193 = vpack.c.b16 %v3449, %v3441
        %v4194 = vpack.c.b16 %v3450, %v3442
        %v4195 = vpack.c.b16 %v3451, %v3443
        %v4196 = vpack.c.b16 %v3452, %v3444
        %v4197 = vpack.c.b16 %v3453, %v3445
        %v4198 = vpack.c.b16 %v3454, %v3446
        %v4199 = vpack.c.b16 %v3455, %v3447
        %v4200 = vpack.c.b16 %v3464, %v3456
        %v4201 = vpack.c.b16 %v3465, %v3457
        %v4202 = vpack.c.b16 %v3466, %v3458
        %v4203 = vpack.c.b16 %v3467, %v3459
        %v4204 = vpack.c.b16 %v3468, %v3460
        %v4205 = vpack.c.b16 %v3469, %v3461
        %v4206 = vpack.c.b16 %v3470, %v3462
        %v4207 = vpack.c.b16 %v3471, %v3463
        %v4208 = vpack.c.b16 %v3480, %v3472
        %v4209 = vpack.c.b16 %v3481, %v3473
        %v4210 = vpack.c.b16 %v3482, %v3474
        %v4211 = vpack.c.b16 %v3483, %v3475
        %v4212 = vpack.c.b16 %v3484, %v3476
        %v4213 = vpack.c.b16 %v3485, %v3477
        %v4214 = vpack.c.b16 %v3486, %v3478
        %v4215 = vpack.c.b16 %v3487, %v3479
        %v4216 = vpack.c.b16 %v3496, %v3488
        %v4217 = vpack.c.b16 %v3497, %v3489
        %v4218 = vpack.c.b16 %v3498, %v3490
        %v4219 = vpack.c.b16 %v3499, %v3491
        %v4220 = vpack.c.b16 %v3500, %v3492
        %v4221 = vpack.c.b16 %v3501, %v3493
        %v4222 = vpack.c.b16 %v3502, %v3494
        %v4223 = vpack.c.b16 %v3503, %v3495
        %v4224 = vpack.c.b16 %v3512, %v3504
        %v4225 = vpack.c.b16 %v3513, %v3505
        %v4226 = vpack.c.b16 %v3514, %v3506
        %v4227 = vpack.c.b16 %v3515, %v3507
        %v4228 = vpack.c.b16 %v3516, %v3508
        %v4229 = vpack.c.b16 %v3517, %v3509
        %v4230 = vpack.c.b16 %v3518, %v3510
        %v4231 = vpack.c.b16 %v3519, %v3511
        %v4232 = vpack.c.b16 %v3528, %v3520
        %v4233 = vpack.c.b16 %v3529, %v3521
        %v4234 = vpack.c.b16 %v3530, %v3522
        %v4235 = vpack.c.b16 %v3531, %v3523
        %v4236 = vpack.c.b16 %v3532, %v3524
        %v4237 = vpack.c.b16 %v3533, %v3525
        %v4238 = vpack.c.b16 %v3534, %v3526
        %v4239 = vpack.c.b16 %v3535, %v3527
        %v4240 = vpack.c.b16 %v3544, %v3536
        %v4241 = vpack.c.b16 %v3545, %v3537
        %v4242 = vpack.c.b16 %v3546, %v3538
        %v4243 = vpack.c.b16 %v3547, %v3539
        %v4244 = vpack.c.b16 %v3548, %v3540
        %v4245 = vpack.c.b16 %v3549, %v3541
        %v4246 = vpack.c.b16 %v3550, %v3542
        %v4247 = vpack.c.b16 %v3551, %v3543
        %v4248 = vpack.c.b16 %v3560, %v3552
        %v4249 = vpack.c.b16 %v3561, %v3553
        %v4250 = vpack.c.b16 %v3562, %v3554
        %v4251 = vpack.c.b16 %v3563, %v3555
        %v4252 = vpack.c.b16 %v3564, %v3556
        %v4253 = vpack.c.b16 %v3565, %v3557
        %v4254 = vpack.c.b16 %v3566, %v3558
        %v4255 = vpack.c.b16 %v3567, %v3559
        %v4256 = vpack.c.b16 %v3576, %v3568
        %v4257 = vpack.c.b16 %v3577, %v3569
        %v4258 = vpack.c.b16 %v3578, %v3570
        %v4259 = vpack.c.b16 %v3579, %v3571
        %v4260 = vpack.c.b16 %v3580, %v3572
        %v4261 = vpack.c.b16 %v3581, %v3573
        %v4262 = vpack.c.b16 %v3582, %v3574
        %v4263 = vpack.c.b16 %v3583, %v3575
        %v4264 = vpack.c.b16 %v3592, %v3584
        %v4265 = vpack.c.b16 %v3593, %v3585
        %v4266 = vpack.c.b16 %v3594, %v3586
        %v4267 = vpack.c.b16 %v3595, %v3587
        %v4268 = vpack.c.b16 %v3596, %v3588
        %v4269 = vpack.c.b16 %v3597, %v3589
        %v4270 = vpack.c.b16 %v3598, %v3590
        %v4271 = vpack.c.b16 %v3599, %v3591
        %v4272 = vpack.c.b16 %v3608, %v3600
        %v4273 = vpack.c.b16 %v3609, %v3601
        %v4274 = vpack.c.b16 %v3610, %v3602
        %v4275 = vpack.c.b16 %v3611, %v3603
        %v4276 = vpack.c.b16 %v3612, %v3604
        %v4277 = vpack.c.b16 %v3613, %v3605
        %v4278 = vpack.c.b16 %v3614, %v3606
        %v4279 = vpack.c.b16 %v3615, %v3607
        %v4280 = vpack.c.b16 %v3624, %v3616
        %v4281 = vpack.c.b16 %v3625, %v3617
        %v4282 = vpack.c.b16 %v3626, %v3618
        %v4283 = vpack.c.b16 %v3627, %v3619
        %v4284 = vpack.c.b16 %v3628, %v3620
        %v4285 = vpack.c.b16 %v3629, %v3621
        %v4286 = vpack.c.b16 %v3630, %v3622
        %v4287 = vpack.c.b16 %v3631, %v3623
        %v4288 = vpack.c.b16 %v3640, %v3632
        %v4289 = vpack.c.b16 %v3641, %v3633
        %v4290 = vpack.c.b16 %v3642, %v3634
        %v4291 = vpack.c.b16 %v3643, %v3635
        %v4292 = vpack.c.b16 %v3644, %v3636
        %v4293 = vpack.c.b16 %v3645, %v3637
        %v4294 = vpack.c.b16 %v3646, %v3638
        %v4295 = vpack.c.b16 %v3647, %v3639
        %v4296 = vpack.c.b16 %v3656, %v3648
        %v4297 = vpack.c.b16 %v3657, %v3649
        %v4298 = vpack.c.b16 %v3658, %v3650
        %v4299 = vpack.c.b16 %v3659, %v3651
        %v4300 = vpack.c.b16 %v3660, %v3652
        %v4301 = vpack.c.b16 %v3661, %v3653
        %v4302 = vpack.c.b16 %v3662, %v3654
        %v4303 = vpack.c.b16 %v3663, %v3655
        %v4304 = vpack.c.b16 %v3672, %v3664
        %v4305 = vpack.c.b16 %v3673, %v3665
        %v4306 = vpack.c.b16 %v3674, %v3666
        %v4307 = vpack.c.b16 %v3675, %v3667
        %v4308 = vpack.c.b16 %v3676, %v3668
        %v4309 = vpack.c.b16 %v3677, %v3669
        %v4310 = vpack.c.b16 %v3678, %v3670
        %v4311 = vpack.c.b16 %v3679, %v3671
        %v4312 = vpack.c.b16 %v3688, %v3680
        %v4313 = vpack.c.b16 %v3689, %v3681
        %v4314 = vpack.c.b16 %v3690, %v3682
        %v4315 = vpack.c.b16 %v3691, %v3683
        %v4316 = vpack.c.b16 %v3692, %v3684
        %v4317 = vpack.c.b16 %v3693, %v3685
        %v4318 = vpack.c.b16 %v3694, %v3686
        %v4319 = vpack.c.b16 %v3695, %v3687
        %v4320 = vpack.c.b16 %v3704, %v3696
        %v4321 = vpack.c.b16 %v3705, %v3697
        %v4322 = vpack.c.b16 %v3706, %v3698
        %v4323 = vpack.c.b16 %v3707, %v3699
        %v4324 = vpack.c.b16 %v3708, %v3700
        %v4325 = vpack.c.b16 %v3709, %v3701
        %v4326 = vpack.c.b16 %v3710, %v3702
        %v4327 = vpack.c.b16 %v3711, %v3703
        %v4328 = vpack.c.b16 %v3720, %v3712
        %v4329 = vpack.c.b16 %v3721, %v3713
        %v4330 = vpack.c.b16 %v3722, %v3714
        %v4331 = vpack.c.b16 %v3723, %v3715
        %v4332 = vpack.c.b16 %v3724, %v3716
        %v4333 = vpack.c.b16 %v3725, %v3717
        %v4334 = vpack.c.b16 %v3726, %v3718
        %v4335 = vpack.c.b16 %v3727, %v3719
        %v4336 = vpack.c.b16 %v3736, %v3728
        %v4337 = vpack.c.b16 %v3737, %v3729
        %v4338 = vpack.c.b16 %v3738, %v3730
        %v4339 = vpack.c.b16 %v3739, %v3731
        %v4340 = vpack.c.b16 %v3740, %v3732
        %v4341 = vpack.c.b16 %v3741, %v3733
        %v4342 = vpack.c.b16 %v3742, %v3734
        %v4343 = vpack.c.b16 %v3743, %v3735
        %v4344 = vpack.c.b16 %v3752, %v3744
        %v4345 = vpack.c.b16 %v3753, %v3745
        %v4346 = vpack.c.b16 %v3754, %v3746
        %v4347 = vpack.c.b16 %v3755, %v3747
        %v4348 = vpack.c.b16 %v3756, %v3748
        %v4349 = vpack.c.b16 %v3757, %v3749
        %v4350 = vpack.c.b16 %v3758, %v3750
        %v4351 = vpack.c.b16 %v3759, %v3751
        %v4352 = vpack.c.b16 %v3768, %v3760
        %v4353 = vpack.c.b16 %v3769, %v3761
        %v4354 = vpack.c.b16 %v3770, %v3762
        %v4355 = vpack.c.b16 %v3771, %v3763
        %v4356 = vpack.c.b16 %v3772, %v3764
        %v4357 = vpack.c.b16 %v3773, %v3765
        %v4358 = vpack.c.b16 %v3774, %v3766
        %v4359 = vpack.c.b16 %v3775, %v3767
        %v4360 = vpack.c.b16 %v3784, %v3776
        %v4361 = vpack.c.b16 %v3785, %v3777
        %v4362 = vpack.c.b16 %v3786, %v3778
        %v4363 = vpack.c.b16 %v3787, %v3779
        %v4364 = vpack.c.b16 %v3788, %v3780
        %v4365 = vpack.c.b16 %v3789, %v3781
        %v4366 = vpack.c.b16 %v3790, %v3782
        %v4367 = vpack.c.b16 %v3791, %v3783
        %v4368 = vpack.c.b16 %v3800, %v3792
        %v4369 = vpack.c.b16 %v3801, %v3793
        %v4370 = vpack.c.b16 %v3802, %v3794
        %v4371 = vpack.c.b16 %v3803, %v3795
        %v4372 = vpack.c.b16 %v3804, %v3796
        %v4373 = vpack.c.b16 %v3805, %v3797
        %v4374 = vpack.c.b16 %v3806, %v3798
        %v4375 = vpack.c.b16 %v3807, %v3799
        %v4376 = vpack.c.b16 %v3816, %v3808
        %v4377 = vpack.c.b16 %v3817, %v3809
        %v4378 = vpack.c.b16 %v3818, %v3810
        %v4379 = vpack.c.b16 %v3819, %v3811
        %v4380 = vpack.c.b16 %v3820, %v3812
        %v4381 = vpack.c.b16 %v3821, %v3813
        %v4382 = vpack.c.b16 %v3822, %v3814
        %v4383 = vpack.c.b16 %v3823, %v3815
        %v4384 = vpack.c.b16 %v3832, %v3824
        %v4385 = vpack.c.b16 %v3833, %v3825
        %v4386 = vpack.c.b16 %v3834, %v3826
        %v4387 = vpack.c.b16 %v3835, %v3827
        %v4388 = vpack.c.b16 %v3836, %v3828
        %v4389 = vpack.c.b16 %v3837, %v3829
        %v4390 = vpack.c.b16 %v3838, %v3830
        %v4391 = vpack.c.b16 %v3839, %v3831
        %v4392 = vpack.c.b16 %v3848, %v3840
        %v4393 = vpack.c.b16 %v3849, %v3841
        %v4394 = vpack.c.b16 %v3850, %v3842
        %v4395 = vpack.c.b16 %v3851, %v3843
        %v4396 = vpack.c.b16 %v3852, %v3844
        %v4397 = vpack.c.b16 %v3853, %v3845
        %v4398 = vpack.c.b16 %v3854, %v3846
        %v4399 = vpack.c.b16 %v3855, %v3847
        %v4400 = vpack.c.b16 %v3864, %v3856
        %v4401 = vpack.c.b16 %v3865, %v3857
        %v4402 = vpack.c.b16 %v3866, %v3858
        %v4403 = vpack.c.b16 %v3867, %v3859
        %v4404 = vpack.c.b16 %v3868, %v3860
        %v4405 = vpack.c.b16 %v3869, %v3861
        %v4406 = vpack.c.b16 %v3870, %v3862
        %v4407 = vpack.c.b16 %v3871, %v3863
        %v4408 = vpack.c.b16 %v3880, %v3872
        %v4409 = vpack.c.b16 %v3881, %v3873
        %v4410 = vpack.c.b16 %v3882, %v3874
        %v4411 = vpack.c.b16 %v3883, %v3875
        %v4412 = vpack.c.b16 %v3884, %v3876
        %v4413 = vpack.c.b16 %v3885, %v3877
        %v4414 = vpack.c.b16 %v3886, %v3878
        %v4415 = vpack.c.b16 %v3887, %v3879
        %v4416 = vpack.c.b16 %v3896, %v3888
        %v4417 = vpack.c.b16 %v3897, %v3889
        %v4418 = vpack.c.b16 %v3898, %v3890
        %v4419 = vpack.c.b16 %v3899, %v3891
        %v4420 = vpack.c.b16 %v3900, %v3892
        %v4421 = vpack.c.b16 %v3901, %v3893
        %v4422 = vpack.c.b16 %v3902, %v3894
        %v4423 = vpack.c.b16 %v3903, %v3895
        %v4424 = vpack.c.b16 %v3912, %v3904
        %v4425 = vpack.c.b16 %v3913, %v3905
        %v4426 = vpack.c.b16 %v3914, %v3906
        %v4427 = vpack.c.b16 %v3915, %v3907
        %v4428 = vpack.c.b16 %v3916, %v3908
        %v4429 = vpack.c.b16 %v3917, %v3909
        %v4430 = vpack.c.b16 %v3918, %v3910
        %v4431 = vpack.c.b16 %v3919, %v3911
        %v4432 = vpack.c.b16 %v3928, %v3920
        %v4433 = vpack.c.b16 %v3929, %v3921
        %v4434 = vpack.c.b16 %v3930, %v3922
        %v4435 = vpack.c.b16 %v3931, %v3923
        %v4436 = vpack.c.b16 %v3932, %v3924
        %v4437 = vpack.c.b16 %v3933, %v3925
        %v4438 = vpack.c.b16 %v3934, %v3926
        %v4439 = vpack.c.b16 %v3935, %v3927
        %v4440 = vpack.c.b16 %v3944, %v3936
        %v4441 = vpack.c.b16 %v3945, %v3937
        %v4442 = vpack.c.b16 %v3946, %v3938
        %v4443 = vpack.c.b16 %v3947, %v3939
        %v4444 = vpack.c.b16 %v3948, %v3940
        %v4445 = vpack.c.b16 %v3949, %v3941
        %v4446 = vpack.c.b16 %v3950, %v3942
        %v4447 = vpack.c.b16 %v3951, %v3943
        %v4448 = vpack.c.b16 %v3960, %v3952
        %v4449 = vpack.c.b16 %v3961, %v3953
        %v4450 = vpack.c.b16 %v3962, %v3954
        %v4451 = vpack.c.b16 %v3963, %v3955
        %v4452 = vpack.c.b16 %v3964, %v3956
        %v4453 = vpack.c.b16 %v3965, %v3957
        %v4454 = vpack.c.b16 %v3966, %v3958
        %v4455 = vpack.c.b16 %v3967, %v3959
        %v4456 = vpack.c.b16 %v3976, %v3968
        %v4457 = vpack.c.b16 %v3977, %v3969
        %v4458 = vpack.c.b16 %v3978, %v3970
        %v4459 = vpack.c.b16 %v3979, %v3971
        %v4460 = vpack.c.b16 %v3980, %v3972
        %v4461 = vpack.c.b16 %v3981, %v3973
        %v4462 = vpack.c.b16 %v3982, %v3974
        %v4463 = vpack.c.b16 %v3983, %v3975
        %v4945 = vperm.slane %v2543, 0
        %v4946 = vperm.slane %v2543, 1
        %v4947 = vperm.slane %v2543, 2
        %v4948 = vperm.slane %v2543, 3
        %v4949 = vperm.slane %v2543, 4
        %v4950 = vperm.slane %v2543, 5
        %v4951 = vperm.slane %v2543, 6
        %v4952 = vperm.slane %v2543, 7
        %v4962 = vsel %vm1992, %v2062, 0
        %4964 = vmatpush.bf16.msra.mxu0 %v4040
        %4965 = vmatpush.bf16.msra.mxu0 %v4032
        %4966 = vmatpush.bf16.msra.mxu0 %v4024
        %4967 = vmatpush.bf16.msra.mxu0 %v4016
        %4968 = vmatpush.bf16.msra.mxu0 %v4008
        %4969 = vmatpush.bf16.msra.mxu0 %v4000
        %4970 = vmatpush.bf16.msra.mxu0 %v3992
        %4971 = vmatpush.bf16.msra.mxu0 %v3984
        %4972 = vmatmul.bf16.gmra.mxu0 %v2055
        %v4973 = vpop.f32.mrf.mxu0
        %v4974 = vadd.f32 %v4945, %v4973
        %v4975 = vpop.f32.mrf.mxu0
        %4976 = vdwg.mxu0
        %4977 = vmatpush.bf16.msra.mxu0 %v4104
        %4978 = vmatpush.bf16.msra.mxu0 %v4096
        %4979 = vmatpush.bf16.msra.mxu0 %v4088
        %4980 = vmatpush.bf16.msra.mxu0 %v4080
        %4981 = vmatpush.bf16.msra.mxu0 %v4072
        %4982 = vmatpush.bf16.msra.mxu0 %v4064
        %4983 = vmatpush.bf16.msra.mxu0 %v4056
        %4984 = vmatpush.bf16.msra.mxu0 %v4048
        %4985 = vmatmul.bf16.gmra.mxu0 %v2056
        %v4986 = vpop.f32.mrf.mxu0
        %v4987 = vadd.f32 %v4974, %v4986
        %v4988 = vpop.f32.mrf.mxu0
        %4989 = vdwg.mxu0
        %4990 = vmatpush.bf16.msra.mxu0 %v4168
        %4991 = vmatpush.bf16.msra.mxu0 %v4160
        %4992 = vmatpush.bf16.msra.mxu0 %v4152
        %4993 = vmatpush.bf16.msra.mxu0 %v4144
        %4994 = vmatpush.bf16.msra.mxu0 %v4136
        %4995 = vmatpush.bf16.msra.mxu0 %v4128
        %4996 = vmatpush.bf16.msra.mxu0 %v4120
        %4997 = vmatpush.bf16.msra.mxu0 %v4112
        %4998 = vmatmul.bf16.gmra.mxu0 %v2057
        %v4999 = vpop.f32.mrf.mxu0
        %v5000 = vadd.f32 %v4987, %v4999
        %v5001 = vpop.f32.mrf.mxu0
        %5002 = vdwg.mxu0
        %5003 = vmatpush.bf16.msra.mxu0 %v4232
        %5004 = vmatpush.bf16.msra.mxu0 %v4224
        %5005 = vmatpush.bf16.msra.mxu0 %v4216
        %5006 = vmatpush.bf16.msra.mxu0 %v4208
        %5007 = vmatpush.bf16.msra.mxu0 %v4200
        %5008 = vmatpush.bf16.msra.mxu0 %v4192
        %5009 = vmatpush.bf16.msra.mxu0 %v4184
        %5010 = vmatpush.bf16.msra.mxu0 %v4176
        %5011 = vmatmul.bf16.gmra.mxu0 %v2058
        %v5012 = vpop.f32.mrf.mxu0
        %v5013 = vadd.f32 %v5000, %v5012
        %v5014 = vpop.f32.mrf.mxu0
        %5015 = vdwg.mxu0
        %5016 = vmatpush.bf16.msra.mxu0 %v4296
        %5017 = vmatpush.bf16.msra.mxu0 %v4288
        %5018 = vmatpush.bf16.msra.mxu0 %v4280
        %5019 = vmatpush.bf16.msra.mxu0 %v4272
        %5020 = vmatpush.bf16.msra.mxu0 %v4264
        %5021 = vmatpush.bf16.msra.mxu0 %v4256
        %5022 = vmatpush.bf16.msra.mxu0 %v4248
        %5023 = vmatpush.bf16.msra.mxu0 %v4240
        %5024 = vmatmul.bf16.gmra.mxu0 %v2059
        %v5025 = vpop.f32.mrf.mxu0
        %v5026 = vadd.f32 %v5013, %v5025
        %v5027 = vpop.f32.mrf.mxu0
        %5028 = vdwg.mxu0
        %5029 = vmatpush.bf16.msra.mxu0 %v4360
        %5030 = vmatpush.bf16.msra.mxu0 %v4352
        %5031 = vmatpush.bf16.msra.mxu0 %v4344
        %5032 = vmatpush.bf16.msra.mxu0 %v4336
        %5033 = vmatpush.bf16.msra.mxu0 %v4328
        %5034 = vmatpush.bf16.msra.mxu0 %v4320
        %5035 = vmatpush.bf16.msra.mxu0 %v4312
        %5036 = vmatpush.bf16.msra.mxu0 %v4304
        %5037 = vmatmul.bf16.gmra.mxu0 %v2060
        %v5038 = vpop.f32.mrf.mxu0
        %v5039 = vadd.f32 %v5026, %v5038
        %v5040 = vpop.f32.mrf.mxu0
        %5041 = vdwg.mxu0
        %5042 = vmatpush.bf16.msra.mxu0 %v4424
        %5043 = vmatpush.bf16.msra.mxu0 %v4416
        %5044 = vmatpush.bf16.msra.mxu0 %v4408
        %5045 = vmatpush.bf16.msra.mxu0 %v4400
        %5046 = vmatpush.bf16.msra.mxu0 %v4392
        %5047 = vmatpush.bf16.msra.mxu0 %v4384
        %5048 = vmatpush.bf16.msra.mxu0 %v4376
        %5049 = vmatpush.bf16.msra.mxu0 %v4368
        %5050 = vmatmul.bf16.gmra.mxu0 %v2061
        %v5051 = vpop.f32.mrf.mxu0
        %v5052 = vadd.f32 %v5039, %v5051
        %v5053 = vpop.f32.mrf.mxu0
        %5054 = vdwg.mxu0
        %5055 = vmatpush.bf16.msra.mxu0 0
        %5056 = vmatpush.bf16.msra.mxu0 0
        %5057 = vmatpush.bf16.msra.mxu0 0
        %5058 = vmatpush.bf16.msra.mxu0 0
        %5059 = vmatpush.bf16.msra.mxu0 %v4456
        %5060 = vmatpush.bf16.msra.mxu0 %v4448
        %5061 = vmatpush.bf16.msra.mxu0 %v4440
        %5062 = vmatpush.bf16.msra.mxu0 %v4432
        %5063 = vmatmul.bf16.gmra.mxu0 %v4962
        %v5064 = vpop.f32.mrf.mxu0
        %v5065 = vadd.f32 %v5052, %v5064
        %v5066 = vpop.f32.mrf.mxu0
        %5067 = vdwg.mxu0
        %5068 = vmatpush.bf16.msra.mxu0 %v4041
        %5069 = vmatpush.bf16.msra.mxu0 %v4033
        %5070 = vmatpush.bf16.msra.mxu0 %v4025
        %5071 = vmatpush.bf16.msra.mxu0 %v4017
        %5072 = vmatpush.bf16.msra.mxu0 %v4009
        %5073 = vmatpush.bf16.msra.mxu0 %v4001
        %5074 = vmatpush.bf16.msra.mxu0 %v3993
        %5075 = vmatpush.bf16.msra.mxu0 %v3985
        %5076 = vmatmul.bf16.gmra.mxu0 %v2055
        %v5077 = vpop.f32.mrf.mxu0
        %v5078 = vadd.f32 %v4946, %v5077
        %v5079 = vpop.f32.mrf.mxu0
        %5080 = vdwg.mxu0
        %5081 = vmatpush.bf16.msra.mxu0 %v4105
        %5082 = vmatpush.bf16.msra.mxu0 %v4097
        %5083 = vmatpush.bf16.msra.mxu0 %v4089
        %5084 = vmatpush.bf16.msra.mxu0 %v4081
        %5085 = vmatpush.bf16.msra.mxu0 %v4073
        %5086 = vmatpush.bf16.msra.mxu0 %v4065
        %5087 = vmatpush.bf16.msra.mxu0 %v4057
        %5088 = vmatpush.bf16.msra.mxu0 %v4049
        %5089 = vmatmul.bf16.gmra.mxu0 %v2056
        %v5090 = vpop.f32.mrf.mxu0
        %v5091 = vadd.f32 %v5078, %v5090
        %v5092 = vpop.f32.mrf.mxu0
        %5093 = vdwg.mxu0
        %5094 = vmatpush.bf16.msra.mxu0 %v4169
        %5095 = vmatpush.bf16.msra.mxu0 %v4161
        %5096 = vmatpush.bf16.msra.mxu0 %v4153
        %5097 = vmatpush.bf16.msra.mxu0 %v4145
        %5098 = vmatpush.bf16.msra.mxu0 %v4137
        %5099 = vmatpush.bf16.msra.mxu0 %v4129
        %5100 = vmatpush.bf16.msra.mxu0 %v4121
        %5101 = vmatpush.bf16.msra.mxu0 %v4113
        %5102 = vmatmul.bf16.gmra.mxu0 %v2057
        %v5103 = vpop.f32.mrf.mxu0
        %v5104 = vadd.f32 %v5091, %v5103
        %v5105 = vpop.f32.mrf.mxu0
        %5106 = vdwg.mxu0
        %5107 = vmatpush.bf16.msra.mxu0 %v4233
        %5108 = vmatpush.bf16.msra.mxu0 %v4225
        %5109 = vmatpush.bf16.msra.mxu0 %v4217
        %5110 = vmatpush.bf16.msra.mxu0 %v4209
        %5111 = vmatpush.bf16.msra.mxu0 %v4201
        %5112 = vmatpush.bf16.msra.mxu0 %v4193
        %5113 = vmatpush.bf16.msra.mxu0 %v4185
        %5114 = vmatpush.bf16.msra.mxu0 %v4177
        %5115 = vmatmul.bf16.gmra.mxu0 %v2058
        %v5116 = vpop.f32.mrf.mxu0
        %v5117 = vadd.f32 %v5104, %v5116
        %v5118 = vpop.f32.mrf.mxu0
        %5119 = vdwg.mxu0
        %5120 = vmatpush.bf16.msra.mxu0 %v4297
        %5121 = vmatpush.bf16.msra.mxu0 %v4289
        %5122 = vmatpush.bf16.msra.mxu0 %v4281
        %5123 = vmatpush.bf16.msra.mxu0 %v4273
        %5124 = vmatpush.bf16.msra.mxu0 %v4265
        %5125 = vmatpush.bf16.msra.mxu0 %v4257
        %5126 = vmatpush.bf16.msra.mxu0 %v4249
        %5127 = vmatpush.bf16.msra.mxu0 %v4241
        %5128 = vmatmul.bf16.gmra.mxu0 %v2059
        %v5129 = vpop.f32.mrf.mxu0
        %v5130 = vadd.f32 %v5117, %v5129
        %v5131 = vpop.f32.mrf.mxu0
        %5132 = vdwg.mxu0
        %5133 = vmatpush.bf16.msra.mxu0 %v4361
        %5134 = vmatpush.bf16.msra.mxu0 %v4353
        %5135 = vmatpush.bf16.msra.mxu0 %v4345
        %5136 = vmatpush.bf16.msra.mxu0 %v4337
        %5137 = vmatpush.bf16.msra.mxu0 %v4329
        %5138 = vmatpush.bf16.msra.mxu0 %v4321
        %5139 = vmatpush.bf16.msra.mxu0 %v4313
        %5140 = vmatpush.bf16.msra.mxu0 %v4305
        %5141 = vmatmul.bf16.gmra.mxu0 %v2060
        %v5142 = vpop.f32.mrf.mxu0
        %v5143 = vadd.f32 %v5130, %v5142
        %v5144 = vpop.f32.mrf.mxu0
        %5145 = vdwg.mxu0
        %5146 = vmatpush.bf16.msra.mxu0 %v4425
        %5147 = vmatpush.bf16.msra.mxu0 %v4417
        %5148 = vmatpush.bf16.msra.mxu0 %v4409
        %5149 = vmatpush.bf16.msra.mxu0 %v4401
        %5150 = vmatpush.bf16.msra.mxu0 %v4393
        %5151 = vmatpush.bf16.msra.mxu0 %v4385
        %5152 = vmatpush.bf16.msra.mxu0 %v4377
        %5153 = vmatpush.bf16.msra.mxu0 %v4369
        %5154 = vmatmul.bf16.gmra.mxu0 %v2061
        %v5155 = vpop.f32.mrf.mxu0
        %v5156 = vadd.f32 %v5143, %v5155
        %v5157 = vpop.f32.mrf.mxu0
        %5158 = vdwg.mxu0
        %5159 = vmatpush.bf16.msra.mxu0 0
        %5160 = vmatpush.bf16.msra.mxu0 0
        %5161 = vmatpush.bf16.msra.mxu0 0
        %5162 = vmatpush.bf16.msra.mxu0 0
        %5163 = vmatpush.bf16.msra.mxu0 %v4457
        %5164 = vmatpush.bf16.msra.mxu0 %v4449
        %5165 = vmatpush.bf16.msra.mxu0 %v4441
        %5166 = vmatpush.bf16.msra.mxu0 %v4433
        %5167 = vmatmul.bf16.gmra.mxu0 %v4962
        %v5168 = vpop.f32.mrf.mxu0
        %v5169 = vadd.f32 %v5156, %v5168
        %v5170 = vpop.f32.mrf.mxu0
        %5171 = vdwg.mxu0
        %5172 = vmatpush.bf16.msra.mxu0 %v4042
        %5173 = vmatpush.bf16.msra.mxu0 %v4034
        %5174 = vmatpush.bf16.msra.mxu0 %v4026
        %5175 = vmatpush.bf16.msra.mxu0 %v4018
        %5176 = vmatpush.bf16.msra.mxu0 %v4010
        %5177 = vmatpush.bf16.msra.mxu0 %v4002
        %5178 = vmatpush.bf16.msra.mxu0 %v3994
        %5179 = vmatpush.bf16.msra.mxu0 %v3986
        %5180 = vmatmul.bf16.gmra.mxu0 %v2055
        %v5181 = vpop.f32.mrf.mxu0
        %v5182 = vadd.f32 %v4947, %v5181
        %v5183 = vpop.f32.mrf.mxu0
        %5184 = vdwg.mxu0
        %5185 = vmatpush.bf16.msra.mxu0 %v4106
        %5186 = vmatpush.bf16.msra.mxu0 %v4098
        %5187 = vmatpush.bf16.msra.mxu0 %v4090
        %5188 = vmatpush.bf16.msra.mxu0 %v4082
        %5189 = vmatpush.bf16.msra.mxu0 %v4074
        %5190 = vmatpush.bf16.msra.mxu0 %v4066
        %5191 = vmatpush.bf16.msra.mxu0 %v4058
        %5192 = vmatpush.bf16.msra.mxu0 %v4050
        %5193 = vmatmul.bf16.gmra.mxu0 %v2056
        %v5194 = vpop.f32.mrf.mxu0
        %v5195 = vadd.f32 %v5182, %v5194
        %v5196 = vpop.f32.mrf.mxu0
        %5197 = vdwg.mxu0
        %5198 = vmatpush.bf16.msra.mxu0 %v4170
        %5199 = vmatpush.bf16.msra.mxu0 %v4162
        %5200 = vmatpush.bf16.msra.mxu0 %v4154
        %5201 = vmatpush.bf16.msra.mxu0 %v4146
        %5202 = vmatpush.bf16.msra.mxu0 %v4138
        %5203 = vmatpush.bf16.msra.mxu0 %v4130
        %5204 = vmatpush.bf16.msra.mxu0 %v4122
        %5205 = vmatpush.bf16.msra.mxu0 %v4114
        %5206 = vmatmul.bf16.gmra.mxu0 %v2057
        %v5207 = vpop.f32.mrf.mxu0
        %v5208 = vadd.f32 %v5195, %v5207
        %v5209 = vpop.f32.mrf.mxu0
        %5210 = vdwg.mxu0
        %5211 = vmatpush.bf16.msra.mxu0 %v4234
        %5212 = vmatpush.bf16.msra.mxu0 %v4226
        %5213 = vmatpush.bf16.msra.mxu0 %v4218
        %5214 = vmatpush.bf16.msra.mxu0 %v4210
        %5215 = vmatpush.bf16.msra.mxu0 %v4202
        %5216 = vmatpush.bf16.msra.mxu0 %v4194
        %5217 = vmatpush.bf16.msra.mxu0 %v4186
        %5218 = vmatpush.bf16.msra.mxu0 %v4178
        %5219 = vmatmul.bf16.gmra.mxu0 %v2058
        %v5220 = vpop.f32.mrf.mxu0
        %v5221 = vadd.f32 %v5208, %v5220
        %v5222 = vpop.f32.mrf.mxu0
        %5223 = vdwg.mxu0
        %5224 = vmatpush.bf16.msra.mxu0 %v4298
        %5225 = vmatpush.bf16.msra.mxu0 %v4290
        %5226 = vmatpush.bf16.msra.mxu0 %v4282
        %5227 = vmatpush.bf16.msra.mxu0 %v4274
        %5228 = vmatpush.bf16.msra.mxu0 %v4266
        %5229 = vmatpush.bf16.msra.mxu0 %v4258
        %5230 = vmatpush.bf16.msra.mxu0 %v4250
        %5231 = vmatpush.bf16.msra.mxu0 %v4242
        %5232 = vmatmul.bf16.gmra.mxu0 %v2059
        %v5233 = vpop.f32.mrf.mxu0
        %v5234 = vadd.f32 %v5221, %v5233
        %v5235 = vpop.f32.mrf.mxu0
        %5236 = vdwg.mxu0
        %5237 = vmatpush.bf16.msra.mxu0 %v4362
        %5238 = vmatpush.bf16.msra.mxu0 %v4354
        %5239 = vmatpush.bf16.msra.mxu0 %v4346
        %5240 = vmatpush.bf16.msra.mxu0 %v4338
        %5241 = vmatpush.bf16.msra.mxu0 %v4330
        %5242 = vmatpush.bf16.msra.mxu0 %v4322
        %5243 = vmatpush.bf16.msra.mxu0 %v4314
        %5244 = vmatpush.bf16.msra.mxu0 %v4306
        %5245 = vmatmul.bf16.gmra.mxu0 %v2060
        %v5246 = vpop.f32.mrf.mxu0
        %v5247 = vadd.f32 %v5234, %v5246
        %v5248 = vpop.f32.mrf.mxu0
        %5249 = vdwg.mxu0
        %5250 = vmatpush.bf16.msra.mxu0 %v4426
        %5251 = vmatpush.bf16.msra.mxu0 %v4418
        %5252 = vmatpush.bf16.msra.mxu0 %v4410
        %5253 = vmatpush.bf16.msra.mxu0 %v4402
        %5254 = vmatpush.bf16.msra.mxu0 %v4394
        %5255 = vmatpush.bf16.msra.mxu0 %v4386
        %5256 = vmatpush.bf16.msra.mxu0 %v4378
        %5257 = vmatpush.bf16.msra.mxu0 %v4370
        %5258 = vmatmul.bf16.gmra.mxu0 %v2061
        %v5259 = vpop.f32.mrf.mxu0
        %v5260 = vadd.f32 %v5247, %v5259
        %v5261 = vpop.f32.mrf.mxu0
        %5262 = vdwg.mxu0
        %5263 = vmatpush.bf16.msra.mxu0 0
        %5264 = vmatpush.bf16.msra.mxu0 0
        %5265 = vmatpush.bf16.msra.mxu0 0
        %5266 = vmatpush.bf16.msra.mxu0 0
        %5267 = vmatpush.bf16.msra.mxu0 %v4458
        %5268 = vmatpush.bf16.msra.mxu0 %v4450
        %5269 = vmatpush.bf16.msra.mxu0 %v4442
        %5270 = vmatpush.bf16.msra.mxu0 %v4434
        %5271 = vmatmul.bf16.gmra.mxu0 %v4962
        %v5272 = vpop.f32.mrf.mxu0
        %v5273 = vadd.f32 %v5260, %v5272
        %v5274 = vpop.f32.mrf.mxu0
        %5275 = vdwg.mxu0
        %5276 = vmatpush.bf16.msra.mxu0 %v4043
        %5277 = vmatpush.bf16.msra.mxu0 %v4035
        %5278 = vmatpush.bf16.msra.mxu0 %v4027
        %5279 = vmatpush.bf16.msra.mxu0 %v4019
        %5280 = vmatpush.bf16.msra.mxu0 %v4011
        %5281 = vmatpush.bf16.msra.mxu0 %v4003
        %5282 = vmatpush.bf16.msra.mxu0 %v3995
        %5283 = vmatpush.bf16.msra.mxu0 %v3987
        %5284 = vmatmul.bf16.gmra.mxu0 %v2055
        %v5285 = vpop.f32.mrf.mxu0
        %v5286 = vadd.f32 %v4948, %v5285
        %v5287 = vpop.f32.mrf.mxu0
        %5288 = vdwg.mxu0
        %5289 = vmatpush.bf16.msra.mxu0 %v4107
        %5290 = vmatpush.bf16.msra.mxu0 %v4099
        %5291 = vmatpush.bf16.msra.mxu0 %v4091
        %5292 = vmatpush.bf16.msra.mxu0 %v4083
        %5293 = vmatpush.bf16.msra.mxu0 %v4075
        %5294 = vmatpush.bf16.msra.mxu0 %v4067
        %5295 = vmatpush.bf16.msra.mxu0 %v4059
        %5296 = vmatpush.bf16.msra.mxu0 %v4051
        %5297 = vmatmul.bf16.gmra.mxu0 %v2056
        %v5298 = vpop.f32.mrf.mxu0
        %v5299 = vadd.f32 %v5286, %v5298
        %v5300 = vpop.f32.mrf.mxu0
        %5301 = vdwg.mxu0
        %5302 = vmatpush.bf16.msra.mxu0 %v4171
        %5303 = vmatpush.bf16.msra.mxu0 %v4163
        %5304 = vmatpush.bf16.msra.mxu0 %v4155
        %5305 = vmatpush.bf16.msra.mxu0 %v4147
        %5306 = vmatpush.bf16.msra.mxu0 %v4139
        %5307 = vmatpush.bf16.msra.mxu0 %v4131
        %5308 = vmatpush.bf16.msra.mxu0 %v4123
        %5309 = vmatpush.bf16.msra.mxu0 %v4115
        %5310 = vmatmul.bf16.gmra.mxu0 %v2057
        %v5311 = vpop.f32.mrf.mxu0
        %v5312 = vadd.f32 %v5299, %v5311
        %v5313 = vpop.f32.mrf.mxu0
        %5314 = vdwg.mxu0
        %5315 = vmatpush.bf16.msra.mxu0 %v4235
        %5316 = vmatpush.bf16.msra.mxu0 %v4227
        %5317 = vmatpush.bf16.msra.mxu0 %v4219
        %5318 = vmatpush.bf16.msra.mxu0 %v4211
        %5319 = vmatpush.bf16.msra.mxu0 %v4203
        %5320 = vmatpush.bf16.msra.mxu0 %v4195
        %5321 = vmatpush.bf16.msra.mxu0 %v4187
        %5322 = vmatpush.bf16.msra.mxu0 %v4179
        %5323 = vmatmul.bf16.gmra.mxu0 %v2058
        %v5324 = vpop.f32.mrf.mxu0
        %v5325 = vadd.f32 %v5312, %v5324
        %v5326 = vpop.f32.mrf.mxu0
        %5327 = vdwg.mxu0
        %5328 = vmatpush.bf16.msra.mxu0 %v4299
        %5329 = vmatpush.bf16.msra.mxu0 %v4291
        %5330 = vmatpush.bf16.msra.mxu0 %v4283
        %5331 = vmatpush.bf16.msra.mxu0 %v4275
        %5332 = vmatpush.bf16.msra.mxu0 %v4267
        %5333 = vmatpush.bf16.msra.mxu0 %v4259
        %5334 = vmatpush.bf16.msra.mxu0 %v4251
        %5335 = vmatpush.bf16.msra.mxu0 %v4243
        %5336 = vmatmul.bf16.gmra.mxu0 %v2059
        %v5337 = vpop.f32.mrf.mxu0
        %v5338 = vadd.f32 %v5325, %v5337
        %v5339 = vpop.f32.mrf.mxu0
        %5340 = vdwg.mxu0
        %5341 = vmatpush.bf16.msra.mxu0 %v4363
        %5342 = vmatpush.bf16.msra.mxu0 %v4355
        %5343 = vmatpush.bf16.msra.mxu0 %v4347
        %5344 = vmatpush.bf16.msra.mxu0 %v4339
        %5345 = vmatpush.bf16.msra.mxu0 %v4331
        %5346 = vmatpush.bf16.msra.mxu0 %v4323
        %5347 = vmatpush.bf16.msra.mxu0 %v4315
        %5348 = vmatpush.bf16.msra.mxu0 %v4307
        %5349 = vmatmul.bf16.gmra.mxu0 %v2060
        %v5350 = vpop.f32.mrf.mxu0
        %v5351 = vadd.f32 %v5338, %v5350
        %v5352 = vpop.f32.mrf.mxu0
        %5353 = vdwg.mxu0
        %5354 = vmatpush.bf16.msra.mxu0 %v4427
        %5355 = vmatpush.bf16.msra.mxu0 %v4419
        %5356 = vmatpush.bf16.msra.mxu0 %v4411
        %5357 = vmatpush.bf16.msra.mxu0 %v4403
        %5358 = vmatpush.bf16.msra.mxu0 %v4395
        %5359 = vmatpush.bf16.msra.mxu0 %v4387
        %5360 = vmatpush.bf16.msra.mxu0 %v4379
        %5361 = vmatpush.bf16.msra.mxu0 %v4371
        %5362 = vmatmul.bf16.gmra.mxu0 %v2061
        %v5363 = vpop.f32.mrf.mxu0
        %v5364 = vadd.f32 %v5351, %v5363
        %v5365 = vpop.f32.mrf.mxu0
        %5366 = vdwg.mxu0
        %5367 = vmatpush.bf16.msra.mxu0 0
        %5368 = vmatpush.bf16.msra.mxu0 0
        %5369 = vmatpush.bf16.msra.mxu0 0
        %5370 = vmatpush.bf16.msra.mxu0 0
        %5371 = vmatpush.bf16.msra.mxu0 %v4459
        %5372 = vmatpush.bf16.msra.mxu0 %v4451
        %5373 = vmatpush.bf16.msra.mxu0 %v4443
        %5374 = vmatpush.bf16.msra.mxu0 %v4435
        %5375 = vmatmul.bf16.gmra.mxu0 %v4962
        %v5376 = vpop.f32.mrf.mxu0
        %v5377 = vadd.f32 %v5364, %v5376
        %v5378 = vpop.f32.mrf.mxu0
        %5379 = vdwg.mxu0
        %5380 = vmatpush.bf16.msra.mxu0 %v4044
        %5381 = vmatpush.bf16.msra.mxu0 %v4036
        %5382 = vmatpush.bf16.msra.mxu0 %v4028
        %5383 = vmatpush.bf16.msra.mxu0 %v4020
        %5384 = vmatpush.bf16.msra.mxu0 %v4012
        %5385 = vmatpush.bf16.msra.mxu0 %v4004
        %5386 = vmatpush.bf16.msra.mxu0 %v3996
        %5387 = vmatpush.bf16.msra.mxu0 %v3988
        %5388 = vmatmul.bf16.gmra.mxu0 %v2055
        %v5389 = vpop.f32.mrf.mxu0
        %v5390 = vadd.f32 %v4949, %v5389
        %v5391 = vpop.f32.mrf.mxu0
        %5392 = vdwg.mxu0
        %5393 = vmatpush.bf16.msra.mxu0 %v4108
        %5394 = vmatpush.bf16.msra.mxu0 %v4100
        %5395 = vmatpush.bf16.msra.mxu0 %v4092
        %5396 = vmatpush.bf16.msra.mxu0 %v4084
        %5397 = vmatpush.bf16.msra.mxu0 %v4076
        %5398 = vmatpush.bf16.msra.mxu0 %v4068
        %5399 = vmatpush.bf16.msra.mxu0 %v4060
        %5400 = vmatpush.bf16.msra.mxu0 %v4052
        %5401 = vmatmul.bf16.gmra.mxu0 %v2056
        %v5402 = vpop.f32.mrf.mxu0
        %v5403 = vadd.f32 %v5390, %v5402
        %v5404 = vpop.f32.mrf.mxu0
        %5405 = vdwg.mxu0
        %5406 = vmatpush.bf16.msra.mxu0 %v4172
        %5407 = vmatpush.bf16.msra.mxu0 %v4164
        %5408 = vmatpush.bf16.msra.mxu0 %v4156
        %5409 = vmatpush.bf16.msra.mxu0 %v4148
        %5410 = vmatpush.bf16.msra.mxu0 %v4140
        %5411 = vmatpush.bf16.msra.mxu0 %v4132
        %5412 = vmatpush.bf16.msra.mxu0 %v4124
        %5413 = vmatpush.bf16.msra.mxu0 %v4116
        %5414 = vmatmul.bf16.gmra.mxu0 %v2057
        %v5415 = vpop.f32.mrf.mxu0
        %v5416 = vadd.f32 %v5403, %v5415
        %v5417 = vpop.f32.mrf.mxu0
        %5418 = vdwg.mxu0
        %5419 = vmatpush.bf16.msra.mxu0 %v4236
        %5420 = vmatpush.bf16.msra.mxu0 %v4228
        %5421 = vmatpush.bf16.msra.mxu0 %v4220
        %5422 = vmatpush.bf16.msra.mxu0 %v4212
        %5423 = vmatpush.bf16.msra.mxu0 %v4204
        %5424 = vmatpush.bf16.msra.mxu0 %v4196
        %5425 = vmatpush.bf16.msra.mxu0 %v4188
        %5426 = vmatpush.bf16.msra.mxu0 %v4180
        %5427 = vmatmul.bf16.gmra.mxu0 %v2058
        %v5428 = vpop.f32.mrf.mxu0
        %v5429 = vadd.f32 %v5416, %v5428
        %v5430 = vpop.f32.mrf.mxu0
        %5431 = vdwg.mxu0
        %5432 = vmatpush.bf16.msra.mxu0 %v4300
        %5433 = vmatpush.bf16.msra.mxu0 %v4292
        %5434 = vmatpush.bf16.msra.mxu0 %v4284
        %5435 = vmatpush.bf16.msra.mxu0 %v4276
        %5436 = vmatpush.bf16.msra.mxu0 %v4268
        %5437 = vmatpush.bf16.msra.mxu0 %v4260
        %5438 = vmatpush.bf16.msra.mxu0 %v4252
        %5439 = vmatpush.bf16.msra.mxu0 %v4244
        %5440 = vmatmul.bf16.gmra.mxu0 %v2059
        %v5441 = vpop.f32.mrf.mxu0
        %v5442 = vadd.f32 %v5429, %v5441
        %v5443 = vpop.f32.mrf.mxu0
        %5444 = vdwg.mxu0
        %5445 = vmatpush.bf16.msra.mxu0 %v4364
        %5446 = vmatpush.bf16.msra.mxu0 %v4356
        %5447 = vmatpush.bf16.msra.mxu0 %v4348
        %5448 = vmatpush.bf16.msra.mxu0 %v4340
        %5449 = vmatpush.bf16.msra.mxu0 %v4332
        %5450 = vmatpush.bf16.msra.mxu0 %v4324
        %5451 = vmatpush.bf16.msra.mxu0 %v4316
        %5452 = vmatpush.bf16.msra.mxu0 %v4308
        %5453 = vmatmul.bf16.gmra.mxu0 %v2060
        %v5454 = vpop.f32.mrf.mxu0
        %v5455 = vadd.f32 %v5442, %v5454
        %v5456 = vpop.f32.mrf.mxu0
        %5457 = vdwg.mxu0
        %5458 = vmatpush.bf16.msra.mxu0 %v4428
        %5459 = vmatpush.bf16.msra.mxu0 %v4420
        %5460 = vmatpush.bf16.msra.mxu0 %v4412
        %5461 = vmatpush.bf16.msra.mxu0 %v4404
        %5462 = vmatpush.bf16.msra.mxu0 %v4396
        %5463 = vmatpush.bf16.msra.mxu0 %v4388
        %5464 = vmatpush.bf16.msra.mxu0 %v4380
        %5465 = vmatpush.bf16.msra.mxu0 %v4372
        %5466 = vmatmul.bf16.gmra.mxu0 %v2061
        %v5467 = vpop.f32.mrf.mxu0
        %v5468 = vadd.f32 %v5455, %v5467
        %v5469 = vpop.f32.mrf.mxu0
        %5470 = vdwg.mxu0
        %5471 = vmatpush.bf16.msra.mxu0 0
        %5472 = vmatpush.bf16.msra.mxu0 0
        %5473 = vmatpush.bf16.msra.mxu0 0
        %5474 = vmatpush.bf16.msra.mxu0 0
        %5475 = vmatpush.bf16.msra.mxu0 %v4460
        %5476 = vmatpush.bf16.msra.mxu0 %v4452
        %5477 = vmatpush.bf16.msra.mxu0 %v4444
        %5478 = vmatpush.bf16.msra.mxu0 %v4436
        %5479 = vmatmul.bf16.gmra.mxu0 %v4962
        %v5480 = vpop.f32.mrf.mxu0
        %v5481 = vadd.f32 %v5468, %v5480
        %v5482 = vpop.f32.mrf.mxu0
        %5483 = vdwg.mxu0
        %5484 = vmatpush.bf16.msra.mxu0 %v4045
        %5485 = vmatpush.bf16.msra.mxu0 %v4037
        %5486 = vmatpush.bf16.msra.mxu0 %v4029
        %5487 = vmatpush.bf16.msra.mxu0 %v4021
        %5488 = vmatpush.bf16.msra.mxu0 %v4013
        %5489 = vmatpush.bf16.msra.mxu0 %v4005
        %5490 = vmatpush.bf16.msra.mxu0 %v3997
        %5491 = vmatpush.bf16.msra.mxu0 %v3989
        %5492 = vmatmul.bf16.gmra.mxu0 %v2055
        %v5493 = vpop.f32.mrf.mxu0
        %v5494 = vadd.f32 %v4950, %v5493
        %v5495 = vpop.f32.mrf.mxu0
        %5496 = vdwg.mxu0
        %5497 = vmatpush.bf16.msra.mxu0 %v4109
        %5498 = vmatpush.bf16.msra.mxu0 %v4101
        %5499 = vmatpush.bf16.msra.mxu0 %v4093
        %5500 = vmatpush.bf16.msra.mxu0 %v4085
        %5501 = vmatpush.bf16.msra.mxu0 %v4077
        %5502 = vmatpush.bf16.msra.mxu0 %v4069
        %5503 = vmatpush.bf16.msra.mxu0 %v4061
        %5504 = vmatpush.bf16.msra.mxu0 %v4053
        %5505 = vmatmul.bf16.gmra.mxu0 %v2056
        %v5506 = vpop.f32.mrf.mxu0
        %v5507 = vadd.f32 %v5494, %v5506
        %v5508 = vpop.f32.mrf.mxu0
        %5509 = vdwg.mxu0
        %5510 = vmatpush.bf16.msra.mxu0 %v4173
        %5511 = vmatpush.bf16.msra.mxu0 %v4165
        %5512 = vmatpush.bf16.msra.mxu0 %v4157
        %5513 = vmatpush.bf16.msra.mxu0 %v4149
        %5514 = vmatpush.bf16.msra.mxu0 %v4141
        %5515 = vmatpush.bf16.msra.mxu0 %v4133
        %5516 = vmatpush.bf16.msra.mxu0 %v4125
        %5517 = vmatpush.bf16.msra.mxu0 %v4117
        %5518 = vmatmul.bf16.gmra.mxu0 %v2057
        %v5519 = vpop.f32.mrf.mxu0
        %v5520 = vadd.f32 %v5507, %v5519
        %v5521 = vpop.f32.mrf.mxu0
        %5522 = vdwg.mxu0
        %5523 = vmatpush.bf16.msra.mxu0 %v4237
        %5524 = vmatpush.bf16.msra.mxu0 %v4229
        %5525 = vmatpush.bf16.msra.mxu0 %v4221
        %5526 = vmatpush.bf16.msra.mxu0 %v4213
        %5527 = vmatpush.bf16.msra.mxu0 %v4205
        %5528 = vmatpush.bf16.msra.mxu0 %v4197
        %5529 = vmatpush.bf16.msra.mxu0 %v4189
        %5530 = vmatpush.bf16.msra.mxu0 %v4181
        %5531 = vmatmul.bf16.gmra.mxu0 %v2058
        %v5532 = vpop.f32.mrf.mxu0
        %v5533 = vadd.f32 %v5520, %v5532
        %v5534 = vpop.f32.mrf.mxu0
        %5535 = vdwg.mxu0
        %5536 = vmatpush.bf16.msra.mxu0 %v4301
        %5537 = vmatpush.bf16.msra.mxu0 %v4293
        %5538 = vmatpush.bf16.msra.mxu0 %v4285
        %5539 = vmatpush.bf16.msra.mxu0 %v4277
        %5540 = vmatpush.bf16.msra.mxu0 %v4269
        %5541 = vmatpush.bf16.msra.mxu0 %v4261
        %5542 = vmatpush.bf16.msra.mxu0 %v4253
        %5543 = vmatpush.bf16.msra.mxu0 %v4245
        %5544 = vmatmul.bf16.gmra.mxu0 %v2059
        %v5545 = vpop.f32.mrf.mxu0
        %v5546 = vadd.f32 %v5533, %v5545
        %v5547 = vpop.f32.mrf.mxu0
        %5548 = vdwg.mxu0
        %5549 = vmatpush.bf16.msra.mxu0 %v4365
        %5550 = vmatpush.bf16.msra.mxu0 %v4357
        %5551 = vmatpush.bf16.msra.mxu0 %v4349
        %5552 = vmatpush.bf16.msra.mxu0 %v4341
        %5553 = vmatpush.bf16.msra.mxu0 %v4333
        %5554 = vmatpush.bf16.msra.mxu0 %v4325
        %5555 = vmatpush.bf16.msra.mxu0 %v4317
        %5556 = vmatpush.bf16.msra.mxu0 %v4309
        %5557 = vmatmul.bf16.gmra.mxu0 %v2060
        %v5558 = vpop.f32.mrf.mxu0
        %v5559 = vadd.f32 %v5546, %v5558
        %v5560 = vpop.f32.mrf.mxu0
        %5561 = vdwg.mxu0
        %5562 = vmatpush.bf16.msra.mxu0 %v4429
        %5563 = vmatpush.bf16.msra.mxu0 %v4421
        %5564 = vmatpush.bf16.msra.mxu0 %v4413
        %5565 = vmatpush.bf16.msra.mxu0 %v4405
        %5566 = vmatpush.bf16.msra.mxu0 %v4397
        %5567 = vmatpush.bf16.msra.mxu0 %v4389
        %5568 = vmatpush.bf16.msra.mxu0 %v4381
        %5569 = vmatpush.bf16.msra.mxu0 %v4373
        %5570 = vmatmul.bf16.gmra.mxu0 %v2061
        %v5571 = vpop.f32.mrf.mxu0
        %v5572 = vadd.f32 %v5559, %v5571
        %v5573 = vpop.f32.mrf.mxu0
        %5574 = vdwg.mxu0
        %5575 = vmatpush.bf16.msra.mxu0 0
        %5576 = vmatpush.bf16.msra.mxu0 0
        %5577 = vmatpush.bf16.msra.mxu0 0
        %5578 = vmatpush.bf16.msra.mxu0 0
        %5579 = vmatpush.bf16.msra.mxu0 %v4461
        %5580 = vmatpush.bf16.msra.mxu0 %v4453
        %5581 = vmatpush.bf16.msra.mxu0 %v4445
        %5582 = vmatpush.bf16.msra.mxu0 %v4437
        %5583 = vmatmul.bf16.gmra.mxu0 %v4962
        %v5584 = vpop.f32.mrf.mxu0
        %v5585 = vadd.f32 %v5572, %v5584
        %v5586 = vpop.f32.mrf.mxu0
        %5587 = vdwg.mxu0
        %5588 = vmatpush.bf16.msra.mxu0 %v4046
        %5589 = vmatpush.bf16.msra.mxu0 %v4038
        %5590 = vmatpush.bf16.msra.mxu0 %v4030
        %5591 = vmatpush.bf16.msra.mxu0 %v4022
        %5592 = vmatpush.bf16.msra.mxu0 %v4014
        %5593 = vmatpush.bf16.msra.mxu0 %v4006
        %5594 = vmatpush.bf16.msra.mxu0 %v3998
        %5595 = vmatpush.bf16.msra.mxu0 %v3990
        %5596 = vmatmul.bf16.gmra.mxu0 %v2055
        %v5597 = vpop.f32.mrf.mxu0
        %v5598 = vadd.f32 %v4951, %v5597
        %v5599 = vpop.f32.mrf.mxu0
        %5600 = vdwg.mxu0
        %5601 = vmatpush.bf16.msra.mxu0 %v4110
        %5602 = vmatpush.bf16.msra.mxu0 %v4102
        %5603 = vmatpush.bf16.msra.mxu0 %v4094
        %5604 = vmatpush.bf16.msra.mxu0 %v4086
        %5605 = vmatpush.bf16.msra.mxu0 %v4078
        %5606 = vmatpush.bf16.msra.mxu0 %v4070
        %5607 = vmatpush.bf16.msra.mxu0 %v4062
        %5608 = vmatpush.bf16.msra.mxu0 %v4054
        %5609 = vmatmul.bf16.gmra.mxu0 %v2056
        %v5610 = vpop.f32.mrf.mxu0
        %v5611 = vadd.f32 %v5598, %v5610
        %v5612 = vpop.f32.mrf.mxu0
        %5613 = vdwg.mxu0
        %5614 = vmatpush.bf16.msra.mxu0 %v4174
        %5615 = vmatpush.bf16.msra.mxu0 %v4166
        %5616 = vmatpush.bf16.msra.mxu0 %v4158
        %5617 = vmatpush.bf16.msra.mxu0 %v4150
        %5618 = vmatpush.bf16.msra.mxu0 %v4142
        %5619 = vmatpush.bf16.msra.mxu0 %v4134
        %5620 = vmatpush.bf16.msra.mxu0 %v4126
        %5621 = vmatpush.bf16.msra.mxu0 %v4118
        %5622 = vmatmul.bf16.gmra.mxu0 %v2057
        %v5623 = vpop.f32.mrf.mxu0
        %v5624 = vadd.f32 %v5611, %v5623
        %v5625 = vpop.f32.mrf.mxu0
        %5626 = vdwg.mxu0
        %5627 = vmatpush.bf16.msra.mxu0 %v4238
        %5628 = vmatpush.bf16.msra.mxu0 %v4230
        %5629 = vmatpush.bf16.msra.mxu0 %v4222
        %5630 = vmatpush.bf16.msra.mxu0 %v4214
        %5631 = vmatpush.bf16.msra.mxu0 %v4206
        %5632 = vmatpush.bf16.msra.mxu0 %v4198
        %5633 = vmatpush.bf16.msra.mxu0 %v4190
        %5634 = vmatpush.bf16.msra.mxu0 %v4182
        %5635 = vmatmul.bf16.gmra.mxu0 %v2058
        %v5636 = vpop.f32.mrf.mxu0
        %v5637 = vadd.f32 %v5624, %v5636
        %v5638 = vpop.f32.mrf.mxu0
        %5639 = vdwg.mxu0
        %5640 = vmatpush.bf16.msra.mxu0 %v4302
        %5641 = vmatpush.bf16.msra.mxu0 %v4294
        %5642 = vmatpush.bf16.msra.mxu0 %v4286
        %5643 = vmatpush.bf16.msra.mxu0 %v4278
        %5644 = vmatpush.bf16.msra.mxu0 %v4270
        %5645 = vmatpush.bf16.msra.mxu0 %v4262
        %5646 = vmatpush.bf16.msra.mxu0 %v4254
        %5647 = vmatpush.bf16.msra.mxu0 %v4246
        %5648 = vmatmul.bf16.gmra.mxu0 %v2059
        %v5649 = vpop.f32.mrf.mxu0
        %v5650 = vadd.f32 %v5637, %v5649
        %v5651 = vpop.f32.mrf.mxu0
        %5652 = vdwg.mxu0
        %5653 = vmatpush.bf16.msra.mxu0 %v4366
        %5654 = vmatpush.bf16.msra.mxu0 %v4358
        %5655 = vmatpush.bf16.msra.mxu0 %v4350
        %5656 = vmatpush.bf16.msra.mxu0 %v4342
        %5657 = vmatpush.bf16.msra.mxu0 %v4334
        %5658 = vmatpush.bf16.msra.mxu0 %v4326
        %5659 = vmatpush.bf16.msra.mxu0 %v4318
        %5660 = vmatpush.bf16.msra.mxu0 %v4310
        %5661 = vmatmul.bf16.gmra.mxu0 %v2060
        %v5662 = vpop.f32.mrf.mxu0
        %v5663 = vadd.f32 %v5650, %v5662
        %v5664 = vpop.f32.mrf.mxu0
        %5665 = vdwg.mxu0
        %5666 = vmatpush.bf16.msra.mxu0 %v4430
        %5667 = vmatpush.bf16.msra.mxu0 %v4422
        %5668 = vmatpush.bf16.msra.mxu0 %v4414
        %5669 = vmatpush.bf16.msra.mxu0 %v4406
        %5670 = vmatpush.bf16.msra.mxu0 %v4398
        %5671 = vmatpush.bf16.msra.mxu0 %v4390
        %5672 = vmatpush.bf16.msra.mxu0 %v4382
        %5673 = vmatpush.bf16.msra.mxu0 %v4374
        %5674 = vmatmul.bf16.gmra.mxu0 %v2061
        %v5675 = vpop.f32.mrf.mxu0
        %v5676 = vadd.f32 %v5663, %v5675
        %v5677 = vpop.f32.mrf.mxu0
        %5678 = vdwg.mxu0
        %5679 = vmatpush.bf16.msra.mxu0 0
        %5680 = vmatpush.bf16.msra.mxu0 0
        %5681 = vmatpush.bf16.msra.mxu0 0
        %5682 = vmatpush.bf16.msra.mxu0 0
        %5683 = vmatpush.bf16.msra.mxu0 %v4462
        %5684 = vmatpush.bf16.msra.mxu0 %v4454
        %5685 = vmatpush.bf16.msra.mxu0 %v4446
        %5686 = vmatpush.bf16.msra.mxu0 %v4438
        %5687 = vmatmul.bf16.gmra.mxu0 %v4962
        %v5688 = vpop.f32.mrf.mxu0
        %v5689 = vadd.f32 %v5676, %v5688
        %v5690 = vpop.f32.mrf.mxu0
        %5691 = vdwg.mxu0
        %5692 = vmatpush.bf16.msra.mxu0 %v4047
        %5693 = vmatpush.bf16.msra.mxu0 %v4039
        %5694 = vmatpush.bf16.msra.mxu0 %v4031
        %5695 = vmatpush.bf16.msra.mxu0 %v4023
        %5696 = vmatpush.bf16.msra.mxu0 %v4015
        %5697 = vmatpush.bf16.msra.mxu0 %v4007
        %5698 = vmatpush.bf16.msra.mxu0 %v3999
        %5699 = vmatpush.bf16.msra.mxu0 %v3991
        %5700 = vmatmul.bf16.gmra.mxu0 %v2055
        %v5701 = vpop.f32.mrf.mxu0
        %v5702 = vadd.f32 %v4952, %v5701
        %v5703 = vpop.f32.mrf.mxu0
        %5704 = vdwg.mxu0
        %5705 = vmatpush.bf16.msra.mxu0 %v4111
        %5706 = vmatpush.bf16.msra.mxu0 %v4103
        %5707 = vmatpush.bf16.msra.mxu0 %v4095
        %5708 = vmatpush.bf16.msra.mxu0 %v4087
        %5709 = vmatpush.bf16.msra.mxu0 %v4079
        %5710 = vmatpush.bf16.msra.mxu0 %v4071
        %5711 = vmatpush.bf16.msra.mxu0 %v4063
        %5712 = vmatpush.bf16.msra.mxu0 %v4055
        %5713 = vmatmul.bf16.gmra.mxu0 %v2056
        %v5714 = vpop.f32.mrf.mxu0
        %v5715 = vadd.f32 %v5702, %v5714
        %v5716 = vpop.f32.mrf.mxu0
        %5717 = vdwg.mxu0
        %5718 = vmatpush.bf16.msra.mxu0 %v4175
        %5719 = vmatpush.bf16.msra.mxu0 %v4167
        %5720 = vmatpush.bf16.msra.mxu0 %v4159
        %5721 = vmatpush.bf16.msra.mxu0 %v4151
        %5722 = vmatpush.bf16.msra.mxu0 %v4143
        %5723 = vmatpush.bf16.msra.mxu0 %v4135
        %5724 = vmatpush.bf16.msra.mxu0 %v4127
        %5725 = vmatpush.bf16.msra.mxu0 %v4119
        %5726 = vmatmul.bf16.gmra.mxu0 %v2057
        %v5727 = vpop.f32.mrf.mxu0
        %v5728 = vadd.f32 %v5715, %v5727
        %v5729 = vpop.f32.mrf.mxu0
        %5730 = vdwg.mxu0
        %5731 = vmatpush.bf16.msra.mxu0 %v4239
        %5732 = vmatpush.bf16.msra.mxu0 %v4231
        %5733 = vmatpush.bf16.msra.mxu0 %v4223
        %5734 = vmatpush.bf16.msra.mxu0 %v4215
        %5735 = vmatpush.bf16.msra.mxu0 %v4207
        %5736 = vmatpush.bf16.msra.mxu0 %v4199
        %5737 = vmatpush.bf16.msra.mxu0 %v4191
        %5738 = vmatpush.bf16.msra.mxu0 %v4183
        %5739 = vmatmul.bf16.gmra.mxu0 %v2058
        %v5740 = vpop.f32.mrf.mxu0
        %v5741 = vadd.f32 %v5728, %v5740
        %v5742 = vpop.f32.mrf.mxu0
        %5743 = vdwg.mxu0
        %5744 = vmatpush.bf16.msra.mxu0 %v4303
        %5745 = vmatpush.bf16.msra.mxu0 %v4295
        %5746 = vmatpush.bf16.msra.mxu0 %v4287
        %5747 = vmatpush.bf16.msra.mxu0 %v4279
        %5748 = vmatpush.bf16.msra.mxu0 %v4271
        %5749 = vmatpush.bf16.msra.mxu0 %v4263
        %5750 = vmatpush.bf16.msra.mxu0 %v4255
        %5751 = vmatpush.bf16.msra.mxu0 %v4247
        %5752 = vmatmul.bf16.gmra.mxu0 %v2059
        %v5753 = vpop.f32.mrf.mxu0
        %v5754 = vadd.f32 %v5741, %v5753
        %v5755 = vpop.f32.mrf.mxu0
        %5756 = vdwg.mxu0
        %5757 = vmatpush.bf16.msra.mxu0 %v4367
        %5758 = vmatpush.bf16.msra.mxu0 %v4359
        %5759 = vmatpush.bf16.msra.mxu0 %v4351
        %5760 = vmatpush.bf16.msra.mxu0 %v4343
        %5761 = vmatpush.bf16.msra.mxu0 %v4335
        %5762 = vmatpush.bf16.msra.mxu0 %v4327
        %5763 = vmatpush.bf16.msra.mxu0 %v4319
        %5764 = vmatpush.bf16.msra.mxu0 %v4311
        %5765 = vmatmul.bf16.gmra.mxu0 %v2060
        %v5766 = vpop.f32.mrf.mxu0
        %v5767 = vadd.f32 %v5754, %v5766
        %v5768 = vpop.f32.mrf.mxu0
        %5769 = vdwg.mxu0
        %5770 = vmatpush.bf16.msra.mxu0 %v4431
        %5771 = vmatpush.bf16.msra.mxu0 %v4423
        %5772 = vmatpush.bf16.msra.mxu0 %v4415
        %5773 = vmatpush.bf16.msra.mxu0 %v4407
        %5774 = vmatpush.bf16.msra.mxu0 %v4399
        %5775 = vmatpush.bf16.msra.mxu0 %v4391
        %5776 = vmatpush.bf16.msra.mxu0 %v4383
        %5777 = vmatpush.bf16.msra.mxu0 %v4375
        %5778 = vmatmul.bf16.gmra.mxu0 %v2061
        %v5779 = vpop.f32.mrf.mxu0
        %v5780 = vadd.f32 %v5767, %v5779
        %v5781 = vpop.f32.mrf.mxu0
        %5782 = vdwg.mxu0
        %5783 = vmatpush.bf16.msra.mxu0 0
        %5784 = vmatpush.bf16.msra.mxu0 0
        %5785 = vmatpush.bf16.msra.mxu0 0
        %5786 = vmatpush.bf16.msra.mxu0 0
        %5787 = vmatpush.bf16.msra.mxu0 %v4463
        %5788 = vmatpush.bf16.msra.mxu0 %v4455
        %5789 = vmatpush.bf16.msra.mxu0 %v4447
        %5790 = vmatpush.bf16.msra.mxu0 %v4439
        %5791 = vmatmul.bf16.gmra.mxu0 %v4962
        %v5792 = vpop.f32.mrf.mxu0
        %v5793 = vadd.f32 %v5780, %v5792
        %v5794 = vpop.f32.mrf.mxu0
        %5795 = vdwg.mxu0
        %v5796 = vmax.f32 %v5065, 0.0
        %v5797 = vmax.f32 %v5169, 0.0
        %v5798 = vmax.f32 %v5273, 0.0
        %v5799 = vmax.f32 %v5377, 0.0
        %v5800 = vmax.f32 %v5481, 0.0
        %v5801 = vmax.f32 %v5585, 0.0
        %v5802 = vmax.f32 %v5689, 0.0
        %v5803 = vmax.f32 %v5793, 0.0
        %v5804 = vld [vmem:[#allocation11] sm:$0xff]
        %v5806 = vperm.slane %v5804, 0
        %v5807 = vperm.slane %v5804, 1
        %v5808 = vperm.slane %v5804, 2
        %v5809 = vperm.slane %v5804, 3
        %v5810 = vperm.slane %v5804, 4
        %v5811 = vperm.slane %v5804, 5
        %v5812 = vperm.slane %v5804, 6
        %v5813 = vperm.slane %v5804, 7
        %v5822 = vmul.f32 %v5796, %v5806
        %v5823 = vmul.f32 %v5797, %v5807
        %v5824 = vmul.f32 %v5798, %v5808
        %v5825 = vmul.f32 %v5799, %v5809
        %v5826 = vmul.f32 %v5800, %v5810
        %v5827 = vmul.f32 %v5801, %v5811
        %v5828 = vmul.f32 %v5802, %v5812
        %v5829 = vmul.f32 %v5803, %v5813
        %vm5830 = vcmask 1040384
        %v5831 = vsel %vm5830, %v5822, 0.0
        %v5832 = vsel %vm5830, %v5823, 0.0
        %v5833 = vadd.f32 %v5831, %v5832
        %v5834 = vsel %vm5830, %v5824, 0.0
        %v5835 = vadd.f32 %v5833, %v5834
        %v5836 = vsel %vm5830, %v5825, 0.0
        %v5837 = vadd.f32 %v5835, %v5836
        %v5838 = vsel %vm5830, %v5826, 0.0
        %v5839 = vadd.f32 %v5837, %v5838
        %v5840 = vsel %vm5830, %v5827, 0.0
        %v5841 = vadd.f32 %v5839, %v5840
        %v5842 = vsel %vm5830, %v5828, 0.0
        %v5843 = vadd.f32 %v5841, %v5842
        %v5844 = vsel %vm5830, %v5829, 0.0
        %v5845 = vadd.f32 %v5843, %v5844
        %5846 = vadd.xlane.f32.xlu0 %v5845
        %v5847 = vpop.xlane.xlu0 %5846
        %v5848 = vld [vmem:[#allocation3] sm:$0x1]
        %v5849 = vadd.f32 %v5847, %v5848
        %v5850 = vxor.u32 %v5849, 2147483648
        %v5851 = vmul.f32 %v5850, 1.442695
        %v5852 = vpow.pop %v5851
        %v5853 = vadd.f32 %v5852, 1.0
        %v5854 = vrcp.pop %v5853
        %v5855 = vmul.f32 %v5853, %v5854
        %v5856 = vsub.f32 1.0, %v5855
        %v5857 = vmul.f32 %v5854, %v5856
        %v5858 = vadd.f32 %v5854, %v5857
        %vm5859 = vweird.f32 %v5853
        %vm5860 = vweird.f32 %v5854
        %vm5861 = vmor %vm5859, %vm5860
        %v5862 = vsel %vm5861, %v5854, %v5858
        %v5863 = vand.u32 2147483647, %v5853
        %vm5864 = vcmp.eq.f32.partialorder %v5863, 8.507059e+37
        %v5865 = vand.u32 %v5853, 2147483648
        %v5866 = vor.u32 1.1754944e-38, %v5865
        %v5867 = vsel %vm5864, %v5866, %v5862
        %v5868 = vmul.f32 1.0, %v5867
        %vm5869 = vcmask 0
        %5870 = vst.msk [vmem:[%s502] sm:$0x1] %vm5869, %v5868
        %p5871 = scmp.lt.s32.totalorder %s28, 1
        %s5872 = scalar_select %p5871, %s28, 1
        %s5873 = scalar_lea.vmem %s12, %s5872
        // Predicated region
        $region89: #{deep_raman_forward.1} parent=67 // pred_check
          %p5874 = pneg %p308
        $region90: #{deep_raman_forward.1} parent=67 // pred_check_branch
          %5876 = sbr.rel (%p5874) target = $region92
        $region91: #{deep_raman_forward.1} parent=67 // pred_region
          _
        $region92: #{deep_raman_forward.1} parent=67 // pred_fallthru
          _
      $region68: #{deep_raman_forward.1} parent=5 // pred_fallthru
        _
      %p5877 = scmp.le.s32.totalorder 2, %s23
      // Predicated region
      $region93: #{deep_raman_forward.1} parent=5 // pred_check
        %p5878 = pneg %p5877
      $region94: #{deep_raman_forward.1} parent=5 // pred_check_branch
        %5880 = sbr.rel (%p5878) target = $region96
      $region95: #{deep_raman_forward.1} parent=5 // pred_region
        %s5881 = ssub.s32 %s23, 2
        // Predicated region
        $region97: #{deep_raman_forward.1} parent=95 // pred_check
          %p5882 = pneg %p314
        $region98: #{deep_raman_forward.1} parent=95 // pred_check_branch
          %5884 = sbr.rel (%p5882) target = $region100
        $region99: #{deep_raman_forward.1} parent=95 // pred_region
          %p5885 = scmp.lt.s32.totalorder %s29, 1
          %s5886 = scalar_select %p5885, %s29, 1
          %s5887 = scalar_lea.vmem %s12, %s5886
        $region100: #{deep_raman_forward.1} parent=95 // pred_fallthru
          _
      $region96: #{deep_raman_forward.1} parent=5 // pred_fallthru
        _
    $region6: #{deep_raman_forward.1} parent=1 // loop_footer
      %s27 = sadd.s32 1, %s23
    $region7: #{deep_raman_forward.1} parent=1 // loop_footer_branch
      %22 = sbr.rel target = $region3
    $region8: #{deep_raman_forward.1} parent=1 // loop_exit
      _
    %5888 = vsyncpa [#allocation5], 1
    %s5889 = scalar_lea.sflag [#allocation5], 1
    %5890 = vsyncpa %s5889, 1
    %5891 = vsyncpa [#allocation7], 1
    %5892 = vsyncpa [#allocation10], 1

</llo_original>
